<compile_context>
chip_gen: v6e
topology: v6e:2x2x1
jax: 0.10.0
libtpu: 0.0.40
codegen_flags: <defaults>
</compile_context>

<pallas_src>
import functools

import jax
import jax.numpy as jnp
from jax.experimental import pallas as pl
from jax.experimental.pallas import tpu as pltpu


_BN_EPS = 1e-5
_LANE = 128
_VMEM_LIMIT = 32 * 1024 * 1024
# ResNet152 layer config: (planes, blocks, first-block stride)
_LAYER_CFG = ((64, 3, 1), (128, 8, 2), (256, 36, 2), (512, 3, 2))


def _round_up(x, m):
    return (x + m - 1) // m * m


# ----------------------------------------------------------------------------
# Packed weight container (arrays traced, logical N kept static)
# ----------------------------------------------------------------------------
@jax.tree_util.register_pytree_node_class
class PackedLinear:
    """Pre-transposed (K, N) weight with BN scale folded in, lane-padded bf16."""

    def __init__(self, w, bias, n):
        self.w = w        # (Kp, Np) bf16, BN scale already folded into columns
        self.bias = bias  # (1, Np) f32  (BN beta' or Linear bias)
        self.n = n        # logical output width (static)

    def tree_flatten(self):
        return (self.w, self.bias), self.n

    @classmethod
    def tree_unflatten(cls, aux, children):
        return cls(*children, aux)


# ----------------------------------------------------------------------------
# Pallas kernels: full-K matmul with fused bias (+residual) (+ReLU) epilogue
# ----------------------------------------------------------------------------
def _mm_kernel(a_ref, b_ref, c_ref, o_ref, *, relu):
    y = jnp.dot(a_ref[...], b_ref[...], preferred_element_type=jnp.float32)
    y = y + c_ref[...]
    if relu:
        y = jnp.maximum(y, 0.0)
    o_ref[...] = y.astype(o_ref.dtype)


def _mm_res_kernel(a_ref, b_ref, c_ref, r_ref, o_ref, *, relu):
    y = jnp.dot(a_ref[...], b_ref[...], preferred_element_type=jnp.float32)
    y = y + c_ref[...] + r_ref[...].astype(jnp.float32)
    if relu:
        y = jnp.maximum(y, 0.0)
    o_ref[...] = y.astype(o_ref.dtype)


def _linear_packed(a, pk, residual=None, *, relu, out_dtype=jnp.bfloat16):
    """out = maybe_relu((a @ W_folded) + bias [+ residual]); a:(M,K)."""
    M, K = a.shape
    Kp, Np = pk.w.shape
    # Bigger M tiles for the high-M early layers (fewer ~0.35us grid steps);
    # cap the A tile around 2 MiB so VMEM stays comfortable on every chip.
    if M >= 512 and Kp <= 2048:
        tm = 512
    elif M >= 256:
        tm = 256
    else:
        tm = _round_up(max(M, 1), 16)
    Mp = _round_up(M, tm)
    tn = 256 if (Np % 256 == 0) else 128

    a_p = jnp.pad(a.astype(jnp.bfloat16), ((0, Mp - M), (0, Kp - K)))

    a_spec = pl.BlockSpec((tm, Kp), lambda i, j: (i, 0))
    b_spec = pl.BlockSpec((Kp, tn), lambda i, j: (0, j))
    v_spec = pl.BlockSpec((1, tn), lambda i, j: (0, j))
    o_spec = pl.BlockSpec((tm, tn), lambda i, j: (i, j))

    if residual is None:
        kernel = functools.partial(_mm_kernel, relu=relu)
        in_specs = [a_spec, b_spec, v_spec]
        args = (a_p, pk.w, pk.bias)
        fuse = [True, False, False]
    else:
        Nr = residual.shape[1]
        r_p = jnp.pad(residual.astype(jnp.bfloat16),
                      ((0, Mp - M), (0, Np - Nr)))
        kernel = functools.partial(_mm_res_kernel, relu=relu)
        in_specs = [a_spec, b_spec, v_spec, o_spec]
        args = (a_p, pk.w, pk.bias, r_p)
        fuse = [True, False, False, True]

    out = pl.pallas_call(
        kernel,
        out_shape=jax.ShapeDtypeStruct((Mp, Np), out_dtype),
        grid_spec=pltpu.PrefetchScalarGridSpec(
            num_scalar_prefetch=0,
            grid=(Mp // tm, Np // tn),
            in_specs=in_specs,
            out_specs=o_spec),
        compiler_params=pltpu.CompilerParams(
            dimension_semantics=("parallel", "parallel"),
            vmem_limit_bytes=_VMEM_LIMIT,
            allow_input_fusion=fuse),
    )(*args)
    return out[:M, :pk.n]


# ----------------------------------------------------------------------------
# Convolution glue (NHWC im2col, fused into the pallas_call input) + matmul
# ----------------------------------------------------------------------------
def _conv_bn_impl(x, pk, residual=None, *, kh, kw, stride, padding, relu):
    """NHWC conv (bias-free) with folded inference BN (+ optional residual/ReLU)."""
    B, H, W, C = x.shape
    Ho = (H + 2 * padding - kh) // stride + 1
    Wo = (W + 2 * padding - kw) // stride + 1

    if kh == 1 and kw == 1 and padding == 0:
        a = x[:, ::stride, ::stride, :].reshape(B * Ho * Wo, C)
    else:
        xp = jnp.pad(x, ((0, 0), (padding, padding), (padding, padding), (0, 0)))
        cols = [xp[:, di:di + stride * Ho:stride, dj:dj + stride * Wo:stride, :]
                for di in range(kh) for dj in range(kw)]
        # (B, Ho, Wo, kh*kw, C) -> (B*Ho*Wo, kh*kw*C): channels stay on lane dim.
        a = jnp.stack(cols, axis=3).reshape(B * Ho * Wo, kh * kw * C)

    r = None
    if residual is not None:
        r = residual.reshape(B * Ho * Wo, residual.shape[-1])

    y = _linear_packed(a, pk, r, relu=relu, out_dtype=jnp.bfloat16)
    return y.reshape(B, Ho, Wo, pk.n)


def _bottleneck_impl(x, bp, *, stride):
    """torchvision Bottleneck: 1x1 -> 3x3(stride) -> 1x1, residual+ReLU fused."""
    out = _conv_bn_impl(x, bp["conv1"], kh=1, kw=1, stride=1, padding=0, relu=True)
    out = _conv_bn_impl(out, bp["conv2"], kh=3, kw=3, stride=stride, padding=1,
                        relu=True)
    if "down" in bp:
        identity = _conv_bn_impl(x, bp["down"], kh=1, kw=1, stride=stride,
                                 padding=0, relu=False)
    else:
        identity = x
    # Residual add + ReLU fused into the conv3 matmul epilogue.
    return _conv_bn_impl(out, bp["conv3"], identity, kh=1, kw=1, stride=1,
                         padding=0, relu=True)


def _stem_impl(images, stem_pk):
    # images: (B, 3, H, W) NCHW f32 -> NHWC bf16, kept NHWC end-to-end.
    x = jnp.transpose(images, (0, 2, 3, 1)).astype(jnp.bfloat16)
    # The Model's custom stem has no ReLU / MaxPool before layer1.
    return _conv_bn_impl(x, stem_pk, kh=7, kw=7, stride=2, padding=3, relu=False)


# One jit per bottleneck (identical-shaped blocks hit the jit cache); stride is
# static because it changes the im2col slicing.
bottleneck = jax.jit(_bottleneck_impl, static_argnames=("stride",))
stem = jax.jit(_stem_impl)


# ----------------------------------------------------------------------------
# Fused classifier: 2x2 avg pool (XLA) -> one pallas_call doing fc + 5 heads
# ----------------------------------------------------------------------------
def _classifier_kernel(p_ref, fcw_ref, fcb_ref, hw_ref, hb_ref, o_ref, acc_ref):
    j = pl.program_id(0)

    @pl.when(j == 0)
    def _():
        acc_ref[...] = jnp.zeros_like(acc_ref)

    # fc tile: (Mp, 8192) @ (8192, tn) -> (Mp, tn), + bias (no ReLU on fc).
    h = jnp.dot(p_ref[...], fcw_ref[...], preferred_element_type=jnp.float32)
    h = h + fcb_ref[...]
    # Immediately fold this hidden tile into the heads matmul (hidden stays in
    # VMEM, never round-trips through HBM).
    acc_ref[...] += jnp.dot(h.astype(jnp.bfloat16), hw_ref[...],
                            preferred_element_type=jnp.float32)

    @pl.when(j == pl.num_programs(0) - 1)
    def _():
        # ReLU applies to the head outputs (fc1..fc5) per the reference Model.
        o_ref[...] = jnp.maximum(acc_ref[...] + hb_ref[...], 0.0)


def _classifier_impl(x, fc_pk, heads_pk):
    # TODO(synk): general AdaptiveAvgPool2d with uneven bins not implemented;
    #             assumes H and W divisible by 2 (true for the shapes used here).
    B, H, W, C = x.shape
    p = x.astype(jnp.float32).reshape(B, 2, H // 2, 2, W // 2, C).mean(axis=(2, 4))
    # Match torch's .view(B, -1) flatten order on an NCHW tensor: (C, H, W).
    p = jnp.transpose(p, (0, 3, 1, 2)).reshape(B, -1)          # (B, 8192)

    K = p.shape[1]
    Mp = max(16, _round_up(B, 16))
    p_p = jnp.pad(p.astype(jnp.bfloat16), ((0, Mp - B), (0, 0)))

    n_fc = fc_pk.w.shape[1]        # 2048 (padded)
    n_h = heads_pk.w.shape[1]      # 128  (padded)
    tn = 256

    out = pl.pallas_call(
        _classifier_kernel,
        out_shape=jax.ShapeDtypeStruct((Mp, n_h), jnp.float32),
        grid_spec=pltpu.PrefetchScalarGridSpec(
            num_scalar_prefetch=0,
            grid=(n_fc // tn,),
            in_specs=[
                pl.BlockSpec((Mp, K), lambda j: (0, 0)),      # pooled feats
                pl.BlockSpec((K, tn), lambda j: (0, j)),      # fc weight tile
                pl.BlockSpec((1, tn), lambda j: (0, j)),      # fc bias tile
                pl.BlockSpec((tn, n_h), lambda j: (j, 0)),    # heads weight tile
                pl.BlockSpec((1, n_h), lambda j: (0, 0)),     # heads bias
            ],
            out_specs=pl.BlockSpec((Mp, n_h), lambda j: (0, 0)),
            scratch_shapes=[pltpu.VMEM((Mp, n_h), jnp.float32)]),
        compiler_params=pltpu.CompilerParams(
            dimension_semantics=("arbitrary",),
            vmem_limit_bytes=_VMEM_LIMIT,
            allow_input_fusion=[True, False, False, False, False]),
    )(p_p, fc_pk.w, fc_pk.bias, heads_pk.w, heads_pk.bias)

    heads = out[:B, :heads_pk.n]
    return (heads[:, :12], heads[:, 12:24],
            heads[:, 24:25], heads[:, 25:26], heads[:, 26:27])


classifier = jax.jit(_classifier_impl)


# ----------------------------------------------------------------------------
# Deterministic parameter initialization (shapes match ResNet152 backbone),
# pre-packed once: transpose / BN-scale folding / pad / bf16 cast all hoisted
# out of the forward path.
# ----------------------------------------------------------------------------
def _bn_params(c):
    # PyTorch fresh BatchNorm2d (eval): gamma=1, beta=0, mean=0, var=1.
    scale = jnp.full((c,), 1.0 / (1.0 + _BN_EPS) ** 0.5, jnp.float32)
    bias = jnp.zeros((c,), jnp.float32)
    return scale, bias


def _pack(w_mat, scale, bias, n):
    K, N = w_mat.shape
    Kp, Np = _round_up(K, _LANE), _round_up(N, _LANE)
    # Fold the per-output-column scale (inference BN) into the weight.
    w_folded = w_mat.astype(jnp.float32) * scale.astype(jnp.float32)[None, :]
    w_p = jnp.pad(w_folded, ((0, Kp - K), (0, Np - N))).astype(jnp.bfloat16)
    c_p = jnp.pad(bias.astype(jnp.float32), (0, Np - N)).reshape(1, Np)
    return PackedLinear(w_p, c_p, n)


def _pack_conv(key, o, cin, kh, kw):
    std = (2.0 / (cin * kh * kw)) ** 0.5
    w = jax.random.normal(key, (o, cin, kh, kw), jnp.float32) * std
    # (O, C, kh, kw) -> (kh, kw, C, O) -> (kh*kw*C, O): matches NHWC im2col order.
    w_mat = w.transpose(2, 3, 1, 0).reshape(kh * kw * cin, o)
    scale, bias = _bn_params(o)
    return _pack(w_mat, scale, bias, o)


def _linear_wb(key, fin, fout):
    k1, k2 = jax.random.split(key)
    bound = 1.0 / (fin ** 0.5)
    w = jax.random.uniform(k1, (fin, fout), jnp.float32, -bound, bound)
    b = jax.random.uniform(k2, (fout,), jnp.float32, -bound, bound)
    return w, b


def init_params(key):
    keys = iter(jax.random.split(key, 512))
    params = {}
    # stem: Conv2d(3, 64, 7, stride=2, padding=3, bias=False) + BatchNorm2d(64)
    params["stem"] = _pack_conv(next(keys), 64, 3, 7, 7)

    layers = []
    inplanes = 64
    for planes, blocks, stride in _LAYER_CFG:
        layer = []
        for bi in range(blocks):
            s = stride if bi == 0 else 1
            bp = {
                "conv1": _pack_conv(next(keys), planes, inplanes, 1, 1),
                "conv2": _pack_conv(next(keys), planes, planes, 3, 3),
                "conv3": _pack_conv(next(keys), planes * 4, planes, 1, 1),
            }
            if s != 1 or inplanes != planes * 4:
                bp["down"] = _pack_conv(next(keys), planes * 4, inplanes, 1, 1)
            layer.append(bp)
            inplanes = planes * 4
        layers.append(layer)
    params["layers"] = layers

    num_ftrs = 2048
    ones = jnp.ones((num_ftrs,), jnp.float32)
    fc_w, fc_b = _linear_wb(next(keys), num_ftrs * 2 * 2, num_ftrs)  # 8192 -> 2048
    params["fc"] = _pack(fc_w, ones, fc_b, num_ftrs)

    # Fuse the 5 heads (fc1..fc5: 12 + 12 + 1 + 1 + 1 = 27 cols) into one matmul.
    ws, bs = [], []
    for d in (12, 12, 1, 1, 1):
        w, b = _linear_wb(next(keys), num_ftrs, d)
        ws.append(w)
        bs.append(b)
    hw = jnp.concatenate(ws, axis=1)          # (2048, 27)
    hb = jnp.concatenate(bs, axis=0)          # (27,)
    params["heads"] = _pack(hw, jnp.ones((27,), jnp.float32), hb, 27)
    return params


# ----------------------------------------------------------------------------
# Forward pass (mirrors Model.forward)
# ----------------------------------------------------------------------------
def forward(params, images):
    x = stem(images, params["stem"])
    for layer, (_, _, stride) in zip(params["layers"], _LAYER_CFG):
        for bi, bp in enumerate(layer):
            x = bottleneck(x, bp, stride=(stride if bi == 0 else 1))
    return classifier(x, params["fc"], params["heads"])


# ----------------------------------------------------------------------------
if __name__ == "__main__":
    key = jax.random.PRNGKey(0)
    pkey, xkey = jax.random.split(key)
    params = init_params(pkey)
    images = jax.random.normal(xkey, (2, 3, 64, 64), jnp.float32)

    outs = forward(params, images)
    outs = jax.block_until_ready(outs)

    assert outs[0].shape == (2, 12)
    assert outs[1].shape == (2, 12)
    assert outs[2].shape == (2, 1)
    assert outs[3].shape == (2, 1)
    assert outs[4].shape == (2, 1)
    assert all(bool(jnp.all(jnp.isfinite(o))) for o in outs)
    print("KERNEL_OK")
</pallas_src>

<mosaic_0001>
module attributes {stable_mosaic.version = 11 : i64} {
  func.func @_mm_kernel(%arg0: i32, %arg1: i32, %arg2: memref<512x256xbf16, #tpu.memory_space<vmem>>, %arg3: memref<256x128xbf16, #tpu.memory_space<vmem>>, %arg4: memref<1x128xf32, #tpu.memory_space<vmem>>, %arg5: memref<512x128xbf16, #tpu.memory_space<vmem>>) attributes {dimension_semantics = [#tpu.dimension_semantics<parallel>, #tpu.dimension_semantics<parallel>], iteration_bounds = array<i64: 4, 1>, scalar_prefetch = 0 : i64, scratch_operands = 0 : i64, tpu.core_type = #tpu.core_type<tc>, window_params = [{transform_indices = @transform_0, window_bounds = array<i64: 512, 256>}, {transform_indices = @transform_1, window_bounds = array<i64: 256, 128>}, {transform_indices = @transform_2, window_bounds = array<i64: 1, 128>}, {transform_indices = @transform_3, window_bounds = array<i64: 512, 128>}]} {
    %c0 = arith.constant 0 : index
    %c0_0 = arith.constant 0 : index
    %0 = vector.load %arg2[%c0, %c0_0] : memref<512x256xbf16, #tpu.memory_space<vmem>>, vector<512x256xbf16>
    %c0_1 = arith.constant 0 : index
    %c0_2 = arith.constant 0 : index
    %1 = vector.load %arg3[%c0_1, %c0_2] : memref<256x128xbf16, #tpu.memory_space<vmem>>, vector<256x128xbf16>
    %cst = arith.constant dense<0.000000e+00> : vector<512x128xf32>
    %2 = tpu.matmul %0, %1, %cst {dimension_numbers = #tpu.dot_dimension_numbers<[1], [0], [0], [1], [0, 0, 1, 1], [], []>} : vector<512x256xbf16>, vector<256x128xbf16>, vector<512x128xf32> -> vector<512x128xf32>
    %c0_3 = arith.constant 0 : index
    %c0_4 = arith.constant 0 : index
    %3 = vector.load %arg4[%c0_3, %c0_4] : memref<1x128xf32, #tpu.memory_space<vmem>>, vector<1x128xf32>
    %4 = vector.broadcast %3 : vector<1x128xf32> to vector<512x128xf32>
    %5 = arith.addf %2, %4 : vector<512x128xf32>
    %6 = arith.truncf %5 : vector<512x128xf32> to vector<512x128xbf16>
    %c0_5 = arith.constant 0 : index
    %c0_6 = arith.constant 0 : index
    %7 = vector.load %arg5[%c0_5, %c0_6] : memref<512x128xbf16, #tpu.memory_space<vmem>>, vector<512x128xbf16>
    tpu.vector_store %arg5[%c0_5, %c0_6], %6 {strides = array<i32>} : memref<512x128xbf16, #tpu.memory_space<vmem>>, vector<512x128xbf16>,
    return
  }
  func.func @transform_0(%arg0: i32, %arg1: i32) -> (i32, i32) {
    %c0_i32 = arith.constant 0 : i32
    %c0_i32_0 = arith.constant 0 : i32
    return %arg0, %c0_i32 : i32, i32
  }
  func.func @transform_1(%arg0: i32, %arg1: i32) -> (i32, i32) {
    %c0_i32 = arith.constant 0 : i32
    %c0_i32_0 = arith.constant 0 : i32
    return %c0_i32, %arg1 : i32, i32
  }
  func.func @transform_2(%arg0: i32, %arg1: i32) -> (i32, i32) {
    %c0_i32 = arith.constant 0 : i32
    %c0_i32_0 = arith.constant 0 : i32
    return %c0_i32, %arg1 : i32, i32
  }
  func.func @transform_3(%arg0: i32, %arg1: i32) -> (i32, i32) {
    %c0_i32 = arith.constant 0 : i32
    return %arg0, %arg1 : i32, i32
  }
}

</mosaic_0001>

<llo_original>
// kernel: _stem_impl.2
$region0: #{_stem_impl.2}
  #allocation0 [shape = 'u32[]', space=smem, size = 0x4, offset = 0x4, fixed_abs, tag = 'smem constant byte address 0x4 - core index']
  #allocation1 [shape = 'u32[144,128]{1,0:T(1,128)}', space=vmem, size = 0x12000, scoped, tag = 'internal scratch']
  #allocation2 [shape = 'u32[2048]{0}', space=vmem, size = 0x2000, scoped, tag = 'scoped memory for _stem_impl.2']
  #allocation3 [shape = 'u32[2048]{0}', space=vmem, size = 0x2000, scoped, tag = 'scoped memory for _stem_impl.2']
  #allocation4 [shape = 'u32[2048]{0}', space=vmem, size = 0x2000, scoped, tag = 'scoped memory for _stem_impl.2']
  #allocation5 [shape = 'u32[2048]{0}', space=vmem, size = 0x2000, scoped, tag = 'scoped memory for _stem_impl.2']
  #allocation6 [shape = 'u32[2048]{0}', space=vmem, size = 0x2000, scoped, tag = 'scoped memory for _stem_impl.2']
  %s0 = inlined_call_operand.vmem [shape: bf16[256,128], index: 0, kind: input, shape index: {}]
  %s1 = inlined_call_operand.vmem [shape: f32[1,128], index: 1, kind: input, shape index: {}]
  %s2 = inlined_call_operand.vmem [shape: bf16[2048,147], index: 2, kind: input, shape index: {}]
  %s3 = inlined_call_operand.<no memory space> [shape: bf16[], index: 3, kind: input, shape index: {}]
  %s4 = inlined_call_operand.hbm [shape: bf16[2048,128], index: 4, kind: output, shape index: {}]
  %s5 = sld [smem:[#allocation0]]
  $region45: #{_stem_impl.2} parent=0
    _
  %s7 = ssub.s32 1, %s5
  %s8 = scalar_select 0, %s7, %s5
  %v9 = vstv %s3
  %v10 = vunpack.i.l.bf16 %v9
  %v12 = vunpack.i.h.bf16 %v9
  $region1: #{_stem_impl.2} parent=0
    #allocation7 [shape = 'u8[262144]{0}', space=vmem, size = 0x40000, scoped, tag = 'output window, operand 0']
    #allocation8 [shape = 's32[2]{0}', space=sflag, size = 0x8, scoped, tag = 'scoped memory for _stem_impl.2']
    %14 = vsyncpa [#allocation8], 0
    %s15 = scalar_lea.sflag [#allocation8], 1
    %16 = vsyncpa %s15, 0
    loop: start=0, step=1, limit=6
    $region2: #{_stem_impl.2} parent=1 // loop_pre_header
      _
    $region3: #{_stem_impl.2} parent=1 // loop_header
      %s18 = sphi 0, %s22
      %p19 = scmp.ge.s32.totalorder %s18, 6
      %s25 = sphi 0, %s37
      %s26 = sphi 0, %s33
      %s27 = sphi 0, %s25
      %s28 = sphi 0, %s26
      %s29 = sphi 0, %s27
      %s30 = sphi 0, %s28
      %s40 = sphi 0, %s42
      %s43 = sphi 0, %s40
      %s44 = sphi 0, %s43
      %s60 = sphi 0, %s44
      %s66 = sphi 0, %s68
      %s69 = sphi 0, %s66
      %s70 = sphi 0, %s69
      %s86 = sphi 0, %s70
      %s92 = sphi 0, %s94
      %s95 = sphi 0, %s92
      %s96 = sphi 0, %s95
      %s112 = sphi 0, %s96
      %s120 = sphi 0, %s122
      %s123 = sphi 0, %s120
      %s124 = sphi 0, %s123
      %s140 = sphi 0, %s124
    $region4: #{_stem_impl.2} parent=1 // loop_header_branch
      %21 = sbr.rel (%p19) target = $region8
    $region5: #{_stem_impl.2} parent=1 // loop_body
      %s23 = ssub.s32 %s18, 1
      %s24 = ssub.s32 %s18, 2
      %s31 = sadd.s32 1, %s26
      %p32 = scmp.ge.s32.totalorder %s31, 1
      %s33 = scalar_select %p32, 0, %s31
      %s34 = sadd.s32 1, %s25
      %s35 = scalar_select %p32, %s34, %s25
      %p36 = scmp.ge.s32.totalorder %s35, 4
      %s37 = scalar_select %p36, 0, %s35
      %s38 = ssub.s32 %s25, %s37
      %p39 = scmp.eq.s32.totalorder %s38, 0
      %s41 = sadd.s32 %s40, 1
      %s42 = scalar_select %p39, %s40, %s41
      %p45 = pneg %p39
      %p46 = scmp.eq.s32.totalorder %s18, 3
      %p47 = por %p45, %p46
      %p48 = scmp.ne.s32.totalorder %s40, %s43
      %p49 = scmp.eq.s32.totalorder %s18, 0
      %p50 = por %p48, %p49
      %p51 = scmp.ne.s32.totalorder %s40, %s43
      %p52 = scmp.eq.s32.totalorder %s23, 3
      %p53 = por %p51, %p52
      %p54 = scmp.ne.s32.totalorder %s43, %s44
      %p55 = scmp.eq.s32.totalorder %s23, 0
      %p56 = por %p54, %p55
      %p57 = scmp.ne.s32.totalorder %s43, %s44
      %p58 = scmp.eq.s32.totalorder %s24, 3
      %p59 = por %p57, %p58
      %p61 = scmp.ne.s32.totalorder %s44, %s60
      %p62 = scmp.eq.s32.totalorder %s24, 0
      %p63 = por %p61, %p62
      %s64 = ssub.s32 %s26, %s33
      %p65 = scmp.eq.s32.totalorder %s64, 0
      %s67 = sadd.s32 %s66, 1
      %s68 = scalar_select %p65, %s66, %s67
      %p71 = pneg %p65
      %p72 = scmp.eq.s32.totalorder %s18, 3
      %p73 = por %p71, %p72
      %p74 = scmp.ne.s32.totalorder %s66, %s69
      %p75 = scmp.eq.s32.totalorder %s18, 0
      %p76 = por %p74, %p75
      %p77 = scmp.ne.s32.totalorder %s66, %s69
      %p78 = scmp.eq.s32.totalorder %s23, 3
      %p79 = por %p77, %p78
      %p80 = scmp.ne.s32.totalorder %s69, %s70
      %p81 = scmp.eq.s32.totalorder %s23, 0
      %p82 = por %p80, %p81
      %p83 = scmp.ne.s32.totalorder %s69, %s70
      %p84 = scmp.eq.s32.totalorder %s24, 3
      %p85 = por %p83, %p84
      %p87 = scmp.ne.s32.totalorder %s70, %s86
      %p88 = scmp.eq.s32.totalorder %s24, 0
      %p89 = por %p87, %p88
      %s90 = ssub.s32 %s26, %s33
      %p91 = scmp.eq.s32.totalorder %s90, 0
      %s93 = sadd.s32 %s92, 1
      %s94 = scalar_select %p91, %s92, %s93
      %p97 = pneg %p91
      %p98 = scmp.eq.s32.totalorder %s18, 3
      %p99 = por %p97, %p98
      %p100 = scmp.ne.s32.totalorder %s92, %s95
      %p101 = scmp.eq.s32.totalorder %s18, 0
      %p102 = por %p100, %p101
      %p103 = scmp.ne.s32.totalorder %s92, %s95
      %p104 = scmp.eq.s32.totalorder %s23, 3
      %p105 = por %p103, %p104
      %p106 = scmp.ne.s32.totalorder %s95, %s96
      %p107 = scmp.eq.s32.totalorder %s23, 0
      %p108 = por %p106, %p107
      %p109 = scmp.ne.s32.totalorder %s95, %s96
      %p110 = scmp.eq.s32.totalorder %s24, 3
      %p111 = por %p109, %p110
      %p113 = scmp.ne.s32.totalorder %s96, %s112
      %p114 = scmp.eq.s32.totalorder %s24, 0
      %p115 = por %p113, %p114
      %s116 = ssub.s32 %s25, %s37
      %s117 = ssub.s32 %s26, %s33
      %s118 = sor.u32 %s116, %s117
      %p119 = scmp.eq.s32.totalorder %s118, 0
      %s121 = sadd.s32 %s120, 1
      %s122 = scalar_select %p119, %s120, %s121
      %p125 = pneg %p119
      %p126 = scmp.eq.s32.totalorder %s18, 3
      %p127 = por %p125, %p126
      %p128 = scmp.ne.s32.totalorder %s120, %s123
      %p129 = scmp.eq.s32.totalorder %s18, 0
      %p130 = por %p128, %p129
      %p131 = scmp.ne.s32.totalorder %s120, %s123
      %p132 = scmp.eq.s32.totalorder %s23, 3
      %p133 = por %p131, %p132
      %p134 = scmp.ne.s32.totalorder %s123, %s124
      %p135 = scmp.eq.s32.totalorder %s23, 0
      %p136 = por %p134, %p135
      %p137 = scmp.ne.s32.totalorder %s123, %s124
      %p138 = scmp.eq.s32.totalorder %s24, 3
      %p139 = por %p137, %p138
      %p141 = scmp.ne.s32.totalorder %s124, %s140
      %p142 = scmp.eq.s32.totalorder %s24, 0
      %p143 = por %p141, %p142
      %p144 = scmp.le.s32.totalorder 1, %s18
      %p145 = scmp.lt.s32.totalorder %s18, 5
      %p146 = pnand %p144, %p145
      %p147 = pneg %p146
      // Predicated region
      $region9: #{_stem_impl.2} parent=5 // pred_check
        _
      $region10: #{_stem_impl.2} parent=5 // pred_check_branch
        %149 = sbr.rel (%p146) target = $region12
      $region11: #{_stem_impl.2} parent=5 // pred_region
        %s150 = ssub.s32 %s18, 1
        // Predicated region
        $region13: #{_stem_impl.2} parent=11 // pred_check
          %p151 = pneg %p82
        $region14: #{_stem_impl.2} parent=11 // pred_check_branch
          %153 = sbr.rel (%p151) target = $region16
        $region15: #{_stem_impl.2} parent=11 // pred_region
          %p154 = scmp.lt.s32.totalorder %s28, 0
          %s155 = scalar_select %p154, %s28, 0
          %s156 = smul.addr %s155, 4
          %s157 = scalar_lea.vmem %s0, %s156
        $region16: #{_stem_impl.2} parent=11 // pred_fallthru
          _
        // Predicated region
        $region17: #{_stem_impl.2} parent=11 // pred_check
          %p158 = pneg %p108
        $region18: #{_stem_impl.2} parent=11 // pred_check_branch
          %160 = sbr.rel (%p158) target = $region20
        $region19: #{_stem_impl.2} parent=11 // pred_region
          %p161 = scmp.lt.s32.totalorder %s28, 0
          %s162 = scalar_select %p161, %s28, 0
          %s163 = scalar_lea.vmem %s1, %s162
        $region20: #{_stem_impl.2} parent=11 // pred_fallthru
          _
      $region12: #{_stem_impl.2} parent=5 // pred_fallthru
        _
      %p164 = scmp.lt.s32.totalorder %s18, 4
      // Predicated region
      $region21: #{_stem_impl.2} parent=5 // pred_check
        %p165 = pneg %p164
      $region22: #{_stem_impl.2} parent=5 // pred_check_branch
        %167 = sbr.rel (%p165) target = $region24
      $region23: #{_stem_impl.2} parent=5 // pred_region
        // Predicated region
        $region25: #{_stem_impl.2} parent=23 // pred_check
          %p168 = pneg %p50
        $region26: #{_stem_impl.2} parent=23 // pred_check_branch
          %170 = sbr.rel (%p168) target = $region28
        $region27: #{_stem_impl.2} parent=23 // pred_region
          %s171 = smul.u32 64, %s25
          %p172 = scmp.lt.s32.totalorder %s171, 255
          %s173 = scalar_select %p172, %s171, 255
          %s174 = smul.addr %s173, 2
          %s175 = smul.addr %s174, 4
          %s176 = scalar_lea.vmem %s2, %s175
          %s177 = smul.u32 64, %s25
        $region28: #{_stem_impl.2} parent=23 // pred_fallthru
          _
      $region24: #{_stem_impl.2} parent=5 // pred_fallthru
        _
      %p178 = scmp.le.s32.totalorder 1, %s18
      %p179 = scmp.lt.s32.totalorder %s18, 5
      %p180 = pnand %p178, %p179
      %p181 = pneg %p180
      // Predicated region
      $region29: #{_stem_impl.2} parent=5 // pred_check
        _
      $region30: #{_stem_impl.2} parent=5 // pred_check_branch
        %183 = sbr.rel (%p180) target = $region32
      $region31: #{_stem_impl.2} parent=5 // pred_region
        #allocation9 [shape = 'u8[262144]{0}', space=vmem, size = 0x40000, dematerialized = true, scoped, tag = 'FusionAdapter Buffer %fusion.1 = bf16[2048,256]{1,0:T(8,128)(2,1)} fusion(%param_2.1, %param_3), kind=kLoop, calls=%fused_computation.1.clone, metadata={op_name="jit(_stem_impl)/jit(_pad)/pad" stack_frame_id=15}']
        %s184 = ssub.s32 %s18, 1
        %s185 = smul.u32 64, %s27
        %p186 = scmp.lt.s32.totalorder %s185, 255
        %s187 = scalar_select %p186, %s185, 255
        %s188 = smul.addr %s187, 2
        %s189 = smul.addr %s188, 4
        %s190 = scalar_lea.vmem %s2, %s189
        %p191 = pneg %p56
        %p192 = pneg %p53
        %p193 = scmp.lt.s32.totalorder %s28, 0
        %s194 = scalar_select %p193, %s28, 0
        %s195 = smul.addr %s194, 4
        %s196 = scalar_lea.vmem %s0, %s195
        %p197 = pneg %p82
        %p198 = pneg %p79
        %p199 = scmp.lt.s32.totalorder %s28, 0
        %s200 = scalar_select %p199, %s28, 0
        %s201 = scalar_lea.vmem %s1, %s200
        %p202 = pneg %p108
        %p203 = pneg %p105
        %p204 = pneg %p136
        %p205 = pneg %p133
        %s206 = sand.u32 %s123, 1
        %s207 = scalar_lea.sflag [#allocation8], %s206
        %s208 = sand.u32 %s123, 1
        %s209 = smul.addr %s208, 256
        %s210 = scalar_lea.vmem [#allocation7], %s209
        %s211 = smul.u32 64, %s27
        %p212 = scmp.lt.s32.totalorder %s211, 255
        %s213 = scalar_select %p212, %s211, 255
        %s214 = smul.addr %s213, 2
        %s215 = smul.addr %s214, 4
        %s216 = scalar_lea.vmem %s2, %s215
        %s217 = smul.u32 64, %s27
        %p218 = scmp.lt.s32.totalorder %s28, 0
        %s219 = scalar_select %p218, %s28, 0
        %s220 = smul.addr %s219, 4
        %s221 = scalar_lea.vmem %s0, %s220
        %p222 = scmp.lt.s32.totalorder %s28, 0
        %s223 = scalar_select %p222, %s28, 0
        %s224 = scalar_lea.vmem %s1, %s223
        %s225 = smul.u32 64, %s27
        %v226 = vld [vmem:[%s216] sm:$0xf]
        %v227 = vunpack.c.l.bf16 %v226
        %v228 = vunpack.c.h.bf16 %v226
        %v229 = vlaneseq
        %v230 = vand.u32 %v229, 127
        %vm232 = vcmp.lt.s32.totalorder %v230, 147
        %v233 = vsel %vm232, %v227, %v10
        %v234 = vpack.c.bf16 0.0, %v233
        %s236 = ssub.s32 16, 1
        %237 = vst [vmem:[#allocation9] sm:%s236] %v234
        %s238 = scalar_lea.vmem %s216, 4
        %s240 = sor.u32 255, 127
        %s241 = sand.u32 %s240, 85
        %s242 = sshrl.u32 %s241, 1
        %s243 = sor.u32 %s241, %s242
        %s244 = sand.u32 51, %s243
        %s245 = sshrl.u32 %s244, 2
        %s246 = sor.u32 %s244, %s245
        %s247 = sand.u32 15, %s246
        %v248 = vld [vmem:[%s238] sm:%s247]
        %v249 = vunpack.c.l.bf16 %v248
        %v250 = vunpack.c.h.bf16 %v248
        %v251 = vlaneseq
        %v252 = vand.u32 %v251, 127
        %v253 = vadd.s32 %v252, 128
        %vm254 = vcmp.lt.s32.totalorder %v253, 147
        %v255 = vsel %vm254, %v249, %v10
        %s256 = scalar_lea.vmem [#allocation9], 4
        %v257 = vpack.c.bf16 0.0, %v255
        %s259 = ssub.s32 16, 1
        %260 = vst [vmem:[%s256] sm:%s259] %v257
        %s261 = scalar_lea.vmem %s216, 8
        %v262 = vld [vmem:[%s261] sm:$0xf]
        %v263 = vunpack.c.l.bf16 %v262
        %v264 = vunpack.c.h.bf16 %v262
        %v265 = vlaneseq
        %v266 = vand.u32 %v265, 127
        %vm268 = vcmp.lt.s32.totalorder %v266, 147
        %v269 = vsel %vm268, %v263, %v10
        %s270 = scalar_lea.vmem [#allocation9], 8
        %v271 = vpack.c.bf16 0.0, %v269
        %s273 = ssub.s32 16, 1
        %274 = vst [vmem:[%s270] sm:%s273] %v271
        %s275 = scalar_lea.vmem %s216, 12
        %s277 = sor.u32 255, 127
        %s278 = sand.u32 %s277, 85
        %s279 = sshrl.u32 %s278, 1
        %s280 = sor.u32 %s278, %s279
        %s281 = sand.u32 51, %s280
        %s282 = sshrl.u32 %s281, 2
        %s283 = sor.u32 %s281, %s282
        %s284 = sand.u32 15, %s283
        %v285 = vld [vmem:[%s275] sm:%s284]
        %v286 = vunpack.c.l.bf16 %v285
        %v287 = vunpack.c.h.bf16 %v285
        %v288 = vlaneseq
        %v289 = vand.u32 %v288, 127
        %v290 = vadd.s32 %v289, 128
        %vm291 = vcmp.lt.s32.totalorder %v290, 147
        %v292 = vsel %vm291, %v286, %v10
        %s293 = scalar_lea.vmem [#allocation9], 12
        %v294 = vpack.c.bf16 0.0, %v292
        %s296 = ssub.s32 16, 1
        %297 = vst [vmem:[%s293] sm:%s296] %v294
        %s298 = scalar_lea.vmem %s216, 16
        %v299 = vld [vmem:[%s298] sm:$0xf]
        %v300 = vunpack.c.l.bf16 %v299
        %v301 = vunpack.c.h.bf16 %v299
        %v302 = vlaneseq
        %v303 = vand.u32 %v302, 127
        %vm305 = vcmp.lt.s32.totalorder %v303, 147
        %v306 = vsel %vm305, %v300, %v10
        %s307 = scalar_lea.vmem [#allocation9], 16
        %v308 = vpack.c.bf16 0.0, %v306
        %s310 = ssub.s32 16, 1
        %311 = vst [vmem:[%s307] sm:%s310] %v308
        %s312 = scalar_lea.vmem %s216, 20
        %s314 = sor.u32 255, 127
        %s315 = sand.u32 %s314, 85
        %s316 = sshrl.u32 %s315, 1
        %s317 = sor.u32 %s315, %s316
        %s318 = sand.u32 51, %s317
        %s319 = sshrl.u32 %s318, 2
        %s320 = sor.u32 %s318, %s319
        %s321 = sand.u32 15, %s320
        %v322 = vld [vmem:[%s312] sm:%s321]
        %v323 = vunpack.c.l.bf16 %v322
        %v324 = vunpack.c.h.bf16 %v322
        %v325 = vlaneseq
        %v326 = vand.u32 %v325, 127
        %v327 = vadd.s32 %v326, 128
        %vm328 = vcmp.lt.s32.totalorder %v327, 147
        %v329 = vsel %vm328, %v323, %v10
        %s330 = scalar_lea.vmem [#allocation9], 20
        %v331 = vpack.c.bf16 0.0, %v329
        %s333 = ssub.s32 16, 1
        %334 = vst [vmem:[%s330] sm:%s333] %v331
        %s335 = scalar_lea.vmem %s216, 24
        %v336 = vld [vmem:[%s335] sm:$0xf]
        %v337 = vunpack.c.l.bf16 %v336
        %v338 = vunpack.c.h.bf16 %v336
        %v339 = vlaneseq
        %v340 = vand.u32 %v339, 127
        %vm342 = vcmp.lt.s32.totalorder %v340, 147
        %v343 = vsel %vm342, %v337, %v10
        %s344 = scalar_lea.vmem [#allocation9], 24
        %v345 = vpack.c.bf16 0.0, %v343
        %s347 = ssub.s32 16, 1
        %348 = vst [vmem:[%s344] sm:%s347] %v345
        %s349 = scalar_lea.vmem %s216, 28
        %s351 = sor.u32 255, 127
        %s352 = sand.u32 %s351, 85
        %s353 = sshrl.u32 %s352, 1
        %s354 = sor.u32 %s352, %s353
        %s355 = sand.u32 51, %s354
        %s356 = sshrl.u32 %s355, 2
        %s357 = sor.u32 %s355, %s356
        %s358 = sand.u32 15, %s357
        %v359 = vld [vmem:[%s349] sm:%s358]
        %v360 = vunpack.c.l.bf16 %v359
        %v361 = vunpack.c.h.bf16 %v359
        %v362 = vlaneseq
        %v363 = vand.u32 %v362, 127
        %v364 = vadd.s32 %v363, 128
        %vm365 = vcmp.lt.s32.totalorder %v364, 147
        %v366 = vsel %vm365, %v360, %v10
        %s367 = scalar_lea.vmem [#allocation9], 28
        %v368 = vpack.c.bf16 0.0, %v366
        %s370 = ssub.s32 16, 1
        %371 = vst [vmem:[%s367] sm:%s370] %v368
        %s372 = scalar_lea.vmem %s216, 32
        %v373 = vld [vmem:[%s372] sm:$0xf]
        %v374 = vunpack.c.l.bf16 %v373
        %v375 = vunpack.c.h.bf16 %v373
        %v376 = vlaneseq
        %v377 = vand.u32 %v376, 127
        %vm379 = vcmp.lt.s32.totalorder %v377, 147
        %v380 = vsel %vm379, %v374, %v10
        %s381 = scalar_lea.vmem [#allocation9], 32
        %v382 = vpack.c.bf16 0.0, %v380
        %s384 = ssub.s32 16, 1
        %385 = vst [vmem:[%s381] sm:%s384] %v382
        %s386 = scalar_lea.vmem %s216, 36
        %s388 = sor.u32 255, 127
        %s389 = sand.u32 %s388, 85
        %s390 = sshrl.u32 %s389, 1
        %s391 = sor.u32 %s389, %s390
        %s392 = sand.u32 51, %s391
        %s393 = sshrl.u32 %s392, 2
        %s394 = sor.u32 %s392, %s393
        %s395 = sand.u32 15, %s394
        %v396 = vld [vmem:[%s386] sm:%s395]
        %v397 = vunpack.c.l.bf16 %v396
        %v398 = vunpack.c.h.bf16 %v396
        %v399 = vlaneseq
        %v400 = vand.u32 %v399, 127
        %v401 = vadd.s32 %v400, 128
        %vm402 = vcmp.lt.s32.totalorder %v401, 147
        %v403 = vsel %vm402, %v397, %v10
        %s404 = scalar_lea.vmem [#allocation9], 36
        %v405 = vpack.c.bf16 0.0, %v403
        %s407 = ssub.s32 16, 1
        %408 = vst [vmem:[%s404] sm:%s407] %v405
        %s409 = scalar_lea.vmem %s216, 40
        %v410 = vld [vmem:[%s409] sm:$0xf]
        %v411 = vunpack.c.l.bf16 %v410
        %v412 = vunpack.c.h.bf16 %v410
        %v413 = vlaneseq
        %v414 = vand.u32 %v413, 127
        %vm416 = vcmp.lt.s32.totalorder %v414, 147
        %v417 = vsel %vm416, %v411, %v10
        %s418 = scalar_lea.vmem [#allocation9], 40
        %v419 = vpack.c.bf16 0.0, %v417
        %s421 = ssub.s32 16, 1
        %422 = vst [vmem:[%s418] sm:%s421] %v419
        %s423 = scalar_lea.vmem %s216, 44
        %s425 = sor.u32 255, 127
        %s426 = sand.u32 %s425, 85
        %s427 = sshrl.u32 %s426, 1
        %s428 = sor.u32 %s426, %s427
        %s429 = sand.u32 51, %s428
        %s430 = sshrl.u32 %s429, 2
        %s431 = sor.u32 %s429, %s430
        %s432 = sand.u32 15, %s431
        %v433 = vld [vmem:[%s423] sm:%s432]
        %v434 = vunpack.c.l.bf16 %v433
        %v435 = vunpack.c.h.bf16 %v433
        %v436 = vlaneseq
        %v437 = vand.u32 %v436, 127
        %v438 = vadd.s32 %v437, 128
        %vm439 = vcmp.lt.s32.totalorder %v438, 147
        %v440 = vsel %vm439, %v434, %v10
        %s441 = scalar_lea.vmem [#allocation9], 44
        %v442 = vpack.c.bf16 0.0, %v440
        %s444 = ssub.s32 16, 1
        %445 = vst [vmem:[%s441] sm:%s444] %v442
        %s446 = scalar_lea.vmem %s216, 48
        %v447 = vld [vmem:[%s446] sm:$0xf]
        %v448 = vunpack.c.l.bf16 %v447
        %v449 = vunpack.c.h.bf16 %v447
        %v450 = vlaneseq
        %v451 = vand.u32 %v450, 127
        %vm453 = vcmp.lt.s32.totalorder %v451, 147
        %v454 = vsel %vm453, %v448, %v10
        %s455 = scalar_lea.vmem [#allocation9], 48
        %v456 = vpack.c.bf16 0.0, %v454
        %s458 = ssub.s32 16, 1
        %459 = vst [vmem:[%s455] sm:%s458] %v456
        %s460 = scalar_lea.vmem %s216, 52
        %s462 = sor.u32 255, 127
        %s463 = sand.u32 %s462, 85
        %s464 = sshrl.u32 %s463, 1
        %s465 = sor.u32 %s463, %s464
        %s466 = sand.u32 51, %s465
        %s467 = sshrl.u32 %s466, 2
        %s468 = sor.u32 %s466, %s467
        %s469 = sand.u32 15, %s468
        %v470 = vld [vmem:[%s460] sm:%s469]
        %v471 = vunpack.c.l.bf16 %v470
        %v472 = vunpack.c.h.bf16 %v470
        %v473 = vlaneseq
        %v474 = vand.u32 %v473, 127
        %v475 = vadd.s32 %v474, 128
        %vm476 = vcmp.lt.s32.totalorder %v475, 147
        %v477 = vsel %vm476, %v471, %v10
        %s478 = scalar_lea.vmem [#allocation9], 52
        %v479 = vpack.c.bf16 0.0, %v477
        %s481 = ssub.s32 16, 1
        %482 = vst [vmem:[%s478] sm:%s481] %v479
        %s483 = scalar_lea.vmem %s216, 56
        %v484 = vld [vmem:[%s483] sm:$0xf]
        %v485 = vunpack.c.l.bf16 %v484
        %v486 = vunpack.c.h.bf16 %v484
        %v487 = vlaneseq
        %v488 = vand.u32 %v487, 127
        %vm490 = vcmp.lt.s32.totalorder %v488, 147
        %v491 = vsel %vm490, %v485, %v10
        %s492 = scalar_lea.vmem [#allocation9], 56
        %v493 = vpack.c.bf16 0.0, %v491
        %s495 = ssub.s32 16, 1
        %496 = vst [vmem:[%s492] sm:%s495] %v493
        %s497 = scalar_lea.vmem %s216, 60
        %s499 = sor.u32 255, 127
        %s500 = sand.u32 %s499, 85
        %s501 = sshrl.u32 %s500, 1
        %s502 = sor.u32 %s500, %s501
        %s503 = sand.u32 51, %s502
        %s504 = sshrl.u32 %s503, 2
        %s505 = sor.u32 %s503, %s504
        %s506 = sand.u32 15, %s505
        %v507 = vld [vmem:[%s497] sm:%s506]
        %v508 = vunpack.c.l.bf16 %v507
        %v509 = vunpack.c.h.bf16 %v507
        %v510 = vlaneseq
        %v511 = vand.u32 %v510, 127
        %v512 = vadd.s32 %v511, 128
        %vm513 = vcmp.lt.s32.totalorder %v512, 147
        %v514 = vsel %vm513, %v508, %v10
        %s515 = scalar_lea.vmem [#allocation9], 60
        %v516 = vpack.c.bf16 0.0, %v514
        %s518 = ssub.s32 16, 1
        %519 = vst [vmem:[%s515] sm:%s518] %v516
        %s520 = scalar_lea.vmem %s216, 64
        %v521 = vld [vmem:[%s520] sm:$0xf]
        %v522 = vunpack.c.l.bf16 %v521
        %v523 = vunpack.c.h.bf16 %v521
        %v524 = vlaneseq
        %v525 = vand.u32 %v524, 127
        %vm527 = vcmp.lt.s32.totalorder %v525, 147
        %v528 = vsel %vm527, %v522, %v10
        %s529 = scalar_lea.vmem [#allocation9], 64
        %v530 = vpack.c.bf16 0.0, %v528
        %s532 = ssub.s32 16, 1
        %533 = vst [vmem:[%s529] sm:%s532] %v530
        %s534 = scalar_lea.vmem %s216, 68
        %s536 = sor.u32 255, 127
        %s537 = sand.u32 %s536, 85
        %s538 = sshrl.u32 %s537, 1
        %s539 = sor.u32 %s537, %s538
        %s540 = sand.u32 51, %s539
        %s541 = sshrl.u32 %s540, 2
        %s542 = sor.u32 %s540, %s541
        %s543 = sand.u32 15, %s542
        %v544 = vld [vmem:[%s534] sm:%s543]
        %v545 = vunpack.c.l.bf16 %v544
        %v546 = vunpack.c.h.bf16 %v544
        %v547 = vlaneseq
        %v548 = vand.u32 %v547, 127
        %v549 = vadd.s32 %v548, 128
        %vm550 = vcmp.lt.s32.totalorder %v549, 147
        %v551 = vsel %vm550, %v545, %v10
        %s552 = scalar_lea.vmem [#allocation9], 68
        %v553 = vpack.c.bf16 0.0, %v551
        %s555 = ssub.s32 16, 1
        %556 = vst [vmem:[%s552] sm:%s555] %v553
        %s557 = scalar_lea.vmem %s216, 72
        %v558 = vld [vmem:[%s557] sm:$0xf]
        %v559 = vunpack.c.l.bf16 %v558
        %v560 = vunpack.c.h.bf16 %v558
        %v561 = vlaneseq
        %v562 = vand.u32 %v561, 127
        %vm564 = vcmp.lt.s32.totalorder %v562, 147
        %v565 = vsel %vm564, %v559, %v10
        %s566 = scalar_lea.vmem [#allocation9], 72
        %v567 = vpack.c.bf16 0.0, %v565
        %s569 = ssub.s32 16, 1
        %570 = vst [vmem:[%s566] sm:%s569] %v567
        %s571 = scalar_lea.vmem %s216, 76
        %s573 = sor.u32 255, 127
        %s574 = sand.u32 %s573, 85
        %s575 = sshrl.u32 %s574, 1
        %s576 = sor.u32 %s574, %s575
        %s577 = sand.u32 51, %s576
        %s578 = sshrl.u32 %s577, 2
        %s579 = sor.u32 %s577, %s578
        %s580 = sand.u32 15, %s579
        %v581 = vld [vmem:[%s571] sm:%s580]
        %v582 = vunpack.c.l.bf16 %v581
        %v583 = vunpack.c.h.bf16 %v581
        %v584 = vlaneseq
        %v585 = vand.u32 %v584, 127
        %v586 = vadd.s32 %v585, 128
        %vm587 = vcmp.lt.s32.totalorder %v586, 147
        %v588 = vsel %vm587, %v582, %v10
        %s589 = scalar_lea.vmem [#allocation9], 76
        %v590 = vpack.c.bf16 0.0, %v588
        %s592 = ssub.s32 16, 1
        %593 = vst [vmem:[%s589] sm:%s592] %v590
        %s594 = scalar_lea.vmem %s216, 80
        %v595 = vld [vmem:[%s594] sm:$0xf]
        %v596 = vunpack.c.l.bf16 %v595
        %v597 = vunpack.c.h.bf16 %v595
        %v598 = vlaneseq
        %v599 = vand.u32 %v598, 127
        %vm601 = vcmp.lt.s32.totalorder %v599, 147
        %v602 = vsel %vm601, %v596, %v10
        %s603 = scalar_lea.vmem [#allocation9], 80
        %v604 = vpack.c.bf16 0.0, %v602
        %s606 = ssub.s32 16, 1
        %607 = vst [vmem:[%s603] sm:%s606] %v604
        %s608 = scalar_lea.vmem %s216, 84
        %s610 = sor.u32 255, 127
        %s611 = sand.u32 %s610, 85
        %s612 = sshrl.u32 %s611, 1
        %s613 = sor.u32 %s611, %s612
        %s614 = sand.u32 51, %s613
        %s615 = sshrl.u32 %s614, 2
        %s616 = sor.u32 %s614, %s615
        %s617 = sand.u32 15, %s616
        %v618 = vld [vmem:[%s608] sm:%s617]
        %v619 = vunpack.c.l.bf16 %v618
        %v620 = vunpack.c.h.bf16 %v618
        %v621 = vlaneseq
        %v622 = vand.u32 %v621, 127
        %v623 = vadd.s32 %v622, 128
        %vm624 = vcmp.lt.s32.totalorder %v623, 147
        %v625 = vsel %vm624, %v619, %v10
        %s626 = scalar_lea.vmem [#allocation9], 84
        %v627 = vpack.c.bf16 0.0, %v625
        %s629 = ssub.s32 16, 1
        %630 = vst [vmem:[%s626] sm:%s629] %v627
        %s631 = scalar_lea.vmem %s216, 88
        %v632 = vld [vmem:[%s631] sm:$0xf]
        %v633 = vunpack.c.l.bf16 %v632
        %v634 = vunpack.c.h.bf16 %v632
        %v635 = vlaneseq
        %v636 = vand.u32 %v635, 127
        %vm638 = vcmp.lt.s32.totalorder %v636, 147
        %v639 = vsel %vm638, %v633, %v10
        %s640 = scalar_lea.vmem [#allocation9], 88
        %v641 = vpack.c.bf16 0.0, %v639
        %s643 = ssub.s32 16, 1
        %644 = vst [vmem:[%s640] sm:%s643] %v641
        %s645 = scalar_lea.vmem %s216, 92
        %s647 = sor.u32 255, 127
        %s648 = sand.u32 %s647, 85
        %s649 = sshrl.u32 %s648, 1
        %s650 = sor.u32 %s648, %s649
        %s651 = sand.u32 51, %s650
        %s652 = sshrl.u32 %s651, 2
        %s653 = sor.u32 %s651, %s652
        %s654 = sand.u32 15, %s653
        %v655 = vld [vmem:[%s645] sm:%s654]
        %v656 = vunpack.c.l.bf16 %v655
        %v657 = vunpack.c.h.bf16 %v655
        %v658 = vlaneseq
        %v659 = vand.u32 %v658, 127
        %v660 = vadd.s32 %v659, 128
        %vm661 = vcmp.lt.s32.totalorder %v660, 147
        %v662 = vsel %vm661, %v656, %v10
        %s663 = scalar_lea.vmem [#allocation9], 92
        %v664 = vpack.c.bf16 0.0, %v662
        %s666 = ssub.s32 16, 1
        %667 = vst [vmem:[%s663] sm:%s666] %v664
        %s668 = scalar_lea.vmem %s216, 96
        %v669 = vld [vmem:[%s668] sm:$0xf]
        %v670 = vunpack.c.l.bf16 %v669
        %v671 = vunpack.c.h.bf16 %v669
        %v672 = vlaneseq
        %v673 = vand.u32 %v672, 127
        %vm675 = vcmp.lt.s32.totalorder %v673, 147
        %v676 = vsel %vm675, %v670, %v10
        %s677 = scalar_lea.vmem [#allocation9], 96
        %v678 = vpack.c.bf16 0.0, %v676
        %s680 = ssub.s32 16, 1
        %681 = vst [vmem:[%s677] sm:%s680] %v678
        %s682 = scalar_lea.vmem %s216, 100
        %s684 = sor.u32 255, 127
        %s685 = sand.u32 %s684, 85
        %s686 = sshrl.u32 %s685, 1
        %s687 = sor.u32 %s685, %s686
        %s688 = sand.u32 51, %s687
        %s689 = sshrl.u32 %s688, 2
        %s690 = sor.u32 %s688, %s689
        %s691 = sand.u32 15, %s690
        %v692 = vld [vmem:[%s682] sm:%s691]
        %v693 = vunpack.c.l.bf16 %v692
        %v694 = vunpack.c.h.bf16 %v692
        %v695 = vlaneseq
        %v696 = vand.u32 %v695, 127
        %v697 = vadd.s32 %v696, 128
        %vm698 = vcmp.lt.s32.totalorder %v697, 147
        %v699 = vsel %vm698, %v693, %v10
        %s700 = scalar_lea.vmem [#allocation9], 100
        %v701 = vpack.c.bf16 0.0, %v699
        %s703 = ssub.s32 16, 1
        %704 = vst [vmem:[%s700] sm:%s703] %v701
        %s705 = scalar_lea.vmem %s216, 104
        %v706 = vld [vmem:[%s705] sm:$0xf]
        %v707 = vunpack.c.l.bf16 %v706
        %v708 = vunpack.c.h.bf16 %v706
        %v709 = vlaneseq
        %v710 = vand.u32 %v709, 127
        %vm712 = vcmp.lt.s32.totalorder %v710, 147
        %v713 = vsel %vm712, %v707, %v10
        %s714 = scalar_lea.vmem [#allocation9], 104
        %v715 = vpack.c.bf16 0.0, %v713
        %s717 = ssub.s32 16, 1
        %718 = vst [vmem:[%s714] sm:%s717] %v715
        %s719 = scalar_lea.vmem %s216, 108
        %s721 = sor.u32 255, 127
        %s722 = sand.u32 %s721, 85
        %s723 = sshrl.u32 %s722, 1
        %s724 = sor.u32 %s722, %s723
        %s725 = sand.u32 51, %s724
        %s726 = sshrl.u32 %s725, 2
        %s727 = sor.u32 %s725, %s726
        %s728 = sand.u32 15, %s727
        %v729 = vld [vmem:[%s719] sm:%s728]
        %v730 = vunpack.c.l.bf16 %v729
        %v731 = vunpack.c.h.bf16 %v729
        %v732 = vlaneseq
        %v733 = vand.u32 %v732, 127
        %v734 = vadd.s32 %v733, 128
        %vm735 = vcmp.lt.s32.totalorder %v734, 147
        %v736 = vsel %vm735, %v730, %v10
        %s737 = scalar_lea.vmem [#allocation9], 108
        %v738 = vpack.c.bf16 0.0, %v736
        %s740 = ssub.s32 16, 1
        %741 = vst [vmem:[%s737] sm:%s740] %v738
        %s742 = scalar_lea.vmem %s216, 112
        %v743 = vld [vmem:[%s742] sm:$0xf]
        %v744 = vunpack.c.l.bf16 %v743
        %v745 = vunpack.c.h.bf16 %v743
        %v746 = vlaneseq
        %v747 = vand.u32 %v746, 127
        %vm749 = vcmp.lt.s32.totalorder %v747, 147
        %v750 = vsel %vm749, %v744, %v10
        %s751 = scalar_lea.vmem [#allocation9], 112
        %v752 = vpack.c.bf16 0.0, %v750
        %s754 = ssub.s32 16, 1
        %755 = vst [vmem:[%s751] sm:%s754] %v752
        %s756 = scalar_lea.vmem %s216, 116
        %s758 = sor.u32 255, 127
        %s759 = sand.u32 %s758, 85
        %s760 = sshrl.u32 %s759, 1
        %s761 = sor.u32 %s759, %s760
        %s762 = sand.u32 51, %s761
        %s763 = sshrl.u32 %s762, 2
        %s764 = sor.u32 %s762, %s763
        %s765 = sand.u32 15, %s764
        %v766 = vld [vmem:[%s756] sm:%s765]
        %v767 = vunpack.c.l.bf16 %v766
        %v768 = vunpack.c.h.bf16 %v766
        %v769 = vlaneseq
        %v770 = vand.u32 %v769, 127
        %v771 = vadd.s32 %v770, 128
        %vm772 = vcmp.lt.s32.totalorder %v771, 147
        %v773 = vsel %vm772, %v767, %v10
        %s774 = scalar_lea.vmem [#allocation9], 116
        %v775 = vpack.c.bf16 0.0, %v773
        %s777 = ssub.s32 16, 1
        %778 = vst [vmem:[%s774] sm:%s777] %v775
        %s779 = scalar_lea.vmem %s216, 120
        %v780 = vld [vmem:[%s779] sm:$0xf]
        %v781 = vunpack.c.l.bf16 %v780
        %v782 = vunpack.c.h.bf16 %v780
        %v783 = vlaneseq
        %v784 = vand.u32 %v783, 127
        %vm786 = vcmp.lt.s32.totalorder %v784, 147
        %v787 = vsel %vm786, %v781, %v10
        %s788 = scalar_lea.vmem [#allocation9], 120
        %v789 = vpack.c.bf16 0.0, %v787
        %s791 = ssub.s32 16, 1
        %792 = vst [vmem:[%s788] sm:%s791] %v789
        %s793 = scalar_lea.vmem %s216, 124
        %s795 = sor.u32 255, 127
        %s796 = sand.u32 %s795, 85
        %s797 = sshrl.u32 %s796, 1
        %s798 = sor.u32 %s796, %s797
        %s799 = sand.u32 51, %s798
        %s800 = sshrl.u32 %s799, 2
        %s801 = sor.u32 %s799, %s800
        %s802 = sand.u32 15, %s801
        %v803 = vld [vmem:[%s793] sm:%s802]
        %v804 = vunpack.c.l.bf16 %v803
        %v805 = vunpack.c.h.bf16 %v803
        %v806 = vlaneseq
        %v807 = vand.u32 %v806, 127
        %v808 = vadd.s32 %v807, 128
        %vm809 = vcmp.lt.s32.totalorder %v808, 147
        %v810 = vsel %vm809, %v804, %v10
        %s811 = scalar_lea.vmem [#allocation9], 124
        %v812 = vpack.c.bf16 0.0, %v810
        %s814 = ssub.s32 16, 1
        %815 = vst [vmem:[%s811] sm:%s814] %v812
        %s816 = scalar_lea.vmem %s216, 128
        %v817 = vld [vmem:[%s816] sm:$0xf]
        %v818 = vunpack.c.l.bf16 %v817
        %v819 = vunpack.c.h.bf16 %v817
        %v820 = vlaneseq
        %v821 = vand.u32 %v820, 127
        %vm823 = vcmp.lt.s32.totalorder %v821, 147
        %v824 = vsel %vm823, %v818, %v10
        %s825 = scalar_lea.vmem [#allocation9], 128
        %v826 = vpack.c.bf16 0.0, %v824
        %s828 = ssub.s32 16, 1
        %829 = vst [vmem:[%s825] sm:%s828] %v826
        %s830 = scalar_lea.vmem %s216, 132
        %s832 = sor.u32 255, 127
        %s833 = sand.u32 %s832, 85
        %s834 = sshrl.u32 %s833, 1
        %s835 = sor.u32 %s833, %s834
        %s836 = sand.u32 51, %s835
        %s837 = sshrl.u32 %s836, 2
        %s838 = sor.u32 %s836, %s837
        %s839 = sand.u32 15, %s838
        %v840 = vld [vmem:[%s830] sm:%s839]
        %v841 = vunpack.c.l.bf16 %v840
        %v842 = vunpack.c.h.bf16 %v840
        %v843 = vlaneseq
        %v844 = vand.u32 %v843, 127
        %v845 = vadd.s32 %v844, 128
        %vm846 = vcmp.lt.s32.totalorder %v845, 147
        %v847 = vsel %vm846, %v841, %v10
        %s848 = scalar_lea.vmem [#allocation9], 132
        %v849 = vpack.c.bf16 0.0, %v847
        %s851 = ssub.s32 16, 1
        %852 = vst [vmem:[%s848] sm:%s851] %v849
        %s853 = scalar_lea.vmem %s216, 136
        %v854 = vld [vmem:[%s853] sm:$0xf]
        %v855 = vunpack.c.l.bf16 %v854
        %v856 = vunpack.c.h.bf16 %v854
        %v857 = vlaneseq
        %v858 = vand.u32 %v857, 127
        %vm860 = vcmp.lt.s32.totalorder %v858, 147
        %v861 = vsel %vm860, %v855, %v10
        %s862 = scalar_lea.vmem [#allocation9], 136
        %v863 = vpack.c.bf16 0.0, %v861
        %s865 = ssub.s32 16, 1
        %866 = vst [vmem:[%s862] sm:%s865] %v863
        %s867 = scalar_lea.vmem %s216, 140
        %s869 = sor.u32 255, 127
        %s870 = sand.u32 %s869, 85
        %s871 = sshrl.u32 %s870, 1
        %s872 = sor.u32 %s870, %s871
        %s873 = sand.u32 51, %s872
        %s874 = sshrl.u32 %s873, 2
        %s875 = sor.u32 %s873, %s874
        %s876 = sand.u32 15, %s875
        %v877 = vld [vmem:[%s867] sm:%s876]
        %v878 = vunpack.c.l.bf16 %v877
        %v879 = vunpack.c.h.bf16 %v877
        %v880 = vlaneseq
        %v881 = vand.u32 %v880, 127
        %v882 = vadd.s32 %v881, 128
        %vm883 = vcmp.lt.s32.totalorder %v882, 147
        %v884 = vsel %vm883, %v878, %v10
        %s885 = scalar_lea.vmem [#allocation9], 140
        %v886 = vpack.c.bf16 0.0, %v884
        %s888 = ssub.s32 16, 1
        %889 = vst [vmem:[%s885] sm:%s888] %v886
        %s890 = scalar_lea.vmem %s216, 144
        %v891 = vld [vmem:[%s890] sm:$0xf]
        %v892 = vunpack.c.l.bf16 %v891
        %v893 = vunpack.c.h.bf16 %v891
        %v894 = vlaneseq
        %v895 = vand.u32 %v894, 127
        %vm897 = vcmp.lt.s32.totalorder %v895, 147
        %v898 = vsel %vm897, %v892, %v10
        %s899 = scalar_lea.vmem [#allocation9], 144
        %v900 = vpack.c.bf16 0.0, %v898
        %s902 = ssub.s32 16, 1
        %903 = vst [vmem:[%s899] sm:%s902] %v900
        %s904 = scalar_lea.vmem %s216, 148
        %s906 = sor.u32 255, 127
        %s907 = sand.u32 %s906, 85
        %s908 = sshrl.u32 %s907, 1
        %s909 = sor.u32 %s907, %s908
        %s910 = sand.u32 51, %s909
        %s911 = sshrl.u32 %s910, 2
        %s912 = sor.u32 %s910, %s911
        %s913 = sand.u32 15, %s912
        %v914 = vld [vmem:[%s904] sm:%s913]
        %v915 = vunpack.c.l.bf16 %v914
        %v916 = vunpack.c.h.bf16 %v914
        %v917 = vlaneseq
        %v918 = vand.u32 %v917, 127
        %v919 = vadd.s32 %v918, 128
        %vm920 = vcmp.lt.s32.totalorder %v919, 147
        %v921 = vsel %vm920, %v915, %v10
        %s922 = scalar_lea.vmem [#allocation9], 148
        %v923 = vpack.c.bf16 0.0, %v921
        %s925 = ssub.s32 16, 1
        %926 = vst [vmem:[%s922] sm:%s925] %v923
        %s927 = scalar_lea.vmem %s216, 152
        %v928 = vld [vmem:[%s927] sm:$0xf]
        %v929 = vunpack.c.l.bf16 %v928
        %v930 = vunpack.c.h.bf16 %v928
        %v931 = vlaneseq
        %v932 = vand.u32 %v931, 127
        %vm934 = vcmp.lt.s32.totalorder %v932, 147
        %v935 = vsel %vm934, %v929, %v10
        %s936 = scalar_lea.vmem [#allocation9], 152
        %v937 = vpack.c.bf16 0.0, %v935
        %s939 = ssub.s32 16, 1
        %940 = vst [vmem:[%s936] sm:%s939] %v937
        %s941 = scalar_lea.vmem %s216, 156
        %s943 = sor.u32 255, 127
        %s944 = sand.u32 %s943, 85
        %s945 = sshrl.u32 %s944, 1
        %s946 = sor.u32 %s944, %s945
        %s947 = sand.u32 51, %s946
        %s948 = sshrl.u32 %s947, 2
        %s949 = sor.u32 %s947, %s948
        %s950 = sand.u32 15, %s949
        %v951 = vld [vmem:[%s941] sm:%s950]
        %v952 = vunpack.c.l.bf16 %v951
        %v953 = vunpack.c.h.bf16 %v951
        %v954 = vlaneseq
        %v955 = vand.u32 %v954, 127
        %v956 = vadd.s32 %v955, 128
        %vm957 = vcmp.lt.s32.totalorder %v956, 147
        %v958 = vsel %vm957, %v952, %v10
        %s959 = scalar_lea.vmem [#allocation9], 156
        %v960 = vpack.c.bf16 0.0, %v958
        %s962 = ssub.s32 16, 1
        %963 = vst [vmem:[%s959] sm:%s962] %v960
        %s964 = scalar_lea.vmem %s216, 160
        %v965 = vld [vmem:[%s964] sm:$0xf]
        %v966 = vunpack.c.l.bf16 %v965
        %v967 = vunpack.c.h.bf16 %v965
        %v968 = vlaneseq
        %v969 = vand.u32 %v968, 127
        %vm971 = vcmp.lt.s32.totalorder %v969, 147
        %v972 = vsel %vm971, %v966, %v10
        %s973 = scalar_lea.vmem [#allocation9], 160
        %v974 = vpack.c.bf16 0.0, %v972
        %s976 = ssub.s32 16, 1
        %977 = vst [vmem:[%s973] sm:%s976] %v974
        %s978 = scalar_lea.vmem %s216, 164
        %s980 = sor.u32 255, 127
        %s981 = sand.u32 %s980, 85
        %s982 = sshrl.u32 %s981, 1
        %s983 = sor.u32 %s981, %s982
        %s984 = sand.u32 51, %s983
        %s985 = sshrl.u32 %s984, 2
        %s986 = sor.u32 %s984, %s985
        %s987 = sand.u32 15, %s986
        %v988 = vld [vmem:[%s978] sm:%s987]
        %v989 = vunpack.c.l.bf16 %v988
        %v990 = vunpack.c.h.bf16 %v988
        %v991 = vlaneseq
        %v992 = vand.u32 %v991, 127
        %v993 = vadd.s32 %v992, 128
        %vm994 = vcmp.lt.s32.totalorder %v993, 147
        %v995 = vsel %vm994, %v989, %v10
        %s996 = scalar_lea.vmem [#allocation9], 164
        %v997 = vpack.c.bf16 0.0, %v995
        %s999 = ssub.s32 16, 1
        %1000 = vst [vmem:[%s996] sm:%s999] %v997
        %s1001 = scalar_lea.vmem %s216, 168
        %v1002 = vld [vmem:[%s1001] sm:$0xf]
        %v1003 = vunpack.c.l.bf16 %v1002
        %v1004 = vunpack.c.h.bf16 %v1002
        %v1005 = vlaneseq
        %v1006 = vand.u32 %v1005, 127
        %vm1008 = vcmp.lt.s32.totalorder %v1006, 147
        %v1009 = vsel %vm1008, %v1003, %v10
        %s1010 = scalar_lea.vmem [#allocation9], 168
        %v1011 = vpack.c.bf16 0.0, %v1009
        %s1013 = ssub.s32 16, 1
        %1014 = vst [vmem:[%s1010] sm:%s1013] %v1011
        %s1015 = scalar_lea.vmem %s216, 172
        %s1017 = sor.u32 255, 127
        %s1018 = sand.u32 %s1017, 85
        %s1019 = sshrl.u32 %s1018, 1
        %s1020 = sor.u32 %s1018, %s1019
        %s1021 = sand.u32 51, %s1020
        %s1022 = sshrl.u32 %s1021, 2
        %s1023 = sor.u32 %s1021, %s1022
        %s1024 = sand.u32 15, %s1023
        %v1025 = vld [vmem:[%s1015] sm:%s1024]
        %v1026 = vunpack.c.l.bf16 %v1025
        %v1027 = vunpack.c.h.bf16 %v1025
        %v1028 = vlaneseq
        %v1029 = vand.u32 %v1028, 127
        %v1030 = vadd.s32 %v1029, 128
        %vm1031 = vcmp.lt.s32.totalorder %v1030, 147
        %v1032 = vsel %vm1031, %v1026, %v10
        %s1033 = scalar_lea.vmem [#allocation9], 172
        %v1034 = vpack.c.bf16 0.0, %v1032
        %s1036 = ssub.s32 16, 1
        %1037 = vst [vmem:[%s1033] sm:%s1036] %v1034
        %s1038 = scalar_lea.vmem %s216, 176
        %v1039 = vld [vmem:[%s1038] sm:$0xf]
        %v1040 = vunpack.c.l.bf16 %v1039
        %v1041 = vunpack.c.h.bf16 %v1039
        %v1042 = vlaneseq
        %v1043 = vand.u32 %v1042, 127
        %vm1045 = vcmp.lt.s32.totalorder %v1043, 147
        %v1046 = vsel %vm1045, %v1040, %v10
        %s1047 = scalar_lea.vmem [#allocation9], 176
        %v1048 = vpack.c.bf16 0.0, %v1046
        %s1050 = ssub.s32 16, 1
        %1051 = vst [vmem:[%s1047] sm:%s1050] %v1048
        %s1052 = scalar_lea.vmem %s216, 180
        %s1054 = sor.u32 255, 127
        %s1055 = sand.u32 %s1054, 85
        %s1056 = sshrl.u32 %s1055, 1
        %s1057 = sor.u32 %s1055, %s1056
        %s1058 = sand.u32 51, %s1057
        %s1059 = sshrl.u32 %s1058, 2
        %s1060 = sor.u32 %s1058, %s1059
        %s1061 = sand.u32 15, %s1060
        %v1062 = vld [vmem:[%s1052] sm:%s1061]
        %v1063 = vunpack.c.l.bf16 %v1062
        %v1064 = vunpack.c.h.bf16 %v1062
        %v1065 = vlaneseq
        %v1066 = vand.u32 %v1065, 127
        %v1067 = vadd.s32 %v1066, 128
        %vm1068 = vcmp.lt.s32.totalorder %v1067, 147
        %v1069 = vsel %vm1068, %v1063, %v10
        %s1070 = scalar_lea.vmem [#allocation9], 180
        %v1071 = vpack.c.bf16 0.0, %v1069
        %s1073 = ssub.s32 16, 1
        %1074 = vst [vmem:[%s1070] sm:%s1073] %v1071
        %s1075 = scalar_lea.vmem %s216, 184
        %v1076 = vld [vmem:[%s1075] sm:$0xf]
        %v1077 = vunpack.c.l.bf16 %v1076
        %v1078 = vunpack.c.h.bf16 %v1076
        %v1079 = vlaneseq
        %v1080 = vand.u32 %v1079, 127
        %vm1082 = vcmp.lt.s32.totalorder %v1080, 147
        %v1083 = vsel %vm1082, %v1077, %v10
        %s1084 = scalar_lea.vmem [#allocation9], 184
        %v1085 = vpack.c.bf16 0.0, %v1083
        %s1087 = ssub.s32 16, 1
        %1088 = vst [vmem:[%s1084] sm:%s1087] %v1085
        %s1089 = scalar_lea.vmem %s216, 188
        %s1091 = sor.u32 255, 127
        %s1092 = sand.u32 %s1091, 85
        %s1093 = sshrl.u32 %s1092, 1
        %s1094 = sor.u32 %s1092, %s1093
        %s1095 = sand.u32 51, %s1094
        %s1096 = sshrl.u32 %s1095, 2
        %s1097 = sor.u32 %s1095, %s1096
        %s1098 = sand.u32 15, %s1097
        %v1099 = vld [vmem:[%s1089] sm:%s1098]
        %v1100 = vunpack.c.l.bf16 %v1099
        %v1101 = vunpack.c.h.bf16 %v1099
        %v1102 = vlaneseq
        %v1103 = vand.u32 %v1102, 127
        %v1104 = vadd.s32 %v1103, 128
        %vm1105 = vcmp.lt.s32.totalorder %v1104, 147
        %v1106 = vsel %vm1105, %v1100, %v10
        %s1107 = scalar_lea.vmem [#allocation9], 188
        %v1108 = vpack.c.bf16 0.0, %v1106
        %s1110 = ssub.s32 16, 1
        %1111 = vst [vmem:[%s1107] sm:%s1110] %v1108
        %s1112 = scalar_lea.vmem %s216, 192
        %v1113 = vld [vmem:[%s1112] sm:$0xf]
        %v1114 = vunpack.c.l.bf16 %v1113
        %v1115 = vunpack.c.h.bf16 %v1113
        %v1116 = vlaneseq
        %v1117 = vand.u32 %v1116, 127
        %vm1119 = vcmp.lt.s32.totalorder %v1117, 147
        %v1120 = vsel %vm1119, %v1114, %v10
        %s1121 = scalar_lea.vmem [#allocation9], 192
        %v1122 = vpack.c.bf16 0.0, %v1120
        %s1124 = ssub.s32 16, 1
        %1125 = vst [vmem:[%s1121] sm:%s1124] %v1122
        %s1126 = scalar_lea.vmem %s216, 196
        %s1128 = sor.u32 255, 127
        %s1129 = sand.u32 %s1128, 85
        %s1130 = sshrl.u32 %s1129, 1
        %s1131 = sor.u32 %s1129, %s1130
        %s1132 = sand.u32 51, %s1131
        %s1133 = sshrl.u32 %s1132, 2
        %s1134 = sor.u32 %s1132, %s1133
        %s1135 = sand.u32 15, %s1134
        %v1136 = vld [vmem:[%s1126] sm:%s1135]
        %v1137 = vunpack.c.l.bf16 %v1136
        %v1138 = vunpack.c.h.bf16 %v1136
        %v1139 = vlaneseq
        %v1140 = vand.u32 %v1139, 127
        %v1141 = vadd.s32 %v1140, 128
        %vm1142 = vcmp.lt.s32.totalorder %v1141, 147
        %v1143 = vsel %vm1142, %v1137, %v10
        %s1144 = scalar_lea.vmem [#allocation9], 196
        %v1145 = vpack.c.bf16 0.0, %v1143
        %s1147 = ssub.s32 16, 1
        %1148 = vst [vmem:[%s1144] sm:%s1147] %v1145
        %s1149 = scalar_lea.vmem %s216, 200
        %v1150 = vld [vmem:[%s1149] sm:$0xf]
        %v1151 = vunpack.c.l.bf16 %v1150
        %v1152 = vunpack.c.h.bf16 %v1150
        %v1153 = vlaneseq
        %v1154 = vand.u32 %v1153, 127
        %vm1156 = vcmp.lt.s32.totalorder %v1154, 147
        %v1157 = vsel %vm1156, %v1151, %v10
        %s1158 = scalar_lea.vmem [#allocation9], 200
        %v1159 = vpack.c.bf16 0.0, %v1157
        %s1161 = ssub.s32 16, 1
        %1162 = vst [vmem:[%s1158] sm:%s1161] %v1159
        %s1163 = scalar_lea.vmem %s216, 204
        %s1165 = sor.u32 255, 127
        %s1166 = sand.u32 %s1165, 85
        %s1167 = sshrl.u32 %s1166, 1
        %s1168 = sor.u32 %s1166, %s1167
        %s1169 = sand.u32 51, %s1168
        %s1170 = sshrl.u32 %s1169, 2
        %s1171 = sor.u32 %s1169, %s1170
        %s1172 = sand.u32 15, %s1171
        %v1173 = vld [vmem:[%s1163] sm:%s1172]
        %v1174 = vunpack.c.l.bf16 %v1173
        %v1175 = vunpack.c.h.bf16 %v1173
        %v1176 = vlaneseq
        %v1177 = vand.u32 %v1176, 127
        %v1178 = vadd.s32 %v1177, 128
        %vm1179 = vcmp.lt.s32.totalorder %v1178, 147
        %v1180 = vsel %vm1179, %v1174, %v10
        %s1181 = scalar_lea.vmem [#allocation9], 204
        %v1182 = vpack.c.bf16 0.0, %v1180
        %s1184 = ssub.s32 16, 1
        %1185 = vst [vmem:[%s1181] sm:%s1184] %v1182
        %s1186 = scalar_lea.vmem %s216, 208
        %v1187 = vld [vmem:[%s1186] sm:$0xf]
        %v1188 = vunpack.c.l.bf16 %v1187
        %v1189 = vunpack.c.h.bf16 %v1187
        %v1190 = vlaneseq
        %v1191 = vand.u32 %v1190, 127
        %vm1193 = vcmp.lt.s32.totalorder %v1191, 147
        %v1194 = vsel %vm1193, %v1188, %v10
        %s1195 = scalar_lea.vmem [#allocation9], 208
        %v1196 = vpack.c.bf16 0.0, %v1194
        %s1198 = ssub.s32 16, 1
        %1199 = vst [vmem:[%s1195] sm:%s1198] %v1196
        %s1200 = scalar_lea.vmem %s216, 212
        %s1202 = sor.u32 255, 127
        %s1203 = sand.u32 %s1202, 85
        %s1204 = sshrl.u32 %s1203, 1
        %s1205 = sor.u32 %s1203, %s1204
        %s1206 = sand.u32 51, %s1205
        %s1207 = sshrl.u32 %s1206, 2
        %s1208 = sor.u32 %s1206, %s1207
        %s1209 = sand.u32 15, %s1208
        %v1210 = vld [vmem:[%s1200] sm:%s1209]
        %v1211 = vunpack.c.l.bf16 %v1210
        %v1212 = vunpack.c.h.bf16 %v1210
        %v1213 = vlaneseq
        %v1214 = vand.u32 %v1213, 127
        %v1215 = vadd.s32 %v1214, 128
        %vm1216 = vcmp.lt.s32.totalorder %v1215, 147
        %v1217 = vsel %vm1216, %v1211, %v10
        %s1218 = scalar_lea.vmem [#allocation9], 212
        %v1219 = vpack.c.bf16 0.0, %v1217
        %s1221 = ssub.s32 16, 1
        %1222 = vst [vmem:[%s1218] sm:%s1221] %v1219
        %s1223 = scalar_lea.vmem %s216, 216
        %v1224 = vld [vmem:[%s1223] sm:$0xf]
        %v1225 = vunpack.c.l.bf16 %v1224
        %v1226 = vunpack.c.h.bf16 %v1224
        %v1227 = vlaneseq
        %v1228 = vand.u32 %v1227, 127
        %vm1230 = vcmp.lt.s32.totalorder %v1228, 147
        %v1231 = vsel %vm1230, %v1225, %v10
        %s1232 = scalar_lea.vmem [#allocation9], 216
        %v1233 = vpack.c.bf16 0.0, %v1231
        %s1235 = ssub.s32 16, 1
        %1236 = vst [vmem:[%s1232] sm:%s1235] %v1233
        %s1237 = scalar_lea.vmem %s216, 220
        %s1239 = sor.u32 255, 127
        %s1240 = sand.u32 %s1239, 85
        %s1241 = sshrl.u32 %s1240, 1
        %s1242 = sor.u32 %s1240, %s1241
        %s1243 = sand.u32 51, %s1242
        %s1244 = sshrl.u32 %s1243, 2
        %s1245 = sor.u32 %s1243, %s1244
        %s1246 = sand.u32 15, %s1245
        %v1247 = vld [vmem:[%s1237] sm:%s1246]
        %v1248 = vunpack.c.l.bf16 %v1247
        %v1249 = vunpack.c.h.bf16 %v1247
        %v1250 = vlaneseq
        %v1251 = vand.u32 %v1250, 127
        %v1252 = vadd.s32 %v1251, 128
        %vm1253 = vcmp.lt.s32.totalorder %v1252, 147
        %v1254 = vsel %vm1253, %v1248, %v10
        %s1255 = scalar_lea.vmem [#allocation9], 220
        %v1256 = vpack.c.bf16 0.0, %v1254
        %s1258 = ssub.s32 16, 1
        %1259 = vst [vmem:[%s1255] sm:%s1258] %v1256
        %s1260 = scalar_lea.vmem %s216, 224
        %v1261 = vld [vmem:[%s1260] sm:$0xf]
        %v1262 = vunpack.c.l.bf16 %v1261
        %v1263 = vunpack.c.h.bf16 %v1261
        %v1264 = vlaneseq
        %v1265 = vand.u32 %v1264, 127
        %vm1267 = vcmp.lt.s32.totalorder %v1265, 147
        %v1268 = vsel %vm1267, %v1262, %v10
        %s1269 = scalar_lea.vmem [#allocation9], 224
        %v1270 = vpack.c.bf16 0.0, %v1268
        %s1272 = ssub.s32 16, 1
        %1273 = vst [vmem:[%s1269] sm:%s1272] %v1270
        %s1274 = scalar_lea.vmem %s216, 228
        %s1276 = sor.u32 255, 127
        %s1277 = sand.u32 %s1276, 85
        %s1278 = sshrl.u32 %s1277, 1
        %s1279 = sor.u32 %s1277, %s1278
        %s1280 = sand.u32 51, %s1279
        %s1281 = sshrl.u32 %s1280, 2
        %s1282 = sor.u32 %s1280, %s1281
        %s1283 = sand.u32 15, %s1282
        %v1284 = vld [vmem:[%s1274] sm:%s1283]
        %v1285 = vunpack.c.l.bf16 %v1284
        %v1286 = vunpack.c.h.bf16 %v1284
        %v1287 = vlaneseq
        %v1288 = vand.u32 %v1287, 127
        %v1289 = vadd.s32 %v1288, 128
        %vm1290 = vcmp.lt.s32.totalorder %v1289, 147
        %v1291 = vsel %vm1290, %v1285, %v10
        %s1292 = scalar_lea.vmem [#allocation9], 228
        %v1293 = vpack.c.bf16 0.0, %v1291
        %s1295 = ssub.s32 16, 1
        %1296 = vst [vmem:[%s1292] sm:%s1295] %v1293
        %s1297 = scalar_lea.vmem %s216, 232
        %v1298 = vld [vmem:[%s1297] sm:$0xf]
        %v1299 = vunpack.c.l.bf16 %v1298
        %v1300 = vunpack.c.h.bf16 %v1298
        %v1301 = vlaneseq
        %v1302 = vand.u32 %v1301, 127
        %vm1304 = vcmp.lt.s32.totalorder %v1302, 147
        %v1305 = vsel %vm1304, %v1299, %v10
        %s1306 = scalar_lea.vmem [#allocation9], 232
        %v1307 = vpack.c.bf16 0.0, %v1305
        %s1309 = ssub.s32 16, 1
        %1310 = vst [vmem:[%s1306] sm:%s1309] %v1307
        %s1311 = scalar_lea.vmem %s216, 236
        %s1313 = sor.u32 255, 127
        %s1314 = sand.u32 %s1313, 85
        %s1315 = sshrl.u32 %s1314, 1
        %s1316 = sor.u32 %s1314, %s1315
        %s1317 = sand.u32 51, %s1316
        %s1318 = sshrl.u32 %s1317, 2
        %s1319 = sor.u32 %s1317, %s1318
        %s1320 = sand.u32 15, %s1319
        %v1321 = vld [vmem:[%s1311] sm:%s1320]
        %v1322 = vunpack.c.l.bf16 %v1321
        %v1323 = vunpack.c.h.bf16 %v1321
        %v1324 = vlaneseq
        %v1325 = vand.u32 %v1324, 127
        %v1326 = vadd.s32 %v1325, 128
        %vm1327 = vcmp.lt.s32.totalorder %v1326, 147
        %v1328 = vsel %vm1327, %v1322, %v10
        %s1329 = scalar_lea.vmem [#allocation9], 236
        %v1330 = vpack.c.bf16 0.0, %v1328
        %s1332 = ssub.s32 16, 1
        %1333 = vst [vmem:[%s1329] sm:%s1332] %v1330
        %s1334 = scalar_lea.vmem %s216, 240
        %v1335 = vld [vmem:[%s1334] sm:$0xf]
        %v1336 = vunpack.c.l.bf16 %v1335
        %v1337 = vunpack.c.h.bf16 %v1335
        %v1338 = vlaneseq
        %v1339 = vand.u32 %v1338, 127
        %vm1341 = vcmp.lt.s32.totalorder %v1339, 147
        %v1342 = vsel %vm1341, %v1336, %v10
        %s1343 = scalar_lea.vmem [#allocation9], 240
        %v1344 = vpack.c.bf16 0.0, %v1342
        %s1346 = ssub.s32 16, 1
        %1347 = vst [vmem:[%s1343] sm:%s1346] %v1344
        %s1348 = scalar_lea.vmem %s216, 244
        %s1350 = sor.u32 255, 127
        %s1351 = sand.u32 %s1350, 85
        %s1352 = sshrl.u32 %s1351, 1
        %s1353 = sor.u32 %s1351, %s1352
        %s1354 = sand.u32 51, %s1353
        %s1355 = sshrl.u32 %s1354, 2
        %s1356 = sor.u32 %s1354, %s1355
        %s1357 = sand.u32 15, %s1356
        %v1358 = vld [vmem:[%s1348] sm:%s1357]
        %v1359 = vunpack.c.l.bf16 %v1358
        %v1360 = vunpack.c.h.bf16 %v1358
        %v1361 = vlaneseq
        %v1362 = vand.u32 %v1361, 127
        %v1363 = vadd.s32 %v1362, 128
        %vm1364 = vcmp.lt.s32.totalorder %v1363, 147
        %v1365 = vsel %vm1364, %v1359, %v10
        %s1366 = scalar_lea.vmem [#allocation9], 244
        %v1367 = vpack.c.bf16 0.0, %v1365
        %s1369 = ssub.s32 16, 1
        %1370 = vst [vmem:[%s1366] sm:%s1369] %v1367
        %s1371 = scalar_lea.vmem %s216, 248
        %v1372 = vld [vmem:[%s1371] sm:$0xf]
        %v1373 = vunpack.c.l.bf16 %v1372
        %v1374 = vunpack.c.h.bf16 %v1372
        %v1375 = vlaneseq
        %v1376 = vand.u32 %v1375, 127
        %vm1378 = vcmp.lt.s32.totalorder %v1376, 147
        %v1379 = vsel %vm1378, %v1373, %v10
        %s1380 = scalar_lea.vmem [#allocation9], 248
        %v1381 = vpack.c.bf16 0.0, %v1379
        %s1383 = ssub.s32 16, 1
        %1384 = vst [vmem:[%s1380] sm:%s1383] %v1381
        %s1385 = scalar_lea.vmem %s216, 252
        %s1387 = sor.u32 255, 127
        %s1388 = sand.u32 %s1387, 85
        %s1389 = sshrl.u32 %s1388, 1
        %s1390 = sor.u32 %s1388, %s1389
        %s1391 = sand.u32 51, %s1390
        %s1392 = sshrl.u32 %s1391, 2
        %s1393 = sor.u32 %s1391, %s1392
        %s1394 = sand.u32 15, %s1393
        %v1395 = vld [vmem:[%s1385] sm:%s1394]
        %v1396 = vunpack.c.l.bf16 %v1395
        %v1397 = vunpack.c.h.bf16 %v1395
        %v1398 = vlaneseq
        %v1399 = vand.u32 %v1398, 127
        %v1400 = vadd.s32 %v1399, 128
        %vm1401 = vcmp.lt.s32.totalorder %v1400, 147
        %v1402 = vsel %vm1401, %v1396, %v10
        %s1403 = scalar_lea.vmem [#allocation9], 252
        %v1404 = vpack.c.bf16 0.0, %v1402
        %s1406 = ssub.s32 16, 1
        %1407 = vst [vmem:[%s1403] sm:%s1406] %v1404
        %s1408 = scalar_lea.vmem %s216, 256
        %v1409 = vld [vmem:[%s1408] sm:$0xf]
        %v1410 = vunpack.c.l.bf16 %v1409
        %v1411 = vunpack.c.h.bf16 %v1409
        %v1412 = vlaneseq
        %v1413 = vand.u32 %v1412, 127
        %vm1415 = vcmp.lt.s32.totalorder %v1413, 147
        %v1416 = vsel %vm1415, %v1410, %v10
        %s1417 = scalar_lea.vmem [#allocation9], 256
        %v1418 = vpack.c.bf16 0.0, %v1416
        %s1420 = ssub.s32 16, 1
        %1421 = vst [vmem:[%s1417] sm:%s1420] %v1418
        %s1422 = scalar_lea.vmem %s216, 260
        %s1424 = sor.u32 255, 127
        %s1425 = sand.u32 %s1424, 85
        %s1426 = sshrl.u32 %s1425, 1
        %s1427 = sor.u32 %s1425, %s1426
        %s1428 = sand.u32 51, %s1427
        %s1429 = sshrl.u32 %s1428, 2
        %s1430 = sor.u32 %s1428, %s1429
        %s1431 = sand.u32 15, %s1430
        %v1432 = vld [vmem:[%s1422] sm:%s1431]
        %v1433 = vunpack.c.l.bf16 %v1432
        %v1434 = vunpack.c.h.bf16 %v1432
        %v1435 = vlaneseq
        %v1436 = vand.u32 %v1435, 127
        %v1437 = vadd.s32 %v1436, 128
        %vm1438 = vcmp.lt.s32.totalorder %v1437, 147
        %v1439 = vsel %vm1438, %v1433, %v10
        %s1440 = scalar_lea.vmem [#allocation9], 260
        %v1441 = vpack.c.bf16 0.0, %v1439
        %s1443 = ssub.s32 16, 1
        %1444 = vst [vmem:[%s1440] sm:%s1443] %v1441
        %s1445 = scalar_lea.vmem %s216, 264
        %v1446 = vld [vmem:[%s1445] sm:$0xf]
        %v1447 = vunpack.c.l.bf16 %v1446
        %v1448 = vunpack.c.h.bf16 %v1446
        %v1449 = vlaneseq
        %v1450 = vand.u32 %v1449, 127
        %vm1452 = vcmp.lt.s32.totalorder %v1450, 147
        %v1453 = vsel %vm1452, %v1447, %v10
        %s1454 = scalar_lea.vmem [#allocation9], 264
        %v1455 = vpack.c.bf16 0.0, %v1453
        %s1457 = ssub.s32 16, 1
        %1458 = vst [vmem:[%s1454] sm:%s1457] %v1455
        %s1459 = scalar_lea.vmem %s216, 268
        %s1461 = sor.u32 255, 127
        %s1462 = sand.u32 %s1461, 85
        %s1463 = sshrl.u32 %s1462, 1
        %s1464 = sor.u32 %s1462, %s1463
        %s1465 = sand.u32 51, %s1464
        %s1466 = sshrl.u32 %s1465, 2
        %s1467 = sor.u32 %s1465, %s1466
        %s1468 = sand.u32 15, %s1467
        %v1469 = vld [vmem:[%s1459] sm:%s1468]
        %v1470 = vunpack.c.l.bf16 %v1469
        %v1471 = vunpack.c.h.bf16 %v1469
        %v1472 = vlaneseq
        %v1473 = vand.u32 %v1472, 127
        %v1474 = vadd.s32 %v1473, 128
        %vm1475 = vcmp.lt.s32.totalorder %v1474, 147
        %v1476 = vsel %vm1475, %v1470, %v10
        %s1477 = scalar_lea.vmem [#allocation9], 268
        %v1478 = vpack.c.bf16 0.0, %v1476
        %s1480 = ssub.s32 16, 1
        %1481 = vst [vmem:[%s1477] sm:%s1480] %v1478
        %s1482 = scalar_lea.vmem %s216, 272
        %v1483 = vld [vmem:[%s1482] sm:$0xf]
        %v1484 = vunpack.c.l.bf16 %v1483
        %v1485 = vunpack.c.h.bf16 %v1483
        %v1486 = vlaneseq
        %v1487 = vand.u32 %v1486, 127
        %vm1489 = vcmp.lt.s32.totalorder %v1487, 147
        %v1490 = vsel %vm1489, %v1484, %v10
        %s1491 = scalar_lea.vmem [#allocation9], 272
        %v1492 = vpack.c.bf16 0.0, %v1490
        %s1494 = ssub.s32 16, 1
        %1495 = vst [vmem:[%s1491] sm:%s1494] %v1492
        %s1496 = scalar_lea.vmem %s216, 276
        %s1498 = sor.u32 255, 127
        %s1499 = sand.u32 %s1498, 85
        %s1500 = sshrl.u32 %s1499, 1
        %s1501 = sor.u32 %s1499, %s1500
        %s1502 = sand.u32 51, %s1501
        %s1503 = sshrl.u32 %s1502, 2
        %s1504 = sor.u32 %s1502, %s1503
        %s1505 = sand.u32 15, %s1504
        %v1506 = vld [vmem:[%s1496] sm:%s1505]
        %v1507 = vunpack.c.l.bf16 %v1506
        %v1508 = vunpack.c.h.bf16 %v1506
        %v1509 = vlaneseq
        %v1510 = vand.u32 %v1509, 127
        %v1511 = vadd.s32 %v1510, 128
        %vm1512 = vcmp.lt.s32.totalorder %v1511, 147
        %v1513 = vsel %vm1512, %v1507, %v10
        %s1514 = scalar_lea.vmem [#allocation9], 276
        %v1515 = vpack.c.bf16 0.0, %v1513
        %s1517 = ssub.s32 16, 1
        %1518 = vst [vmem:[%s1514] sm:%s1517] %v1515
        %s1519 = scalar_lea.vmem %s216, 280
        %v1520 = vld [vmem:[%s1519] sm:$0xf]
        %v1521 = vunpack.c.l.bf16 %v1520
        %v1522 = vunpack.c.h.bf16 %v1520
        %v1523 = vlaneseq
        %v1524 = vand.u32 %v1523, 127
        %vm1526 = vcmp.lt.s32.totalorder %v1524, 147
        %v1527 = vsel %vm1526, %v1521, %v10
        %s1528 = scalar_lea.vmem [#allocation9], 280
        %v1529 = vpack.c.bf16 0.0, %v1527
        %s1531 = ssub.s32 16, 1
        %1532 = vst [vmem:[%s1528] sm:%s1531] %v1529
        %s1533 = scalar_lea.vmem %s216, 284
        %s1535 = sor.u32 255, 127
        %s1536 = sand.u32 %s1535, 85
        %s1537 = sshrl.u32 %s1536, 1
        %s1538 = sor.u32 %s1536, %s1537
        %s1539 = sand.u32 51, %s1538
        %s1540 = sshrl.u32 %s1539, 2
        %s1541 = sor.u32 %s1539, %s1540
        %s1542 = sand.u32 15, %s1541
        %v1543 = vld [vmem:[%s1533] sm:%s1542]
        %v1544 = vunpack.c.l.bf16 %v1543
        %v1545 = vunpack.c.h.bf16 %v1543
        %v1546 = vlaneseq
        %v1547 = vand.u32 %v1546, 127
        %v1548 = vadd.s32 %v1547, 128
        %vm1549 = vcmp.lt.s32.totalorder %v1548, 147
        %v1550 = vsel %vm1549, %v1544, %v10
        %s1551 = scalar_lea.vmem [#allocation9], 284
        %v1552 = vpack.c.bf16 0.0, %v1550
        %s1554 = ssub.s32 16, 1
        %1555 = vst [vmem:[%s1551] sm:%s1554] %v1552
        %s1556 = scalar_lea.vmem %s216, 288
        %v1557 = vld [vmem:[%s1556] sm:$0xf]
        %v1558 = vunpack.c.l.bf16 %v1557
        %v1559 = vunpack.c.h.bf16 %v1557
        %v1560 = vlaneseq
        %v1561 = vand.u32 %v1560, 127
        %vm1563 = vcmp.lt.s32.totalorder %v1561, 147
        %v1564 = vsel %vm1563, %v1558, %v10
        %s1565 = scalar_lea.vmem [#allocation9], 288
        %v1566 = vpack.c.bf16 0.0, %v1564
        %s1568 = ssub.s32 16, 1
        %1569 = vst [vmem:[%s1565] sm:%s1568] %v1566
        %s1570 = scalar_lea.vmem %s216, 292
        %s1572 = sor.u32 255, 127
        %s1573 = sand.u32 %s1572, 85
        %s1574 = sshrl.u32 %s1573, 1
        %s1575 = sor.u32 %s1573, %s1574
        %s1576 = sand.u32 51, %s1575
        %s1577 = sshrl.u32 %s1576, 2
        %s1578 = sor.u32 %s1576, %s1577
        %s1579 = sand.u32 15, %s1578
        %v1580 = vld [vmem:[%s1570] sm:%s1579]
        %v1581 = vunpack.c.l.bf16 %v1580
        %v1582 = vunpack.c.h.bf16 %v1580
        %v1583 = vlaneseq
        %v1584 = vand.u32 %v1583, 127
        %v1585 = vadd.s32 %v1584, 128
        %vm1586 = vcmp.lt.s32.totalorder %v1585, 147
        %v1587 = vsel %vm1586, %v1581, %v10
        %s1588 = scalar_lea.vmem [#allocation9], 292
        %v1589 = vpack.c.bf16 0.0, %v1587
        %s1591 = ssub.s32 16, 1
        %1592 = vst [vmem:[%s1588] sm:%s1591] %v1589
        %s1593 = scalar_lea.vmem %s216, 296
        %v1594 = vld [vmem:[%s1593] sm:$0xf]
        %v1595 = vunpack.c.l.bf16 %v1594
        %v1596 = vunpack.c.h.bf16 %v1594
        %v1597 = vlaneseq
        %v1598 = vand.u32 %v1597, 127
        %vm1600 = vcmp.lt.s32.totalorder %v1598, 147
        %v1601 = vsel %vm1600, %v1595, %v10
        %s1602 = scalar_lea.vmem [#allocation9], 296
        %v1603 = vpack.c.bf16 0.0, %v1601
        %s1605 = ssub.s32 16, 1
        %1606 = vst [vmem:[%s1602] sm:%s1605] %v1603
        %s1607 = scalar_lea.vmem %s216, 300
        %s1609 = sor.u32 255, 127
        %s1610 = sand.u32 %s1609, 85
        %s1611 = sshrl.u32 %s1610, 1
        %s1612 = sor.u32 %s1610, %s1611
        %s1613 = sand.u32 51, %s1612
        %s1614 = sshrl.u32 %s1613, 2
        %s1615 = sor.u32 %s1613, %s1614
        %s1616 = sand.u32 15, %s1615
        %v1617 = vld [vmem:[%s1607] sm:%s1616]
        %v1618 = vunpack.c.l.bf16 %v1617
        %v1619 = vunpack.c.h.bf16 %v1617
        %v1620 = vlaneseq
        %v1621 = vand.u32 %v1620, 127
        %v1622 = vadd.s32 %v1621, 128
        %vm1623 = vcmp.lt.s32.totalorder %v1622, 147
        %v1624 = vsel %vm1623, %v1618, %v10
        %s1625 = scalar_lea.vmem [#allocation9], 300
        %v1626 = vpack.c.bf16 0.0, %v1624
        %s1628 = ssub.s32 16, 1
        %1629 = vst [vmem:[%s1625] sm:%s1628] %v1626
        %s1630 = scalar_lea.vmem %s216, 304
        %v1631 = vld [vmem:[%s1630] sm:$0xf]
        %v1632 = vunpack.c.l.bf16 %v1631
        %v1633 = vunpack.c.h.bf16 %v1631
        %v1634 = vlaneseq
        %v1635 = vand.u32 %v1634, 127
        %vm1637 = vcmp.lt.s32.totalorder %v1635, 147
        %v1638 = vsel %vm1637, %v1632, %v10
        %s1639 = scalar_lea.vmem [#allocation9], 304
        %v1640 = vpack.c.bf16 0.0, %v1638
        %s1642 = ssub.s32 16, 1
        %1643 = vst [vmem:[%s1639] sm:%s1642] %v1640
        %s1644 = scalar_lea.vmem %s216, 308
        %s1646 = sor.u32 255, 127
        %s1647 = sand.u32 %s1646, 85
        %s1648 = sshrl.u32 %s1647, 1
        %s1649 = sor.u32 %s1647, %s1648
        %s1650 = sand.u32 51, %s1649
        %s1651 = sshrl.u32 %s1650, 2
        %s1652 = sor.u32 %s1650, %s1651
        %s1653 = sand.u32 15, %s1652
        %v1654 = vld [vmem:[%s1644] sm:%s1653]
        %v1655 = vunpack.c.l.bf16 %v1654
        %v1656 = vunpack.c.h.bf16 %v1654
        %v1657 = vlaneseq
        %v1658 = vand.u32 %v1657, 127
        %v1659 = vadd.s32 %v1658, 128
        %vm1660 = vcmp.lt.s32.totalorder %v1659, 147
        %v1661 = vsel %vm1660, %v1655, %v10
        %s1662 = scalar_lea.vmem [#allocation9], 308
        %v1663 = vpack.c.bf16 0.0, %v1661
        %s1665 = ssub.s32 16, 1
        %1666 = vst [vmem:[%s1662] sm:%s1665] %v1663
        %s1667 = scalar_lea.vmem %s216, 312
        %v1668 = vld [vmem:[%s1667] sm:$0xf]
        %v1669 = vunpack.c.l.bf16 %v1668
        %v1670 = vunpack.c.h.bf16 %v1668
        %v1671 = vlaneseq
        %v1672 = vand.u32 %v1671, 127
        %vm1674 = vcmp.lt.s32.totalorder %v1672, 147
        %v1675 = vsel %vm1674, %v1669, %v10
        %s1676 = scalar_lea.vmem [#allocation9], 312
        %v1677 = vpack.c.bf16 0.0, %v1675
        %s1679 = ssub.s32 16, 1
        %1680 = vst [vmem:[%s1676] sm:%s1679] %v1677
        %s1681 = scalar_lea.vmem %s216, 316
        %s1683 = sor.u32 255, 127
        %s1684 = sand.u32 %s1683, 85
        %s1685 = sshrl.u32 %s1684, 1
        %s1686 = sor.u32 %s1684, %s1685
        %s1687 = sand.u32 51, %s1686
        %s1688 = sshrl.u32 %s1687, 2
        %s1689 = sor.u32 %s1687, %s1688
        %s1690 = sand.u32 15, %s1689
        %v1691 = vld [vmem:[%s1681] sm:%s1690]
        %v1692 = vunpack.c.l.bf16 %v1691
        %v1693 = vunpack.c.h.bf16 %v1691
        %v1694 = vlaneseq
        %v1695 = vand.u32 %v1694, 127
        %v1696 = vadd.s32 %v1695, 128
        %vm1697 = vcmp.lt.s32.totalorder %v1696, 147
        %v1698 = vsel %vm1697, %v1692, %v10
        %s1699 = scalar_lea.vmem [#allocation9], 316
        %v1700 = vpack.c.bf16 0.0, %v1698
        %s1702 = ssub.s32 16, 1
        %1703 = vst [vmem:[%s1699] sm:%s1702] %v1700
        %s1704 = scalar_lea.vmem %s216, 320
        %v1705 = vld [vmem:[%s1704] sm:$0xf]
        %v1706 = vunpack.c.l.bf16 %v1705
        %v1707 = vunpack.c.h.bf16 %v1705
        %v1708 = vlaneseq
        %v1709 = vand.u32 %v1708, 127
        %vm1711 = vcmp.lt.s32.totalorder %v1709, 147
        %v1712 = vsel %vm1711, %v1706, %v10
        %s1713 = scalar_lea.vmem [#allocation9], 320
        %v1714 = vpack.c.bf16 0.0, %v1712
        %s1716 = ssub.s32 16, 1
        %1717 = vst [vmem:[%s1713] sm:%s1716] %v1714
        %s1718 = scalar_lea.vmem %s216, 324
        %s1720 = sor.u32 255, 127
        %s1721 = sand.u32 %s1720, 85
        %s1722 = sshrl.u32 %s1721, 1
        %s1723 = sor.u32 %s1721, %s1722
        %s1724 = sand.u32 51, %s1723
        %s1725 = sshrl.u32 %s1724, 2
        %s1726 = sor.u32 %s1724, %s1725
        %s1727 = sand.u32 15, %s1726
        %v1728 = vld [vmem:[%s1718] sm:%s1727]
        %v1729 = vunpack.c.l.bf16 %v1728
        %v1730 = vunpack.c.h.bf16 %v1728
        %v1731 = vlaneseq
        %v1732 = vand.u32 %v1731, 127
        %v1733 = vadd.s32 %v1732, 128
        %vm1734 = vcmp.lt.s32.totalorder %v1733, 147
        %v1735 = vsel %vm1734, %v1729, %v10
        %s1736 = scalar_lea.vmem [#allocation9], 324
        %v1737 = vpack.c.bf16 0.0, %v1735
        %s1739 = ssub.s32 16, 1
        %1740 = vst [vmem:[%s1736] sm:%s1739] %v1737
        %s1741 = scalar_lea.vmem %s216, 328
        %v1742 = vld [vmem:[%s1741] sm:$0xf]
        %v1743 = vunpack.c.l.bf16 %v1742
        %v1744 = vunpack.c.h.bf16 %v1742
        %v1745 = vlaneseq
        %v1746 = vand.u32 %v1745, 127
        %vm1748 = vcmp.lt.s32.totalorder %v1746, 147
        %v1749 = vsel %vm1748, %v1743, %v10
        %s1750 = scalar_lea.vmem [#allocation9], 328
        %v1751 = vpack.c.bf16 0.0, %v1749
        %s1753 = ssub.s32 16, 1
        %1754 = vst [vmem:[%s1750] sm:%s1753] %v1751
        %s1755 = scalar_lea.vmem %s216, 332
        %s1757 = sor.u32 255, 127
        %s1758 = sand.u32 %s1757, 85
        %s1759 = sshrl.u32 %s1758, 1
        %s1760 = sor.u32 %s1758, %s1759
        %s1761 = sand.u32 51, %s1760
        %s1762 = sshrl.u32 %s1761, 2
        %s1763 = sor.u32 %s1761, %s1762
        %s1764 = sand.u32 15, %s1763
        %v1765 = vld [vmem:[%s1755] sm:%s1764]
        %v1766 = vunpack.c.l.bf16 %v1765
        %v1767 = vunpack.c.h.bf16 %v1765
        %v1768 = vlaneseq
        %v1769 = vand.u32 %v1768, 127
        %v1770 = vadd.s32 %v1769, 128
        %vm1771 = vcmp.lt.s32.totalorder %v1770, 147
        %v1772 = vsel %vm1771, %v1766, %v10
        %s1773 = scalar_lea.vmem [#allocation9], 332
        %v1774 = vpack.c.bf16 0.0, %v1772
        %s1776 = ssub.s32 16, 1
        %1777 = vst [vmem:[%s1773] sm:%s1776] %v1774
        %s1778 = scalar_lea.vmem %s216, 336
        %v1779 = vld [vmem:[%s1778] sm:$0xf]
        %v1780 = vunpack.c.l.bf16 %v1779
        %v1781 = vunpack.c.h.bf16 %v1779
        %v1782 = vlaneseq
        %v1783 = vand.u32 %v1782, 127
        %vm1785 = vcmp.lt.s32.totalorder %v1783, 147
        %v1786 = vsel %vm1785, %v1780, %v10
        %s1787 = scalar_lea.vmem [#allocation9], 336
        %v1788 = vpack.c.bf16 0.0, %v1786
        %s1790 = ssub.s32 16, 1
        %1791 = vst [vmem:[%s1787] sm:%s1790] %v1788
        %s1792 = scalar_lea.vmem %s216, 340
        %s1794 = sor.u32 255, 127
        %s1795 = sand.u32 %s1794, 85
        %s1796 = sshrl.u32 %s1795, 1
        %s1797 = sor.u32 %s1795, %s1796
        %s1798 = sand.u32 51, %s1797
        %s1799 = sshrl.u32 %s1798, 2
        %s1800 = sor.u32 %s1798, %s1799
        %s1801 = sand.u32 15, %s1800
        %v1802 = vld [vmem:[%s1792] sm:%s1801]
        %v1803 = vunpack.c.l.bf16 %v1802
        %v1804 = vunpack.c.h.bf16 %v1802
        %v1805 = vlaneseq
        %v1806 = vand.u32 %v1805, 127
        %v1807 = vadd.s32 %v1806, 128
        %vm1808 = vcmp.lt.s32.totalorder %v1807, 147
        %v1809 = vsel %vm1808, %v1803, %v10
        %s1810 = scalar_lea.vmem [#allocation9], 340
        %v1811 = vpack.c.bf16 0.0, %v1809
        %s1813 = ssub.s32 16, 1
        %1814 = vst [vmem:[%s1810] sm:%s1813] %v1811
        %s1815 = scalar_lea.vmem %s216, 344
        %v1816 = vld [vmem:[%s1815] sm:$0xf]
        %v1817 = vunpack.c.l.bf16 %v1816
        %v1818 = vunpack.c.h.bf16 %v1816
        %v1819 = vlaneseq
        %v1820 = vand.u32 %v1819, 127
        %vm1822 = vcmp.lt.s32.totalorder %v1820, 147
        %v1823 = vsel %vm1822, %v1817, %v10
        %s1824 = scalar_lea.vmem [#allocation9], 344
        %v1825 = vpack.c.bf16 0.0, %v1823
        %s1827 = ssub.s32 16, 1
        %1828 = vst [vmem:[%s1824] sm:%s1827] %v1825
        %s1829 = scalar_lea.vmem %s216, 348
        %s1831 = sor.u32 255, 127
        %s1832 = sand.u32 %s1831, 85
        %s1833 = sshrl.u32 %s1832, 1
        %s1834 = sor.u32 %s1832, %s1833
        %s1835 = sand.u32 51, %s1834
        %s1836 = sshrl.u32 %s1835, 2
        %s1837 = sor.u32 %s1835, %s1836
        %s1838 = sand.u32 15, %s1837
        %v1839 = vld [vmem:[%s1829] sm:%s1838]
        %v1840 = vunpack.c.l.bf16 %v1839
        %v1841 = vunpack.c.h.bf16 %v1839
        %v1842 = vlaneseq
        %v1843 = vand.u32 %v1842, 127
        %v1844 = vadd.s32 %v1843, 128
        %vm1845 = vcmp.lt.s32.totalorder %v1844, 147
        %v1846 = vsel %vm1845, %v1840, %v10
        %s1847 = scalar_lea.vmem [#allocation9], 348
        %v1848 = vpack.c.bf16 0.0, %v1846
        %s1850 = ssub.s32 16, 1
        %1851 = vst [vmem:[%s1847] sm:%s1850] %v1848
        %s1852 = scalar_lea.vmem %s216, 352
        %v1853 = vld [vmem:[%s1852] sm:$0xf]
        %v1854 = vunpack.c.l.bf16 %v1853
        %v1855 = vunpack.c.h.bf16 %v1853
        %v1856 = vlaneseq
        %v1857 = vand.u32 %v1856, 127
        %vm1859 = vcmp.lt.s32.totalorder %v1857, 147
        %v1860 = vsel %vm1859, %v1854, %v10
        %s1861 = scalar_lea.vmem [#allocation9], 352
        %v1862 = vpack.c.bf16 0.0, %v1860
        %s1864 = ssub.s32 16, 1
        %1865 = vst [vmem:[%s1861] sm:%s1864] %v1862
        %s1866 = scalar_lea.vmem %s216, 356
        %s1868 = sor.u32 255, 127
        %s1869 = sand.u32 %s1868, 85
        %s1870 = sshrl.u32 %s1869, 1
        %s1871 = sor.u32 %s1869, %s1870
        %s1872 = sand.u32 51, %s1871
        %s1873 = sshrl.u32 %s1872, 2
        %s1874 = sor.u32 %s1872, %s1873
        %s1875 = sand.u32 15, %s1874
        %v1876 = vld [vmem:[%s1866] sm:%s1875]
        %v1877 = vunpack.c.l.bf16 %v1876
        %v1878 = vunpack.c.h.bf16 %v1876
        %v1879 = vlaneseq
        %v1880 = vand.u32 %v1879, 127
        %v1881 = vadd.s32 %v1880, 128
        %vm1882 = vcmp.lt.s32.totalorder %v1881, 147
        %v1883 = vsel %vm1882, %v1877, %v10
        %s1884 = scalar_lea.vmem [#allocation9], 356
        %v1885 = vpack.c.bf16 0.0, %v1883
        %s1887 = ssub.s32 16, 1
        %1888 = vst [vmem:[%s1884] sm:%s1887] %v1885
        %s1889 = scalar_lea.vmem %s216, 360
        %v1890 = vld [vmem:[%s1889] sm:$0xf]
        %v1891 = vunpack.c.l.bf16 %v1890
        %v1892 = vunpack.c.h.bf16 %v1890
        %v1893 = vlaneseq
        %v1894 = vand.u32 %v1893, 127
        %vm1896 = vcmp.lt.s32.totalorder %v1894, 147
        %v1897 = vsel %vm1896, %v1891, %v10
        %s1898 = scalar_lea.vmem [#allocation9], 360
        %v1899 = vpack.c.bf16 0.0, %v1897
        %s1901 = ssub.s32 16, 1
        %1902 = vst [vmem:[%s1898] sm:%s1901] %v1899
        %s1903 = scalar_lea.vmem %s216, 364
        %s1905 = sor.u32 255, 127
        %s1906 = sand.u32 %s1905, 85
        %s1907 = sshrl.u32 %s1906, 1
        %s1908 = sor.u32 %s1906, %s1907
        %s1909 = sand.u32 51, %s1908
        %s1910 = sshrl.u32 %s1909, 2
        %s1911 = sor.u32 %s1909, %s1910
        %s1912 = sand.u32 15, %s1911
        %v1913 = vld [vmem:[%s1903] sm:%s1912]
        %v1914 = vunpack.c.l.bf16 %v1913
        %v1915 = vunpack.c.h.bf16 %v1913
        %v1916 = vlaneseq
        %v1917 = vand.u32 %v1916, 127
        %v1918 = vadd.s32 %v1917, 128
        %vm1919 = vcmp.lt.s32.totalorder %v1918, 147
        %v1920 = vsel %vm1919, %v1914, %v10
        %s1921 = scalar_lea.vmem [#allocation9], 364
        %v1922 = vpack.c.bf16 0.0, %v1920
        %s1924 = ssub.s32 16, 1
        %1925 = vst [vmem:[%s1921] sm:%s1924] %v1922
        %s1926 = scalar_lea.vmem %s216, 368
        %v1927 = vld [vmem:[%s1926] sm:$0xf]
        %v1928 = vunpack.c.l.bf16 %v1927
        %v1929 = vunpack.c.h.bf16 %v1927
        %v1930 = vlaneseq
        %v1931 = vand.u32 %v1930, 127
        %vm1933 = vcmp.lt.s32.totalorder %v1931, 147
        %v1934 = vsel %vm1933, %v1928, %v10
        %s1935 = scalar_lea.vmem [#allocation9], 368
        %v1936 = vpack.c.bf16 0.0, %v1934
        %s1938 = ssub.s32 16, 1
        %1939 = vst [vmem:[%s1935] sm:%s1938] %v1936
        %s1940 = scalar_lea.vmem %s216, 372
        %s1942 = sor.u32 255, 127
        %s1943 = sand.u32 %s1942, 85
        %s1944 = sshrl.u32 %s1943, 1
        %s1945 = sor.u32 %s1943, %s1944
        %s1946 = sand.u32 51, %s1945
        %s1947 = sshrl.u32 %s1946, 2
        %s1948 = sor.u32 %s1946, %s1947
        %s1949 = sand.u32 15, %s1948
        %v1950 = vld [vmem:[%s1940] sm:%s1949]
        %v1951 = vunpack.c.l.bf16 %v1950
        %v1952 = vunpack.c.h.bf16 %v1950
        %v1953 = vlaneseq
        %v1954 = vand.u32 %v1953, 127
        %v1955 = vadd.s32 %v1954, 128
        %vm1956 = vcmp.lt.s32.totalorder %v1955, 147
        %v1957 = vsel %vm1956, %v1951, %v10
        %s1958 = scalar_lea.vmem [#allocation9], 372
        %v1959 = vpack.c.bf16 0.0, %v1957
        %s1961 = ssub.s32 16, 1
        %1962 = vst [vmem:[%s1958] sm:%s1961] %v1959
        %s1963 = scalar_lea.vmem %s216, 376
        %v1964 = vld [vmem:[%s1963] sm:$0xf]
        %v1965 = vunpack.c.l.bf16 %v1964
        %v1966 = vunpack.c.h.bf16 %v1964
        %v1967 = vlaneseq
        %v1968 = vand.u32 %v1967, 127
        %vm1970 = vcmp.lt.s32.totalorder %v1968, 147
        %v1971 = vsel %vm1970, %v1965, %v10
        %s1972 = scalar_lea.vmem [#allocation9], 376
        %v1973 = vpack.c.bf16 0.0, %v1971
        %s1975 = ssub.s32 16, 1
        %1976 = vst [vmem:[%s1972] sm:%s1975] %v1973
        %s1977 = scalar_lea.vmem %s216, 380
        %s1979 = sor.u32 255, 127
        %s1980 = sand.u32 %s1979, 85
        %s1981 = sshrl.u32 %s1980, 1
        %s1982 = sor.u32 %s1980, %s1981
        %s1983 = sand.u32 51, %s1982
        %s1984 = sshrl.u32 %s1983, 2
        %s1985 = sor.u32 %s1983, %s1984
        %s1986 = sand.u32 15, %s1985
        %v1987 = vld [vmem:[%s1977] sm:%s1986]
        %v1988 = vunpack.c.l.bf16 %v1987
        %v1989 = vunpack.c.h.bf16 %v1987
        %v1990 = vlaneseq
        %v1991 = vand.u32 %v1990, 127
        %v1992 = vadd.s32 %v1991, 128
        %vm1993 = vcmp.lt.s32.totalorder %v1992, 147
        %v1994 = vsel %vm1993, %v1988, %v10
        %s1995 = scalar_lea.vmem [#allocation9], 380
        %v1996 = vpack.c.bf16 0.0, %v1994
        %s1998 = ssub.s32 16, 1
        %1999 = vst [vmem:[%s1995] sm:%s1998] %v1996
        %s2000 = scalar_lea.vmem %s216, 384
        %v2001 = vld [vmem:[%s2000] sm:$0xf]
        %v2002 = vunpack.c.l.bf16 %v2001
        %v2003 = vunpack.c.h.bf16 %v2001
        %v2004 = vlaneseq
        %v2005 = vand.u32 %v2004, 127
        %vm2007 = vcmp.lt.s32.totalorder %v2005, 147
        %v2008 = vsel %vm2007, %v2002, %v10
        %s2009 = scalar_lea.vmem [#allocation9], 384
        %v2010 = vpack.c.bf16 0.0, %v2008
        %s2012 = ssub.s32 16, 1
        %2013 = vst [vmem:[%s2009] sm:%s2012] %v2010
        %s2014 = scalar_lea.vmem %s216, 388
        %s2016 = sor.u32 255, 127
        %s2017 = sand.u32 %s2016, 85
        %s2018 = sshrl.u32 %s2017, 1
        %s2019 = sor.u32 %s2017, %s2018
        %s2020 = sand.u32 51, %s2019
        %s2021 = sshrl.u32 %s2020, 2
        %s2022 = sor.u32 %s2020, %s2021
        %s2023 = sand.u32 15, %s2022
        %v2024 = vld [vmem:[%s2014] sm:%s2023]
        %v2025 = vunpack.c.l.bf16 %v2024
        %v2026 = vunpack.c.h.bf16 %v2024
        %v2027 = vlaneseq
        %v2028 = vand.u32 %v2027, 127
        %v2029 = vadd.s32 %v2028, 128
        %vm2030 = vcmp.lt.s32.totalorder %v2029, 147
        %v2031 = vsel %vm2030, %v2025, %v10
        %s2032 = scalar_lea.vmem [#allocation9], 388
        %v2033 = vpack.c.bf16 0.0, %v2031
        %s2035 = ssub.s32 16, 1
        %2036 = vst [vmem:[%s2032] sm:%s2035] %v2033
        %s2037 = scalar_lea.vmem %s216, 392
        %v2038 = vld [vmem:[%s2037] sm:$0xf]
        %v2039 = vunpack.c.l.bf16 %v2038
        %v2040 = vunpack.c.h.bf16 %v2038
        %v2041 = vlaneseq
        %v2042 = vand.u32 %v2041, 127
        %vm2044 = vcmp.lt.s32.totalorder %v2042, 147
        %v2045 = vsel %vm2044, %v2039, %v10
        %s2046 = scalar_lea.vmem [#allocation9], 392
        %v2047 = vpack.c.bf16 0.0, %v2045
        %s2049 = ssub.s32 16, 1
        %2050 = vst [vmem:[%s2046] sm:%s2049] %v2047
        %s2051 = scalar_lea.vmem %s216, 396
        %s2053 = sor.u32 255, 127
        %s2054 = sand.u32 %s2053, 85
        %s2055 = sshrl.u32 %s2054, 1
        %s2056 = sor.u32 %s2054, %s2055
        %s2057 = sand.u32 51, %s2056
        %s2058 = sshrl.u32 %s2057, 2
        %s2059 = sor.u32 %s2057, %s2058
        %s2060 = sand.u32 15, %s2059
        %v2061 = vld [vmem:[%s2051] sm:%s2060]
        %v2062 = vunpack.c.l.bf16 %v2061
        %v2063 = vunpack.c.h.bf16 %v2061
        %v2064 = vlaneseq
        %v2065 = vand.u32 %v2064, 127
        %v2066 = vadd.s32 %v2065, 128
        %vm2067 = vcmp.lt.s32.totalorder %v2066, 147
        %v2068 = vsel %vm2067, %v2062, %v10
        %s2069 = scalar_lea.vmem [#allocation9], 396
        %v2070 = vpack.c.bf16 0.0, %v2068
        %s2072 = ssub.s32 16, 1
        %2073 = vst [vmem:[%s2069] sm:%s2072] %v2070
        %s2074 = scalar_lea.vmem %s216, 400
        %v2075 = vld [vmem:[%s2074] sm:$0xf]
        %v2076 = vunpack.c.l.bf16 %v2075
        %v2077 = vunpack.c.h.bf16 %v2075
        %v2078 = vlaneseq
        %v2079 = vand.u32 %v2078, 127
        %vm2081 = vcmp.lt.s32.totalorder %v2079, 147
        %v2082 = vsel %vm2081, %v2076, %v10
        %s2083 = scalar_lea.vmem [#allocation9], 400
        %v2084 = vpack.c.bf16 0.0, %v2082
        %s2086 = ssub.s32 16, 1
        %2087 = vst [vmem:[%s2083] sm:%s2086] %v2084
        %s2088 = scalar_lea.vmem %s216, 404
        %s2090 = sor.u32 255, 127
        %s2091 = sand.u32 %s2090, 85
        %s2092 = sshrl.u32 %s2091, 1
        %s2093 = sor.u32 %s2091, %s2092
        %s2094 = sand.u32 51, %s2093
        %s2095 = sshrl.u32 %s2094, 2
        %s2096 = sor.u32 %s2094, %s2095
        %s2097 = sand.u32 15, %s2096
        %v2098 = vld [vmem:[%s2088] sm:%s2097]
        %v2099 = vunpack.c.l.bf16 %v2098
        %v2100 = vunpack.c.h.bf16 %v2098
        %v2101 = vlaneseq
        %v2102 = vand.u32 %v2101, 127
        %v2103 = vadd.s32 %v2102, 128
        %vm2104 = vcmp.lt.s32.totalorder %v2103, 147
        %v2105 = vsel %vm2104, %v2099, %v10
        %s2106 = scalar_lea.vmem [#allocation9], 404
        %v2107 = vpack.c.bf16 0.0, %v2105
        %s2109 = ssub.s32 16, 1
        %2110 = vst [vmem:[%s2106] sm:%s2109] %v2107
        %s2111 = scalar_lea.vmem %s216, 408
        %v2112 = vld [vmem:[%s2111] sm:$0xf]
        %v2113 = vunpack.c.l.bf16 %v2112
        %v2114 = vunpack.c.h.bf16 %v2112
        %v2115 = vlaneseq
        %v2116 = vand.u32 %v2115, 127
        %vm2118 = vcmp.lt.s32.totalorder %v2116, 147
        %v2119 = vsel %vm2118, %v2113, %v10
        %s2120 = scalar_lea.vmem [#allocation9], 408
        %v2121 = vpack.c.bf16 0.0, %v2119
        %s2123 = ssub.s32 16, 1
        %2124 = vst [vmem:[%s2120] sm:%s2123] %v2121
        %s2125 = scalar_lea.vmem %s216, 412
        %s2127 = sor.u32 255, 127
        %s2128 = sand.u32 %s2127, 85
        %s2129 = sshrl.u32 %s2128, 1
        %s2130 = sor.u32 %s2128, %s2129
        %s2131 = sand.u32 51, %s2130
        %s2132 = sshrl.u32 %s2131, 2
        %s2133 = sor.u32 %s2131, %s2132
        %s2134 = sand.u32 15, %s2133
        %v2135 = vld [vmem:[%s2125] sm:%s2134]
        %v2136 = vunpack.c.l.bf16 %v2135
        %v2137 = vunpack.c.h.bf16 %v2135
        %v2138 = vlaneseq
        %v2139 = vand.u32 %v2138, 127
        %v2140 = vadd.s32 %v2139, 128
        %vm2141 = vcmp.lt.s32.totalorder %v2140, 147
        %v2142 = vsel %vm2141, %v2136, %v10
        %s2143 = scalar_lea.vmem [#allocation9], 412
        %v2144 = vpack.c.bf16 0.0, %v2142
        %s2146 = ssub.s32 16, 1
        %2147 = vst [vmem:[%s2143] sm:%s2146] %v2144
        %s2148 = scalar_lea.vmem %s216, 416
        %v2149 = vld [vmem:[%s2148] sm:$0xf]
        %v2150 = vunpack.c.l.bf16 %v2149
        %v2151 = vunpack.c.h.bf16 %v2149
        %v2152 = vlaneseq
        %v2153 = vand.u32 %v2152, 127
        %vm2155 = vcmp.lt.s32.totalorder %v2153, 147
        %v2156 = vsel %vm2155, %v2150, %v10
        %s2157 = scalar_lea.vmem [#allocation9], 416
        %v2158 = vpack.c.bf16 0.0, %v2156
        %s2160 = ssub.s32 16, 1
        %2161 = vst [vmem:[%s2157] sm:%s2160] %v2158
        %s2162 = scalar_lea.vmem %s216, 420
        %s2164 = sor.u32 255, 127
        %s2165 = sand.u32 %s2164, 85
        %s2166 = sshrl.u32 %s2165, 1
        %s2167 = sor.u32 %s2165, %s2166
        %s2168 = sand.u32 51, %s2167
        %s2169 = sshrl.u32 %s2168, 2
        %s2170 = sor.u32 %s2168, %s2169
        %s2171 = sand.u32 15, %s2170
        %v2172 = vld [vmem:[%s2162] sm:%s2171]
        %v2173 = vunpack.c.l.bf16 %v2172
        %v2174 = vunpack.c.h.bf16 %v2172
        %v2175 = vlaneseq
        %v2176 = vand.u32 %v2175, 127
        %v2177 = vadd.s32 %v2176, 128
        %vm2178 = vcmp.lt.s32.totalorder %v2177, 147
        %v2179 = vsel %vm2178, %v2173, %v10
        %s2180 = scalar_lea.vmem [#allocation9], 420
        %v2181 = vpack.c.bf16 0.0, %v2179
        %s2183 = ssub.s32 16, 1
        %2184 = vst [vmem:[%s2180] sm:%s2183] %v2181
        %s2185 = scalar_lea.vmem %s216, 424
        %v2186 = vld [vmem:[%s2185] sm:$0xf]
        %v2187 = vunpack.c.l.bf16 %v2186
        %v2188 = vunpack.c.h.bf16 %v2186
        %v2189 = vlaneseq
        %v2190 = vand.u32 %v2189, 127
        %vm2192 = vcmp.lt.s32.totalorder %v2190, 147
        %v2193 = vsel %vm2192, %v2187, %v10
        %s2194 = scalar_lea.vmem [#allocation9], 424
        %v2195 = vpack.c.bf16 0.0, %v2193
        %s2197 = ssub.s32 16, 1
        %2198 = vst [vmem:[%s2194] sm:%s2197] %v2195
        %s2199 = scalar_lea.vmem %s216, 428
        %s2201 = sor.u32 255, 127
        %s2202 = sand.u32 %s2201, 85
        %s2203 = sshrl.u32 %s2202, 1
        %s2204 = sor.u32 %s2202, %s2203
        %s2205 = sand.u32 51, %s2204
        %s2206 = sshrl.u32 %s2205, 2
        %s2207 = sor.u32 %s2205, %s2206
        %s2208 = sand.u32 15, %s2207
        %v2209 = vld [vmem:[%s2199] sm:%s2208]
        %v2210 = vunpack.c.l.bf16 %v2209
        %v2211 = vunpack.c.h.bf16 %v2209
        %v2212 = vlaneseq
        %v2213 = vand.u32 %v2212, 127
        %v2214 = vadd.s32 %v2213, 128
        %vm2215 = vcmp.lt.s32.totalorder %v2214, 147
        %v2216 = vsel %vm2215, %v2210, %v10
        %s2217 = scalar_lea.vmem [#allocation9], 428
        %v2218 = vpack.c.bf16 0.0, %v2216
        %s2220 = ssub.s32 16, 1
        %2221 = vst [vmem:[%s2217] sm:%s2220] %v2218
        %s2222 = scalar_lea.vmem %s216, 432
        %v2223 = vld [vmem:[%s2222] sm:$0xf]
        %v2224 = vunpack.c.l.bf16 %v2223
        %v2225 = vunpack.c.h.bf16 %v2223
        %v2226 = vlaneseq
        %v2227 = vand.u32 %v2226, 127
        %vm2229 = vcmp.lt.s32.totalorder %v2227, 147
        %v2230 = vsel %vm2229, %v2224, %v10
        %s2231 = scalar_lea.vmem [#allocation9], 432
        %v2232 = vpack.c.bf16 0.0, %v2230
        %s2234 = ssub.s32 16, 1
        %2235 = vst [vmem:[%s2231] sm:%s2234] %v2232
        %s2236 = scalar_lea.vmem %s216, 436
        %s2238 = sor.u32 255, 127
        %s2239 = sand.u32 %s2238, 85
        %s2240 = sshrl.u32 %s2239, 1
        %s2241 = sor.u32 %s2239, %s2240
        %s2242 = sand.u32 51, %s2241
        %s2243 = sshrl.u32 %s2242, 2
        %s2244 = sor.u32 %s2242, %s2243
        %s2245 = sand.u32 15, %s2244
        %v2246 = vld [vmem:[%s2236] sm:%s2245]
        %v2247 = vunpack.c.l.bf16 %v2246
        %v2248 = vunpack.c.h.bf16 %v2246
        %v2249 = vlaneseq
        %v2250 = vand.u32 %v2249, 127
        %v2251 = vadd.s32 %v2250, 128
        %vm2252 = vcmp.lt.s32.totalorder %v2251, 147
        %v2253 = vsel %vm2252, %v2247, %v10
        %s2254 = scalar_lea.vmem [#allocation9], 436
        %v2255 = vpack.c.bf16 0.0, %v2253
        %s2257 = ssub.s32 16, 1
        %2258 = vst [vmem:[%s2254] sm:%s2257] %v2255
        %s2259 = scalar_lea.vmem %s216, 440
        %v2260 = vld [vmem:[%s2259] sm:$0xf]
        %v2261 = vunpack.c.l.bf16 %v2260
        %v2262 = vunpack.c.h.bf16 %v2260
        %v2263 = vlaneseq
        %v2264 = vand.u32 %v2263, 127
        %vm2266 = vcmp.lt.s32.totalorder %v2264, 147
        %v2267 = vsel %vm2266, %v2261, %v10
        %s2268 = scalar_lea.vmem [#allocation9], 440
        %v2269 = vpack.c.bf16 0.0, %v2267
        %s2271 = ssub.s32 16, 1
        %2272 = vst [vmem:[%s2268] sm:%s2271] %v2269
        %s2273 = scalar_lea.vmem %s216, 444
        %s2275 = sor.u32 255, 127
        %s2276 = sand.u32 %s2275, 85
        %s2277 = sshrl.u32 %s2276, 1
        %s2278 = sor.u32 %s2276, %s2277
        %s2279 = sand.u32 51, %s2278
        %s2280 = sshrl.u32 %s2279, 2
        %s2281 = sor.u32 %s2279, %s2280
        %s2282 = sand.u32 15, %s2281
        %v2283 = vld [vmem:[%s2273] sm:%s2282]
        %v2284 = vunpack.c.l.bf16 %v2283
        %v2285 = vunpack.c.h.bf16 %v2283
        %v2286 = vlaneseq
        %v2287 = vand.u32 %v2286, 127
        %v2288 = vadd.s32 %v2287, 128
        %vm2289 = vcmp.lt.s32.totalorder %v2288, 147
        %v2290 = vsel %vm2289, %v2284, %v10
        %s2291 = scalar_lea.vmem [#allocation9], 444
        %v2292 = vpack.c.bf16 0.0, %v2290
        %s2294 = ssub.s32 16, 1
        %2295 = vst [vmem:[%s2291] sm:%s2294] %v2292
        %s2296 = scalar_lea.vmem %s216, 448
        %v2297 = vld [vmem:[%s2296] sm:$0xf]
        %v2298 = vunpack.c.l.bf16 %v2297
        %v2299 = vunpack.c.h.bf16 %v2297
        %v2300 = vlaneseq
        %v2301 = vand.u32 %v2300, 127
        %vm2303 = vcmp.lt.s32.totalorder %v2301, 147
        %v2304 = vsel %vm2303, %v2298, %v10
        %s2305 = scalar_lea.vmem [#allocation9], 448
        %v2306 = vpack.c.bf16 0.0, %v2304
        %s2308 = ssub.s32 16, 1
        %2309 = vst [vmem:[%s2305] sm:%s2308] %v2306
        %s2310 = scalar_lea.vmem %s216, 452
        %s2312 = sor.u32 255, 127
        %s2313 = sand.u32 %s2312, 85
        %s2314 = sshrl.u32 %s2313, 1
        %s2315 = sor.u32 %s2313, %s2314
        %s2316 = sand.u32 51, %s2315
        %s2317 = sshrl.u32 %s2316, 2
        %s2318 = sor.u32 %s2316, %s2317
        %s2319 = sand.u32 15, %s2318
        %v2320 = vld [vmem:[%s2310] sm:%s2319]
        %v2321 = vunpack.c.l.bf16 %v2320
        %v2322 = vunpack.c.h.bf16 %v2320
        %v2323 = vlaneseq
        %v2324 = vand.u32 %v2323, 127
        %v2325 = vadd.s32 %v2324, 128
        %vm2326 = vcmp.lt.s32.totalorder %v2325, 147
        %v2327 = vsel %vm2326, %v2321, %v10
        %s2328 = scalar_lea.vmem [#allocation9], 452
        %v2329 = vpack.c.bf16 0.0, %v2327
        %s2331 = ssub.s32 16, 1
        %2332 = vst [vmem:[%s2328] sm:%s2331] %v2329
        %s2333 = scalar_lea.vmem %s216, 456
        %v2334 = vld [vmem:[%s2333] sm:$0xf]
        %v2335 = vunpack.c.l.bf16 %v2334
        %v2336 = vunpack.c.h.bf16 %v2334
        %v2337 = vlaneseq
        %v2338 = vand.u32 %v2337, 127
        %vm2340 = vcmp.lt.s32.totalorder %v2338, 147
        %v2341 = vsel %vm2340, %v2335, %v10
        %s2342 = scalar_lea.vmem [#allocation9], 456
        %v2343 = vpack.c.bf16 0.0, %v2341
        %s2345 = ssub.s32 16, 1
        %2346 = vst [vmem:[%s2342] sm:%s2345] %v2343
        %s2347 = scalar_lea.vmem %s216, 460
        %s2349 = sor.u32 255, 127
        %s2350 = sand.u32 %s2349, 85
        %s2351 = sshrl.u32 %s2350, 1
        %s2352 = sor.u32 %s2350, %s2351
        %s2353 = sand.u32 51, %s2352
        %s2354 = sshrl.u32 %s2353, 2
        %s2355 = sor.u32 %s2353, %s2354
        %s2356 = sand.u32 15, %s2355
        %v2357 = vld [vmem:[%s2347] sm:%s2356]
        %v2358 = vunpack.c.l.bf16 %v2357
        %v2359 = vunpack.c.h.bf16 %v2357
        %v2360 = vlaneseq
        %v2361 = vand.u32 %v2360, 127
        %v2362 = vadd.s32 %v2361, 128
        %vm2363 = vcmp.lt.s32.totalorder %v2362, 147
        %v2364 = vsel %vm2363, %v2358, %v10
        %s2365 = scalar_lea.vmem [#allocation9], 460
        %v2366 = vpack.c.bf16 0.0, %v2364
        %s2368 = ssub.s32 16, 1
        %2369 = vst [vmem:[%s2365] sm:%s2368] %v2366
        %s2370 = scalar_lea.vmem %s216, 464
        %v2371 = vld [vmem:[%s2370] sm:$0xf]
        %v2372 = vunpack.c.l.bf16 %v2371
        %v2373 = vunpack.c.h.bf16 %v2371
        %v2374 = vlaneseq
        %v2375 = vand.u32 %v2374, 127
        %vm2377 = vcmp.lt.s32.totalorder %v2375, 147
        %v2378 = vsel %vm2377, %v2372, %v10
        %s2379 = scalar_lea.vmem [#allocation9], 464
        %v2380 = vpack.c.bf16 0.0, %v2378
        %s2382 = ssub.s32 16, 1
        %2383 = vst [vmem:[%s2379] sm:%s2382] %v2380
        %s2384 = scalar_lea.vmem %s216, 468
        %s2386 = sor.u32 255, 127
        %s2387 = sand.u32 %s2386, 85
        %s2388 = sshrl.u32 %s2387, 1
        %s2389 = sor.u32 %s2387, %s2388
        %s2390 = sand.u32 51, %s2389
        %s2391 = sshrl.u32 %s2390, 2
        %s2392 = sor.u32 %s2390, %s2391
        %s2393 = sand.u32 15, %s2392
        %v2394 = vld [vmem:[%s2384] sm:%s2393]
        %v2395 = vunpack.c.l.bf16 %v2394
        %v2396 = vunpack.c.h.bf16 %v2394
        %v2397 = vlaneseq
        %v2398 = vand.u32 %v2397, 127
        %v2399 = vadd.s32 %v2398, 128
        %vm2400 = vcmp.lt.s32.totalorder %v2399, 147
        %v2401 = vsel %vm2400, %v2395, %v10
        %s2402 = scalar_lea.vmem [#allocation9], 468
        %v2403 = vpack.c.bf16 0.0, %v2401
        %s2405 = ssub.s32 16, 1
        %2406 = vst [vmem:[%s2402] sm:%s2405] %v2403
        %s2407 = scalar_lea.vmem %s216, 472
        %v2408 = vld [vmem:[%s2407] sm:$0xf]
        %v2409 = vunpack.c.l.bf16 %v2408
        %v2410 = vunpack.c.h.bf16 %v2408
        %v2411 = vlaneseq
        %v2412 = vand.u32 %v2411, 127
        %vm2414 = vcmp.lt.s32.totalorder %v2412, 147
        %v2415 = vsel %vm2414, %v2409, %v10
        %s2416 = scalar_lea.vmem [#allocation9], 472
        %v2417 = vpack.c.bf16 0.0, %v2415
        %s2419 = ssub.s32 16, 1
        %2420 = vst [vmem:[%s2416] sm:%s2419] %v2417
        %s2421 = scalar_lea.vmem %s216, 476
        %s2423 = sor.u32 255, 127
        %s2424 = sand.u32 %s2423, 85
        %s2425 = sshrl.u32 %s2424, 1
        %s2426 = sor.u32 %s2424, %s2425
        %s2427 = sand.u32 51, %s2426
        %s2428 = sshrl.u32 %s2427, 2
        %s2429 = sor.u32 %s2427, %s2428
        %s2430 = sand.u32 15, %s2429
        %v2431 = vld [vmem:[%s2421] sm:%s2430]
        %v2432 = vunpack.c.l.bf16 %v2431
        %v2433 = vunpack.c.h.bf16 %v2431
        %v2434 = vlaneseq
        %v2435 = vand.u32 %v2434, 127
        %v2436 = vadd.s32 %v2435, 128
        %vm2437 = vcmp.lt.s32.totalorder %v2436, 147
        %v2438 = vsel %vm2437, %v2432, %v10
        %s2439 = scalar_lea.vmem [#allocation9], 476
        %v2440 = vpack.c.bf16 0.0, %v2438
        %s2442 = ssub.s32 16, 1
        %2443 = vst [vmem:[%s2439] sm:%s2442] %v2440
        %s2444 = scalar_lea.vmem %s216, 480
        %v2445 = vld [vmem:[%s2444] sm:$0xf]
        %v2446 = vunpack.c.l.bf16 %v2445
        %v2447 = vunpack.c.h.bf16 %v2445
        %v2448 = vlaneseq
        %v2449 = vand.u32 %v2448, 127
        %vm2451 = vcmp.lt.s32.totalorder %v2449, 147
        %v2452 = vsel %vm2451, %v2446, %v10
        %s2453 = scalar_lea.vmem [#allocation9], 480
        %v2454 = vpack.c.bf16 0.0, %v2452
        %s2456 = ssub.s32 16, 1
        %2457 = vst [vmem:[%s2453] sm:%s2456] %v2454
        %s2458 = scalar_lea.vmem %s216, 484
        %s2460 = sor.u32 255, 127
        %s2461 = sand.u32 %s2460, 85
        %s2462 = sshrl.u32 %s2461, 1
        %s2463 = sor.u32 %s2461, %s2462
        %s2464 = sand.u32 51, %s2463
        %s2465 = sshrl.u32 %s2464, 2
        %s2466 = sor.u32 %s2464, %s2465
        %s2467 = sand.u32 15, %s2466
        %v2468 = vld [vmem:[%s2458] sm:%s2467]
        %v2469 = vunpack.c.l.bf16 %v2468
        %v2470 = vunpack.c.h.bf16 %v2468
        %v2471 = vlaneseq
        %v2472 = vand.u32 %v2471, 127
        %v2473 = vadd.s32 %v2472, 128
        %vm2474 = vcmp.lt.s32.totalorder %v2473, 147
        %v2475 = vsel %vm2474, %v2469, %v10
        %s2476 = scalar_lea.vmem [#allocation9], 484
        %v2477 = vpack.c.bf16 0.0, %v2475
        %s2479 = ssub.s32 16, 1
        %2480 = vst [vmem:[%s2476] sm:%s2479] %v2477
        %s2481 = scalar_lea.vmem %s216, 488
        %v2482 = vld [vmem:[%s2481] sm:$0xf]
        %v2483 = vunpack.c.l.bf16 %v2482
        %v2484 = vunpack.c.h.bf16 %v2482
        %v2485 = vlaneseq
        %v2486 = vand.u32 %v2485, 127
        %vm2488 = vcmp.lt.s32.totalorder %v2486, 147
        %v2489 = vsel %vm2488, %v2483, %v10
        %s2490 = scalar_lea.vmem [#allocation9], 488
        %v2491 = vpack.c.bf16 0.0, %v2489
        %s2493 = ssub.s32 16, 1
        %2494 = vst [vmem:[%s2490] sm:%s2493] %v2491
        %s2495 = scalar_lea.vmem %s216, 492
        %s2497 = sor.u32 255, 127
        %s2498 = sand.u32 %s2497, 85
        %s2499 = sshrl.u32 %s2498, 1
        %s2500 = sor.u32 %s2498, %s2499
        %s2501 = sand.u32 51, %s2500
        %s2502 = sshrl.u32 %s2501, 2
        %s2503 = sor.u32 %s2501, %s2502
        %s2504 = sand.u32 15, %s2503
        %v2505 = vld [vmem:[%s2495] sm:%s2504]
        %v2506 = vunpack.c.l.bf16 %v2505
        %v2507 = vunpack.c.h.bf16 %v2505
        %v2508 = vlaneseq
        %v2509 = vand.u32 %v2508, 127
        %v2510 = vadd.s32 %v2509, 128
        %vm2511 = vcmp.lt.s32.totalorder %v2510, 147
        %v2512 = vsel %vm2511, %v2506, %v10
        %s2513 = scalar_lea.vmem [#allocation9], 492
        %v2514 = vpack.c.bf16 0.0, %v2512
        %s2516 = ssub.s32 16, 1
        %2517 = vst [vmem:[%s2513] sm:%s2516] %v2514
        %s2518 = scalar_lea.vmem %s216, 496
        %v2519 = vld [vmem:[%s2518] sm:$0xf]
        %v2520 = vunpack.c.l.bf16 %v2519
        %v2521 = vunpack.c.h.bf16 %v2519
        %v2522 = vlaneseq
        %v2523 = vand.u32 %v2522, 127
        %vm2525 = vcmp.lt.s32.totalorder %v2523, 147
        %v2526 = vsel %vm2525, %v2520, %v10
        %s2527 = scalar_lea.vmem [#allocation9], 496
        %v2528 = vpack.c.bf16 0.0, %v2526
        %s2530 = ssub.s32 16, 1
        %2531 = vst [vmem:[%s2527] sm:%s2530] %v2528
        %s2532 = scalar_lea.vmem %s216, 500
        %s2534 = sor.u32 255, 127
        %s2535 = sand.u32 %s2534, 85
        %s2536 = sshrl.u32 %s2535, 1
        %s2537 = sor.u32 %s2535, %s2536
        %s2538 = sand.u32 51, %s2537
        %s2539 = sshrl.u32 %s2538, 2
        %s2540 = sor.u32 %s2538, %s2539
        %s2541 = sand.u32 15, %s2540
        %v2542 = vld [vmem:[%s2532] sm:%s2541]
        %v2543 = vunpack.c.l.bf16 %v2542
        %v2544 = vunpack.c.h.bf16 %v2542
        %v2545 = vlaneseq
        %v2546 = vand.u32 %v2545, 127
        %v2547 = vadd.s32 %v2546, 128
        %vm2548 = vcmp.lt.s32.totalorder %v2547, 147
        %v2549 = vsel %vm2548, %v2543, %v10
        %s2550 = scalar_lea.vmem [#allocation9], 500
        %v2551 = vpack.c.bf16 0.0, %v2549
        %s2553 = ssub.s32 16, 1
        %2554 = vst [vmem:[%s2550] sm:%s2553] %v2551
        %s2555 = scalar_lea.vmem %s216, 504
        %v2556 = vld [vmem:[%s2555] sm:$0xf]
        %v2557 = vunpack.c.l.bf16 %v2556
        %v2558 = vunpack.c.h.bf16 %v2556
        %v2559 = vlaneseq
        %v2560 = vand.u32 %v2559, 127
        %vm2562 = vcmp.lt.s32.totalorder %v2560, 147
        %v2563 = vsel %vm2562, %v2557, %v10
        %s2564 = scalar_lea.vmem [#allocation9], 504
        %v2565 = vpack.c.bf16 0.0, %v2563
        %s2567 = ssub.s32 16, 1
        %2568 = vst [vmem:[%s2564] sm:%s2567] %v2565
        %s2569 = scalar_lea.vmem %s216, 508
        %s2571 = sor.u32 255, 127
        %s2572 = sand.u32 %s2571, 85
        %s2573 = sshrl.u32 %s2572, 1
        %s2574 = sor.u32 %s2572, %s2573
        %s2575 = sand.u32 51, %s2574
        %s2576 = sshrl.u32 %s2575, 2
        %s2577 = sor.u32 %s2575, %s2576
        %s2578 = sand.u32 15, %s2577
        %v2579 = vld [vmem:[%s2569] sm:%s2578]
        %v2580 = vunpack.c.l.bf16 %v2579
        %v2581 = vunpack.c.h.bf16 %v2579
        %v2582 = vlaneseq
        %v2583 = vand.u32 %v2582, 127
        %v2584 = vadd.s32 %v2583, 128
        %vm2585 = vcmp.lt.s32.totalorder %v2584, 147
        %v2586 = vsel %vm2585, %v2580, %v10
        %s2587 = scalar_lea.vmem [#allocation9], 508
        %v2588 = vpack.c.bf16 0.0, %v2586
        %s2590 = ssub.s32 16, 1
        %2591 = vst [vmem:[%s2587] sm:%s2590] %v2588
        %v2593 = vld [vmem:[#allocation9] sm:$0xff]
        %v2594 = vld [vmem:[#allocation9 + $0x8] sm:$0xff]
        %v2595 = vld [vmem:[#allocation9 + $0x10] sm:$0xff]
        %v2596 = vld [vmem:[#allocation9 + $0x18] sm:$0xff]
        %v2597 = vld [vmem:[#allocation9 + $0x20] sm:$0xff]
        %v2598 = vld [vmem:[#allocation9 + $0x28] sm:$0xff]
        %v2599 = vld [vmem:[#allocation9 + $0x30] sm:$0xff]
        %v2600 = vld [vmem:[#allocation9 + $0x38] sm:$0xff]
        %v2601 = vld [vmem:[#allocation9 + $0x40] sm:$0xff]
        %v2602 = vld [vmem:[#allocation9 + $0x48] sm:$0xff]
        %v2603 = vld [vmem:[#allocation9 + $0x50] sm:$0xff]
        %v2604 = vld [vmem:[#allocation9 + $0x58] sm:$0xff]
        %v2605 = vld [vmem:[#allocation9 + $0x60] sm:$0xff]
        %v2606 = vld [vmem:[#allocation9 + $0x68] sm:$0xff]
        %v2607 = vld [vmem:[#allocation9 + $0x70] sm:$0xff]
        %v2608 = vld [vmem:[#allocation9 + $0x78] sm:$0xff]
        %v2609 = vld [vmem:[#allocation9 + $0x80] sm:$0xff]
        %v2610 = vld [vmem:[#allocation9 + $0x88] sm:$0xff]
        %v2611 = vld [vmem:[#allocation9 + $0x90] sm:$0xff]
        %v2612 = vld [vmem:[#allocation9 + $0x98] sm:$0xff]
        %v2613 = vld [vmem:[#allocation9 + $0xa0] sm:$0xff]
        %v2614 = vld [vmem:[#allocation9 + $0xa8] sm:$0xff]
        %v2615 = vld [vmem:[#allocation9 + $0xb0] sm:$0xff]
        %v2616 = vld [vmem:[#allocation9 + $0xb8] sm:$0xff]
        %v2617 = vld [vmem:[#allocation9 + $0xc0] sm:$0xff]
        %v2618 = vld [vmem:[#allocation9 + $0xc8] sm:$0xff]
        %v2619 = vld [vmem:[#allocation9 + $0xd0] sm:$0xff]
        %v2620 = vld [vmem:[#allocation9 + $0xd8] sm:$0xff]
        %v2621 = vld [vmem:[#allocation9 + $0xe0] sm:$0xff]
        %v2622 = vld [vmem:[#allocation9 + $0xe8] sm:$0xff]
        %v2623 = vld [vmem:[#allocation9 + $0xf0] sm:$0xff]
        %v2624 = vld [vmem:[#allocation9 + $0xf8] sm:$0xff]
        %v2625 = vld [vmem:[#allocation9 + $0x100] sm:$0xff]
        %v2626 = vld [vmem:[#allocation9 + $0x108] sm:$0xff]
        %v2627 = vld [vmem:[#allocation9 + $0x110] sm:$0xff]
        %v2628 = vld [vmem:[#allocation9 + $0x118] sm:$0xff]
        %v2629 = vld [vmem:[#allocation9 + $0x120] sm:$0xff]
        %v2630 = vld [vmem:[#allocation9 + $0x128] sm:$0xff]
        %v2631 = vld [vmem:[#allocation9 + $0x130] sm:$0xff]
        %v2632 = vld [vmem:[#allocation9 + $0x138] sm:$0xff]
        %v2633 = vld [vmem:[#allocation9 + $0x140] sm:$0xff]
        %v2634 = vld [vmem:[#allocation9 + $0x148] sm:$0xff]
        %v2635 = vld [vmem:[#allocation9 + $0x150] sm:$0xff]
        %v2636 = vld [vmem:[#allocation9 + $0x158] sm:$0xff]
        %v2637 = vld [vmem:[#allocation9 + $0x160] sm:$0xff]
        %v2638 = vld [vmem:[#allocation9 + $0x168] sm:$0xff]
        %v2639 = vld [vmem:[#allocation9 + $0x170] sm:$0xff]
        %v2640 = vld [vmem:[#allocation9 + $0x178] sm:$0xff]
        %v2641 = vld [vmem:[#allocation9 + $0x180] sm:$0xff]
        %v2642 = vld [vmem:[#allocation9 + $0x188] sm:$0xff]
        %v2643 = vld [vmem:[#allocation9 + $0x190] sm:$0xff]
        %v2644 = vld [vmem:[#allocation9 + $0x198] sm:$0xff]
        %v2645 = vld [vmem:[#allocation9 + $0x1a0] sm:$0xff]
        %v2646 = vld [vmem:[#allocation9 + $0x1a8] sm:$0xff]
        %v2647 = vld [vmem:[#allocation9 + $0x1b0] sm:$0xff]
        %v2648 = vld [vmem:[#allocation9 + $0x1b8] sm:$0xff]
        %v2649 = vld [vmem:[#allocation9 + $0x1c0] sm:$0xff]
        %v2650 = vld [vmem:[#allocation9 + $0x1c8] sm:$0xff]
        %v2651 = vld [vmem:[#allocation9 + $0x1d0] sm:$0xff]
        %v2652 = vld [vmem:[#allocation9 + $0x1d8] sm:$0xff]
        %v2653 = vld [vmem:[#allocation9 + $0x1e0] sm:$0xff]
        %v2654 = vld [vmem:[#allocation9 + $0x1e8] sm:$0xff]
        %v2655 = vld [vmem:[#allocation9 + $0x1f0] sm:$0xff]
        %v2656 = vld [vmem:[#allocation9 + $0x1f8] sm:$0xff]
        %v2657 = vld [vmem:[%s221] sm:$0xf]
        %v2658 = vld [vmem:[%s221 + $0x4] sm:$0xf]
        %v2659 = vld [vmem:[%s221 + $0x8] sm:$0xf]
        %v2660 = vld [vmem:[%s221 + $0xc] sm:$0xf]
        %v2661 = vld [vmem:[%s221 + $0x10] sm:$0xf]
        %v2662 = vld [vmem:[%s221 + $0x14] sm:$0xf]
        %v2663 = vld [vmem:[%s221 + $0x18] sm:$0xf]
        %v2664 = vld [vmem:[%s221 + $0x1c] sm:$0xf]
        %v2665 = vld [vmem:[%s221 + $0x20] sm:$0xf]
        %v2666 = vld [vmem:[%s221 + $0x24] sm:$0xf]
        %v2667 = vld [vmem:[%s221 + $0x28] sm:$0xf]
        %v2668 = vld [vmem:[%s221 + $0x2c] sm:$0xf]
        %v2669 = vld [vmem:[%s221 + $0x30] sm:$0xf]
        %v2670 = vld [vmem:[%s221 + $0x34] sm:$0xf]
        %v2671 = vld [vmem:[%s221 + $0x38] sm:$0xf]
        %v2672 = vld [vmem:[%s221 + $0x3c] sm:$0xf]
        %v2673 = vld [vmem:[%s221 + $0x40] sm:$0xf]
        %v2674 = vld [vmem:[%s221 + $0x44] sm:$0xf]
        %v2675 = vld [vmem:[%s221 + $0x48] sm:$0xf]
        %v2676 = vld [vmem:[%s221 + $0x4c] sm:$0xf]
        %v2677 = vld [vmem:[%s221 + $0x50] sm:$0xf]
        %v2678 = vld [vmem:[%s221 + $0x54] sm:$0xf]
        %v2679 = vld [vmem:[%s221 + $0x58] sm:$0xf]
        %v2680 = vld [vmem:[%s221 + $0x5c] sm:$0xf]
        %v2681 = vld [vmem:[%s221 + $0x60] sm:$0xf]
        %v2682 = vld [vmem:[%s221 + $0x64] sm:$0xf]
        %v2683 = vld [vmem:[%s221 + $0x68] sm:$0xf]
        %v2684 = vld [vmem:[%s221 + $0x6c] sm:$0xf]
        %v2685 = vld [vmem:[%s221 + $0x70] sm:$0xf]
        %v2686 = vld [vmem:[%s221 + $0x74] sm:$0xf]
        %v2687 = vld [vmem:[%s221 + $0x78] sm:$0xf]
        %v2688 = vld [vmem:[%s221 + $0x7c] sm:$0xf]
        %v2689 = vld [vmem:[%s224] sm:$0x1]
        %v2691 = vlaneseq
        %v2692 = vshrl.u32 %v2691, 7
        %v2693 = vsub.s32 0, %v2692
        %v2694 = vrot.slane %v2689, %v2693
        %v2760 = vunpack.c.l.b16 %v2593
        %v2761 = vunpack.c.h.b16 %v2593
        %v2762 = vunpack.c.l.b16 %v2594
        %v2763 = vunpack.c.h.b16 %v2594
        %v2764 = vunpack.c.l.b16 %v2595
        %v2765 = vunpack.c.h.b16 %v2595
        %v2766 = vunpack.c.l.b16 %v2596
        %v2767 = vunpack.c.h.b16 %v2596
        %v2768 = vunpack.c.l.b16 %v2597
        %v2769 = vunpack.c.h.b16 %v2597
        %v2770 = vunpack.c.l.b16 %v2598
        %v2771 = vunpack.c.h.b16 %v2598
        %v2772 = vunpack.c.l.b16 %v2599
        %v2773 = vunpack.c.h.b16 %v2599
        %v2774 = vunpack.c.l.b16 %v2600
        %v2775 = vunpack.c.h.b16 %v2600
        %v2776 = vunpack.c.l.b16 %v2601
        %v2777 = vunpack.c.h.b16 %v2601
        %v2778 = vunpack.c.l.b16 %v2602
        %v2779 = vunpack.c.h.b16 %v2602
        %v2780 = vunpack.c.l.b16 %v2603
        %v2781 = vunpack.c.h.b16 %v2603
        %v2782 = vunpack.c.l.b16 %v2604
        %v2783 = vunpack.c.h.b16 %v2604
        %v2784 = vunpack.c.l.b16 %v2605
        %v2785 = vunpack.c.h.b16 %v2605
        %v2786 = vunpack.c.l.b16 %v2606
        %v2787 = vunpack.c.h.b16 %v2606
        %v2788 = vunpack.c.l.b16 %v2607
        %v2789 = vunpack.c.h.b16 %v2607
        %v2790 = vunpack.c.l.b16 %v2608
        %v2791 = vunpack.c.h.b16 %v2608
        %v2792 = vunpack.c.l.b16 %v2609
        %v2793 = vunpack.c.h.b16 %v2609
        %v2794 = vunpack.c.l.b16 %v2610
        %v2795 = vunpack.c.h.b16 %v2610
        %v2796 = vunpack.c.l.b16 %v2611
        %v2797 = vunpack.c.h.b16 %v2611
        %v2798 = vunpack.c.l.b16 %v2612
        %v2799 = vunpack.c.h.b16 %v2612
        %v2800 = vunpack.c.l.b16 %v2613
        %v2801 = vunpack.c.h.b16 %v2613
        %v2802 = vunpack.c.l.b16 %v2614
        %v2803 = vunpack.c.h.b16 %v2614
        %v2804 = vunpack.c.l.b16 %v2615
        %v2805 = vunpack.c.h.b16 %v2615
        %v2806 = vunpack.c.l.b16 %v2616
        %v2807 = vunpack.c.h.b16 %v2616
        %v2808 = vunpack.c.l.b16 %v2617
        %v2809 = vunpack.c.h.b16 %v2617
        %v2810 = vunpack.c.l.b16 %v2618
        %v2811 = vunpack.c.h.b16 %v2618
        %v2812 = vunpack.c.l.b16 %v2619
        %v2813 = vunpack.c.h.b16 %v2619
        %v2814 = vunpack.c.l.b16 %v2620
        %v2815 = vunpack.c.h.b16 %v2620
        %v2816 = vunpack.c.l.b16 %v2621
        %v2817 = vunpack.c.h.b16 %v2621
        %v2818 = vunpack.c.l.b16 %v2622
        %v2819 = vunpack.c.h.b16 %v2622
        %v2820 = vunpack.c.l.b16 %v2623
        %v2821 = vunpack.c.h.b16 %v2623
        %v2822 = vunpack.c.l.b16 %v2624
        %v2823 = vunpack.c.h.b16 %v2624
        %v2824 = vunpack.c.l.b16 %v2625
        %v2825 = vunpack.c.h.b16 %v2625
        %v2826 = vunpack.c.l.b16 %v2626
        %v2827 = vunpack.c.h.b16 %v2626
        %v2828 = vunpack.c.l.b16 %v2627
        %v2829 = vunpack.c.h.b16 %v2627
        %v2830 = vunpack.c.l.b16 %v2628
        %v2831 = vunpack.c.h.b16 %v2628
        %v2832 = vunpack.c.l.b16 %v2629
        %v2833 = vunpack.c.h.b16 %v2629
        %v2834 = vunpack.c.l.b16 %v2630
        %v2835 = vunpack.c.h.b16 %v2630
        %v2836 = vunpack.c.l.b16 %v2631
        %v2837 = vunpack.c.h.b16 %v2631
        %v2838 = vunpack.c.l.b16 %v2632
        %v2839 = vunpack.c.h.b16 %v2632
        %v2840 = vunpack.c.l.b16 %v2633
        %v2841 = vunpack.c.h.b16 %v2633
        %v2842 = vunpack.c.l.b16 %v2634
        %v2843 = vunpack.c.h.b16 %v2634
        %v2844 = vunpack.c.l.b16 %v2635
        %v2845 = vunpack.c.h.b16 %v2635
        %v2846 = vunpack.c.l.b16 %v2636
        %v2847 = vunpack.c.h.b16 %v2636
        %v2848 = vunpack.c.l.b16 %v2637
        %v2849 = vunpack.c.h.b16 %v2637
        %v2850 = vunpack.c.l.b16 %v2638
        %v2851 = vunpack.c.h.b16 %v2638
        %v2852 = vunpack.c.l.b16 %v2639
        %v2853 = vunpack.c.h.b16 %v2639
        %v2854 = vunpack.c.l.b16 %v2640
        %v2855 = vunpack.c.h.b16 %v2640
        %v2856 = vunpack.c.l.b16 %v2641
        %v2857 = vunpack.c.h.b16 %v2641
        %v2858 = vunpack.c.l.b16 %v2642
        %v2859 = vunpack.c.h.b16 %v2642
        %v2860 = vunpack.c.l.b16 %v2643
        %v2861 = vunpack.c.h.b16 %v2643
        %v2862 = vunpack.c.l.b16 %v2644
        %v2863 = vunpack.c.h.b16 %v2644
        %v2864 = vunpack.c.l.b16 %v2645
        %v2865 = vunpack.c.h.b16 %v2645
        %v2866 = vunpack.c.l.b16 %v2646
        %v2867 = vunpack.c.h.b16 %v2646
        %v2868 = vunpack.c.l.b16 %v2647
        %v2869 = vunpack.c.h.b16 %v2647
        %v2870 = vunpack.c.l.b16 %v2648
        %v2871 = vunpack.c.h.b16 %v2648
        %v2872 = vunpack.c.l.b16 %v2649
        %v2873 = vunpack.c.h.b16 %v2649
        %v2874 = vunpack.c.l.b16 %v2650
        %v2875 = vunpack.c.h.b16 %v2650
        %v2876 = vunpack.c.l.b16 %v2651
        %v2877 = vunpack.c.h.b16 %v2651
        %v2878 = vunpack.c.l.b16 %v2652
        %v2879 = vunpack.c.h.b16 %v2652
        %v2880 = vunpack.c.l.b16 %v2653
        %v2881 = vunpack.c.h.b16 %v2653
        %v2882 = vunpack.c.l.b16 %v2654
        %v2883 = vunpack.c.h.b16 %v2654
        %v2884 = vunpack.c.l.b16 %v2655
        %v2885 = vunpack.c.h.b16 %v2655
        %v2886 = vunpack.c.l.b16 %v2656
        %v2887 = vunpack.c.h.b16 %v2656
        %v2888 = vpack.c.b16 %v2762, %v2760
        %v2889 = vpack.c.b16 %v2763, %v2761
        %v2890 = vpack.c.b16 %v2766, %v2764
        %v2891 = vpack.c.b16 %v2767, %v2765
        %v2892 = vpack.c.b16 %v2770, %v2768
        %v2893 = vpack.c.b16 %v2771, %v2769
        %v2894 = vpack.c.b16 %v2774, %v2772
        %v2895 = vpack.c.b16 %v2775, %v2773
        %v2896 = vpack.c.b16 %v2778, %v2776
        %v2897 = vpack.c.b16 %v2779, %v2777
        %v2898 = vpack.c.b16 %v2782, %v2780
        %v2899 = vpack.c.b16 %v2783, %v2781
        %v2900 = vpack.c.b16 %v2786, %v2784
        %v2901 = vpack.c.b16 %v2787, %v2785
        %v2902 = vpack.c.b16 %v2790, %v2788
        %v2903 = vpack.c.b16 %v2791, %v2789
        %v2904 = vpack.c.b16 %v2794, %v2792
        %v2905 = vpack.c.b16 %v2795, %v2793
        %v2906 = vpack.c.b16 %v2798, %v2796
        %v2907 = vpack.c.b16 %v2799, %v2797
        %v2908 = vpack.c.b16 %v2802, %v2800
        %v2909 = vpack.c.b16 %v2803, %v2801
        %v2910 = vpack.c.b16 %v2806, %v2804
        %v2911 = vpack.c.b16 %v2807, %v2805
        %v2912 = vpack.c.b16 %v2810, %v2808
        %v2913 = vpack.c.b16 %v2811, %v2809
        %v2914 = vpack.c.b16 %v2814, %v2812
        %v2915 = vpack.c.b16 %v2815, %v2813
        %v2916 = vpack.c.b16 %v2818, %v2816
        %v2917 = vpack.c.b16 %v2819, %v2817
        %v2918 = vpack.c.b16 %v2822, %v2820
        %v2919 = vpack.c.b16 %v2823, %v2821
        %v2920 = vpack.c.b16 %v2826, %v2824
        %v2921 = vpack.c.b16 %v2827, %v2825
        %v2922 = vpack.c.b16 %v2830, %v2828
        %v2923 = vpack.c.b16 %v2831, %v2829
        %v2924 = vpack.c.b16 %v2834, %v2832
        %v2925 = vpack.c.b16 %v2835, %v2833
        %v2926 = vpack.c.b16 %v2838, %v2836
        %v2927 = vpack.c.b16 %v2839, %v2837
        %v2928 = vpack.c.b16 %v2842, %v2840
        %v2929 = vpack.c.b16 %v2843, %v2841
        %v2930 = vpack.c.b16 %v2846, %v2844
        %v2931 = vpack.c.b16 %v2847, %v2845
        %v2932 = vpack.c.b16 %v2850, %v2848
        %v2933 = vpack.c.b16 %v2851, %v2849
        %v2934 = vpack.c.b16 %v2854, %v2852
        %v2935 = vpack.c.b16 %v2855, %v2853
        %v2936 = vpack.c.b16 %v2858, %v2856
        %v2937 = vpack.c.b16 %v2859, %v2857
        %v2938 = vpack.c.b16 %v2862, %v2860
        %v2939 = vpack.c.b16 %v2863, %v2861
        %v2940 = vpack.c.b16 %v2866, %v2864
        %v2941 = vpack.c.b16 %v2867, %v2865
        %v2942 = vpack.c.b16 %v2870, %v2868
        %v2943 = vpack.c.b16 %v2871, %v2869
        %v2944 = vpack.c.b16 %v2874, %v2872
        %v2945 = vpack.c.b16 %v2875, %v2873
        %v2946 = vpack.c.b16 %v2878, %v2876
        %v2947 = vpack.c.b16 %v2879, %v2877
        %v2948 = vpack.c.b16 %v2882, %v2880
        %v2949 = vpack.c.b16 %v2883, %v2881
        %v2950 = vpack.c.b16 %v2886, %v2884
        %v2951 = vpack.c.b16 %v2887, %v2885
        %v3048 = vunpack.c.l.b16 %v2657
        %v3049 = vunpack.c.l.b16 %v2658
        %v3050 = vunpack.c.l.b16 %v2659
        %v3051 = vunpack.c.l.b16 %v2660
        %v3052 = vunpack.c.l.b16 %v2661
        %v3053 = vunpack.c.l.b16 %v2662
        %v3054 = vunpack.c.l.b16 %v2663
        %v3055 = vunpack.c.l.b16 %v2664
        %v3056 = vunpack.c.l.b16 %v2665
        %v3057 = vunpack.c.l.b16 %v2666
        %v3058 = vunpack.c.l.b16 %v2667
        %v3059 = vunpack.c.l.b16 %v2668
        %v3060 = vunpack.c.l.b16 %v2669
        %v3061 = vunpack.c.l.b16 %v2670
        %v3062 = vunpack.c.l.b16 %v2671
        %v3063 = vunpack.c.l.b16 %v2672
        %v3064 = vunpack.c.l.b16 %v2673
        %v3065 = vunpack.c.l.b16 %v2674
        %v3066 = vunpack.c.l.b16 %v2675
        %v3067 = vunpack.c.l.b16 %v2676
        %v3068 = vunpack.c.l.b16 %v2677
        %v3069 = vunpack.c.l.b16 %v2678
        %v3070 = vunpack.c.l.b16 %v2679
        %v3071 = vunpack.c.l.b16 %v2680
        %v3072 = vunpack.c.l.b16 %v2681
        %v3073 = vunpack.c.l.b16 %v2682
        %v3074 = vunpack.c.l.b16 %v2683
        %v3075 = vunpack.c.l.b16 %v2684
        %v3076 = vunpack.c.l.b16 %v2685
        %v3077 = vunpack.c.l.b16 %v2686
        %v3078 = vunpack.c.l.b16 %v2687
        %v3079 = vunpack.c.l.b16 %v2688
        %v3080 = vpack.c.b16 %v3049, %v3048
        %v3081 = vpack.c.b16 %v3051, %v3050
        %v3082 = vpack.c.b16 %v3053, %v3052
        %v3083 = vpack.c.b16 %v3055, %v3054
        %v3084 = vpack.c.b16 %v3057, %v3056
        %v3085 = vpack.c.b16 %v3059, %v3058
        %v3086 = vpack.c.b16 %v3061, %v3060
        %v3087 = vpack.c.b16 %v3063, %v3062
        %v3088 = vpack.c.b16 %v3065, %v3064
        %v3089 = vpack.c.b16 %v3067, %v3066
        %v3090 = vpack.c.b16 %v3069, %v3068
        %v3091 = vpack.c.b16 %v3071, %v3070
        %v3092 = vpack.c.b16 %v3073, %v3072
        %v3093 = vpack.c.b16 %v3075, %v3074
        %v3094 = vpack.c.b16 %v3077, %v3076
        %v3095 = vpack.c.b16 %v3079, %v3078
        %3112 = vmatprep.subr.bf16.mxu0 0
        %3113 = vmatpush1.bf16.msra.mxu0 %v3087
        %3114 = vmatprep.subr.bf16.mxu0 0
        %3115 = vmatpush1.bf16.msra.mxu0 %v3086
        %3116 = vmatprep.subr.bf16.mxu0 0
        %3117 = vmatpush1.bf16.msra.mxu0 %v3085
        %3118 = vmatprep.subr.bf16.mxu0 0
        %3119 = vmatpush1.bf16.msra.mxu0 %v3084
        %3120 = vmatprep.subr.bf16.mxu0 0
        %3121 = vmatpush1.bf16.msra.mxu0 %v3083
        %3122 = vmatprep.subr.bf16.mxu0 0
        %3123 = vmatpush1.bf16.msra.mxu0 %v3082
        %3124 = vmatprep.subr.bf16.mxu0 0
        %3125 = vmatpush1.bf16.msra.mxu0 %v3081
        %3126 = vmatprep.subr.bf16.mxu0 0
        %3127 = vmatpush1.bf16.msra.mxu0 %v3080
        %3128 = vmatprep.subr.bf16.mxu0 0
        %3129 = vmatpush2.bf16.msra.mxu0 %v3095
        %3130 = vmatprep.subr.bf16.mxu0 0
        %3131 = vmatpush2.bf16.msra.mxu0 %v3094
        %3132 = vmatprep.subr.bf16.mxu0 0
        %3133 = vmatpush2.bf16.msra.mxu0 %v3093
        %3134 = vmatprep.subr.bf16.mxu0 0
        %3135 = vmatpush2.bf16.msra.mxu0 %v3092
        %3136 = vmatprep.subr.bf16.mxu0 0
        %3137 = vmatpush2.bf16.msra.mxu0 %v3091
        %3138 = vmatprep.subr.bf16.mxu0 0
        %3139 = vmatpush2.bf16.msra.mxu0 %v3090
        %3140 = vmatprep.subr.bf16.mxu0 0
        %3141 = vmatpush2.bf16.msra.mxu0 %v3089
        %3142 = vmatprep.subr.bf16.mxu0 0
        %3143 = vmatpush2.bf16.msra.mxu0 %v3088
        %3144 = vmatprep.mubr.bf16.mxu0 %v2889
        %3145 = vmatmul.mubr.bf16.gmra.mxu0 %v2888
        %v3146 = vpop.f32.mrf.mxu0
        %v3147 = vadd.f32 %v2694, %v3146
        %v3148 = vpop.f32.mrf.mxu0
        %v3149 = vpop.f32.mrf.mxu0
        %v3150 = vadd.f32 %v2694, %v3149
        %v3151 = vpop.f32.mrf.mxu0
        %3152 = vmatprep.mubr.bf16.mxu0 %v2891
        %3153 = vmatmul.mubr.bf16.gmra.mxu0 %v2890
        %v3154 = vpop.f32.mrf.mxu0
        %v3155 = vadd.f32 %v2694, %v3154
        %v3156 = vpop.f32.mrf.mxu0
        %v3157 = vpop.f32.mrf.mxu0
        %v3158 = vadd.f32 %v2694, %v3157
        %v3159 = vpop.f32.mrf.mxu0
        %3160 = vmatprep.mubr.bf16.mxu0 %v2893
        %3161 = vmatmul.mubr.bf16.gmra.mxu0 %v2892
        %v3162 = vpop.f32.mrf.mxu0
        %v3163 = vadd.f32 %v2694, %v3162
        %v3164 = vpop.f32.mrf.mxu0
        %v3165 = vpop.f32.mrf.mxu0
        %v3166 = vadd.f32 %v2694, %v3165
        %v3167 = vpop.f32.mrf.mxu0
        %3168 = vmatprep.mubr.bf16.mxu0 %v2895
        %3169 = vmatmul.mubr.bf16.gmra.mxu0 %v2894
        %v3170 = vpop.f32.mrf.mxu0
        %v3171 = vadd.f32 %v2694, %v3170
        %v3172 = vpop.f32.mrf.mxu0
        %v3173 = vpop.f32.mrf.mxu0
        %v3174 = vadd.f32 %v2694, %v3173
        %v3175 = vpop.f32.mrf.mxu0
        %3176 = vmatprep.mubr.bf16.mxu0 %v2897
        %3177 = vmatmul.mubr.bf16.gmra.mxu0 %v2896
        %v3178 = vpop.f32.mrf.mxu0
        %v3179 = vadd.f32 %v2694, %v3178
        %v3180 = vpop.f32.mrf.mxu0
        %v3181 = vpop.f32.mrf.mxu0
        %v3182 = vadd.f32 %v2694, %v3181
        %v3183 = vpop.f32.mrf.mxu0
        %3184 = vmatprep.mubr.bf16.mxu0 %v2899
        %3185 = vmatmul.mubr.bf16.gmra.mxu0 %v2898
        %v3186 = vpop.f32.mrf.mxu0
        %v3187 = vadd.f32 %v2694, %v3186
        %v3188 = vpop.f32.mrf.mxu0
        %v3189 = vpop.f32.mrf.mxu0
        %v3190 = vadd.f32 %v2694, %v3189
        %v3191 = vpop.f32.mrf.mxu0
        %3192 = vmatprep.mubr.bf16.mxu0 %v2901
        %3193 = vmatmul.mubr.bf16.gmra.mxu0 %v2900
        %v3194 = vpop.f32.mrf.mxu0
        %v3195 = vadd.f32 %v2694, %v3194
        %v3196 = vpop.f32.mrf.mxu0
        %v3197 = vpop.f32.mrf.mxu0
        %v3198 = vadd.f32 %v2694, %v3197
        %v3199 = vpop.f32.mrf.mxu0
        %3200 = vmatprep.mubr.bf16.mxu0 %v2903
        %3201 = vmatmul.mubr.bf16.gmra.mxu0 %v2902
        %v3202 = vpop.f32.mrf.mxu0
        %v3203 = vadd.f32 %v2694, %v3202
        %v3204 = vpop.f32.mrf.mxu0
        %v3205 = vpop.f32.mrf.mxu0
        %v3206 = vadd.f32 %v2694, %v3205
        %v3207 = vpop.f32.mrf.mxu0
        %3208 = vmatprep.mubr.bf16.mxu0 %v2905
        %3209 = vmatmul.mubr.bf16.gmra.mxu0 %v2904
        %v3210 = vpop.f32.mrf.mxu0
        %v3211 = vadd.f32 %v2694, %v3210
        %v3212 = vpop.f32.mrf.mxu0
        %v3213 = vpop.f32.mrf.mxu0
        %v3214 = vadd.f32 %v2694, %v3213
        %v3215 = vpop.f32.mrf.mxu0
        %3216 = vmatprep.mubr.bf16.mxu0 %v2907
        %3217 = vmatmul.mubr.bf16.gmra.mxu0 %v2906
        %v3218 = vpop.f32.mrf.mxu0
        %v3219 = vadd.f32 %v2694, %v3218
        %v3220 = vpop.f32.mrf.mxu0
        %v3221 = vpop.f32.mrf.mxu0
        %v3222 = vadd.f32 %v2694, %v3221
        %v3223 = vpop.f32.mrf.mxu0
        %3224 = vmatprep.mubr.bf16.mxu0 %v2909
        %3225 = vmatmul.mubr.bf16.gmra.mxu0 %v2908
        %v3226 = vpop.f32.mrf.mxu0
        %v3227 = vadd.f32 %v2694, %v3226
        %v3228 = vpop.f32.mrf.mxu0
        %v3229 = vpop.f32.mrf.mxu0
        %v3230 = vadd.f32 %v2694, %v3229
        %v3231 = vpop.f32.mrf.mxu0
        %3232 = vmatprep.mubr.bf16.mxu0 %v2911
        %3233 = vmatmul.mubr.bf16.gmra.mxu0 %v2910
        %v3234 = vpop.f32.mrf.mxu0
        %v3235 = vadd.f32 %v2694, %v3234
        %v3236 = vpop.f32.mrf.mxu0
        %v3237 = vpop.f32.mrf.mxu0
        %v3238 = vadd.f32 %v2694, %v3237
        %v3239 = vpop.f32.mrf.mxu0
        %3240 = vmatprep.mubr.bf16.mxu0 %v2913
        %3241 = vmatmul.mubr.bf16.gmra.mxu0 %v2912
        %v3242 = vpop.f32.mrf.mxu0
        %v3243 = vadd.f32 %v2694, %v3242
        %v3244 = vpop.f32.mrf.mxu0
        %v3245 = vpop.f32.mrf.mxu0
        %v3246 = vadd.f32 %v2694, %v3245
        %v3247 = vpop.f32.mrf.mxu0
        %3248 = vmatprep.mubr.bf16.mxu0 %v2915
        %3249 = vmatmul.mubr.bf16.gmra.mxu0 %v2914
        %v3250 = vpop.f32.mrf.mxu0
        %v3251 = vadd.f32 %v2694, %v3250
        %v3252 = vpop.f32.mrf.mxu0
        %v3253 = vpop.f32.mrf.mxu0
        %v3254 = vadd.f32 %v2694, %v3253
        %v3255 = vpop.f32.mrf.mxu0
        %3256 = vmatprep.mubr.bf16.mxu0 %v2917
        %3257 = vmatmul.mubr.bf16.gmra.mxu0 %v2916
        %v3258 = vpop.f32.mrf.mxu0
        %v3259 = vadd.f32 %v2694, %v3258
        %v3260 = vpop.f32.mrf.mxu0
        %v3261 = vpop.f32.mrf.mxu0
        %v3262 = vadd.f32 %v2694, %v3261
        %v3263 = vpop.f32.mrf.mxu0
        %3264 = vmatprep.mubr.bf16.mxu0 %v2919
        %3265 = vmatmul.mubr.bf16.gmra.mxu0 %v2918
        %v3266 = vpop.f32.mrf.mxu0
        %v3267 = vadd.f32 %v2694, %v3266
        %v3268 = vpop.f32.mrf.mxu0
        %v3269 = vpop.f32.mrf.mxu0
        %v3270 = vadd.f32 %v2694, %v3269
        %v3271 = vpop.f32.mrf.mxu0
        %3272 = vmatprep.mubr.bf16.mxu0 %v2921
        %3273 = vmatmul.mubr.bf16.gmra.mxu0 %v2920
        %v3274 = vpop.f32.mrf.mxu0
        %v3275 = vadd.f32 %v2694, %v3274
        %v3276 = vpop.f32.mrf.mxu0
        %v3277 = vpop.f32.mrf.mxu0
        %v3278 = vadd.f32 %v2694, %v3277
        %v3279 = vpop.f32.mrf.mxu0
        %3280 = vmatprep.mubr.bf16.mxu0 %v2923
        %3281 = vmatmul.mubr.bf16.gmra.mxu0 %v2922
        %v3282 = vpop.f32.mrf.mxu0
        %v3283 = vadd.f32 %v2694, %v3282
        %v3284 = vpop.f32.mrf.mxu0
        %v3285 = vpop.f32.mrf.mxu0
        %v3286 = vadd.f32 %v2694, %v3285
        %v3287 = vpop.f32.mrf.mxu0
        %3288 = vmatprep.mubr.bf16.mxu0 %v2925
        %3289 = vmatmul.mubr.bf16.gmra.mxu0 %v2924
        %v3290 = vpop.f32.mrf.mxu0
        %v3291 = vadd.f32 %v2694, %v3290
        %v3292 = vpop.f32.mrf.mxu0
        %v3293 = vpop.f32.mrf.mxu0
        %v3294 = vadd.f32 %v2694, %v3293
        %v3295 = vpop.f32.mrf.mxu0
        %3296 = vmatprep.mubr.bf16.mxu0 %v2927
        %3297 = vmatmul.mubr.bf16.gmra.mxu0 %v2926
        %v3298 = vpop.f32.mrf.mxu0
        %v3299 = vadd.f32 %v2694, %v3298
        %v3300 = vpop.f32.mrf.mxu0
        %v3301 = vpop.f32.mrf.mxu0
        %v3302 = vadd.f32 %v2694, %v3301
        %v3303 = vpop.f32.mrf.mxu0
        %3304 = vmatprep.mubr.bf16.mxu0 %v2929
        %3305 = vmatmul.mubr.bf16.gmra.mxu0 %v2928
        %v3306 = vpop.f32.mrf.mxu0
        %v3307 = vadd.f32 %v2694, %v3306
        %v3308 = vpop.f32.mrf.mxu0
        %v3309 = vpop.f32.mrf.mxu0
        %v3310 = vadd.f32 %v2694, %v3309
        %v3311 = vpop.f32.mrf.mxu0
        %3312 = vmatprep.mubr.bf16.mxu0 %v2931
        %3313 = vmatmul.mubr.bf16.gmra.mxu0 %v2930
        %v3314 = vpop.f32.mrf.mxu0
        %v3315 = vadd.f32 %v2694, %v3314
        %v3316 = vpop.f32.mrf.mxu0
        %v3317 = vpop.f32.mrf.mxu0
        %v3318 = vadd.f32 %v2694, %v3317
        %v3319 = vpop.f32.mrf.mxu0
        %3320 = vmatprep.mubr.bf16.mxu0 %v2933
        %3321 = vmatmul.mubr.bf16.gmra.mxu0 %v2932
        %v3322 = vpop.f32.mrf.mxu0
        %v3323 = vadd.f32 %v2694, %v3322
        %v3324 = vpop.f32.mrf.mxu0
        %v3325 = vpop.f32.mrf.mxu0
        %v3326 = vadd.f32 %v2694, %v3325
        %v3327 = vpop.f32.mrf.mxu0
        %3328 = vmatprep.mubr.bf16.mxu0 %v2935
        %3329 = vmatmul.mubr.bf16.gmra.mxu0 %v2934
        %v3330 = vpop.f32.mrf.mxu0
        %v3331 = vadd.f32 %v2694, %v3330
        %v3332 = vpop.f32.mrf.mxu0
        %v3333 = vpop.f32.mrf.mxu0
        %v3334 = vadd.f32 %v2694, %v3333
        %v3335 = vpop.f32.mrf.mxu0
        %3336 = vmatprep.mubr.bf16.mxu0 %v2937
        %3337 = vmatmul.mubr.bf16.gmra.mxu0 %v2936
        %v3338 = vpop.f32.mrf.mxu0
        %v3339 = vadd.f32 %v2694, %v3338
        %v3340 = vpop.f32.mrf.mxu0
        %v3341 = vpop.f32.mrf.mxu0
        %v3342 = vadd.f32 %v2694, %v3341
        %v3343 = vpop.f32.mrf.mxu0
        %3344 = vmatprep.mubr.bf16.mxu0 %v2939
        %3345 = vmatmul.mubr.bf16.gmra.mxu0 %v2938
        %v3346 = vpop.f32.mrf.mxu0
        %v3347 = vadd.f32 %v2694, %v3346
        %v3348 = vpop.f32.mrf.mxu0
        %v3349 = vpop.f32.mrf.mxu0
        %v3350 = vadd.f32 %v2694, %v3349
        %v3351 = vpop.f32.mrf.mxu0
        %3352 = vmatprep.mubr.bf16.mxu0 %v2941
        %3353 = vmatmul.mubr.bf16.gmra.mxu0 %v2940
        %v3354 = vpop.f32.mrf.mxu0
        %v3355 = vadd.f32 %v2694, %v3354
        %v3356 = vpop.f32.mrf.mxu0
        %v3357 = vpop.f32.mrf.mxu0
        %v3358 = vadd.f32 %v2694, %v3357
        %v3359 = vpop.f32.mrf.mxu0
        %3360 = vmatprep.mubr.bf16.mxu0 %v2943
        %3361 = vmatmul.mubr.bf16.gmra.mxu0 %v2942
        %v3362 = vpop.f32.mrf.mxu0
        %v3363 = vadd.f32 %v2694, %v3362
        %v3364 = vpop.f32.mrf.mxu0
        %v3365 = vpop.f32.mrf.mxu0
        %v3366 = vadd.f32 %v2694, %v3365
        %v3367 = vpop.f32.mrf.mxu0
        %3368 = vmatprep.mubr.bf16.mxu0 %v2945
        %3369 = vmatmul.mubr.bf16.gmra.mxu0 %v2944
        %v3370 = vpop.f32.mrf.mxu0
        %v3371 = vadd.f32 %v2694, %v3370
        %v3372 = vpop.f32.mrf.mxu0
        %v3373 = vpop.f32.mrf.mxu0
        %v3374 = vadd.f32 %v2694, %v3373
        %v3375 = vpop.f32.mrf.mxu0
        %3376 = vmatprep.mubr.bf16.mxu0 %v2947
        %3377 = vmatmul.mubr.bf16.gmra.mxu0 %v2946
        %v3378 = vpop.f32.mrf.mxu0
        %v3379 = vadd.f32 %v2694, %v3378
        %v3380 = vpop.f32.mrf.mxu0
        %v3381 = vpop.f32.mrf.mxu0
        %v3382 = vadd.f32 %v2694, %v3381
        %v3383 = vpop.f32.mrf.mxu0
        %3384 = vmatprep.mubr.bf16.mxu0 %v2949
        %3385 = vmatmul.mubr.bf16.gmra.mxu0 %v2948
        %v3386 = vpop.f32.mrf.mxu0
        %v3387 = vadd.f32 %v2694, %v3386
        %v3388 = vpop.f32.mrf.mxu0
        %v3389 = vpop.f32.mrf.mxu0
        %v3390 = vadd.f32 %v2694, %v3389
        %v3391 = vpop.f32.mrf.mxu0
        %3392 = vmatprep.mubr.bf16.mxu0 %v2951
        %3393 = vmatmul.mubr.bf16.gmra.mxu0 %v2950
        %v3394 = vpop.f32.mrf.mxu0
        %v3395 = vadd.f32 %v2694, %v3394
        %v3396 = vpop.f32.mrf.mxu0
        %v3397 = vpop.f32.mrf.mxu0
        %v3398 = vadd.f32 %v2694, %v3397
        %v3399 = vpop.f32.mrf.mxu0
        %3400 = vdwg.mxu0
        %v3401 = vpack.c.bf16 %v3150, %v3147
        %v3402 = vpack.c.bf16 %v3158, %v3155
        %v3403 = vpack.c.bf16 %v3166, %v3163
        %v3404 = vpack.c.bf16 %v3174, %v3171
        %v3405 = vpack.c.bf16 %v3182, %v3179
        %v3406 = vpack.c.bf16 %v3190, %v3187
        %v3407 = vpack.c.bf16 %v3198, %v3195
        %v3408 = vpack.c.bf16 %v3206, %v3203
        %v3409 = vpack.c.bf16 %v3214, %v3211
        %v3410 = vpack.c.bf16 %v3222, %v3219
        %v3411 = vpack.c.bf16 %v3230, %v3227
        %v3412 = vpack.c.bf16 %v3238, %v3235
        %v3413 = vpack.c.bf16 %v3246, %v3243
        %v3414 = vpack.c.bf16 %v3254, %v3251
        %v3415 = vpack.c.bf16 %v3262, %v3259
        %v3416 = vpack.c.bf16 %v3270, %v3267
        %v3417 = vpack.c.bf16 %v3278, %v3275
        %v3418 = vpack.c.bf16 %v3286, %v3283
        %v3419 = vpack.c.bf16 %v3294, %v3291
        %v3420 = vpack.c.bf16 %v3302, %v3299
        %v3421 = vpack.c.bf16 %v3310, %v3307
        %v3422 = vpack.c.bf16 %v3318, %v3315
        %v3423 = vpack.c.bf16 %v3326, %v3323
        %v3424 = vpack.c.bf16 %v3334, %v3331
        %v3425 = vpack.c.bf16 %v3342, %v3339
        %v3426 = vpack.c.bf16 %v3350, %v3347
        %v3427 = vpack.c.bf16 %v3358, %v3355
        %v3428 = vpack.c.bf16 %v3366, %v3363
        %v3429 = vpack.c.bf16 %v3374, %v3371
        %v3430 = vpack.c.bf16 %v3382, %v3379
        %v3431 = vpack.c.bf16 %v3390, %v3387
        %v3432 = vpack.c.bf16 %v3398, %v3395
        %v3465 = vunpack.c.l.b16 %v3401
        %v3466 = vunpack.c.h.b16 %v3401
        %v3467 = vunpack.c.l.b16 %v3402
        %v3468 = vunpack.c.h.b16 %v3402
        %v3469 = vunpack.c.l.b16 %v3403
        %v3470 = vunpack.c.h.b16 %v3403
        %v3471 = vunpack.c.l.b16 %v3404
        %v3472 = vunpack.c.h.b16 %v3404
        %v3473 = vunpack.c.l.b16 %v3405
        %v3474 = vunpack.c.h.b16 %v3405
        %v3475 = vunpack.c.l.b16 %v3406
        %v3476 = vunpack.c.h.b16 %v3406
        %v3477 = vunpack.c.l.b16 %v3407
        %v3478 = vunpack.c.h.b16 %v3407
        %v3479 = vunpack.c.l.b16 %v3408
        %v3480 = vunpack.c.h.b16 %v3408
        %v3481 = vunpack.c.l.b16 %v3409
        %v3482 = vunpack.c.h.b16 %v3409
        %v3483 = vunpack.c.l.b16 %v3410
        %v3484 = vunpack.c.h.b16 %v3410
        %v3485 = vunpack.c.l.b16 %v3411
        %v3486 = vunpack.c.h.b16 %v3411
        %v3487 = vunpack.c.l.b16 %v3412
        %v3488 = vunpack.c.h.b16 %v3412
        %v3489 = vunpack.c.l.b16 %v3413
        %v3490 = vunpack.c.h.b16 %v3413
        %v3491 = vunpack.c.l.b16 %v3414
        %v3492 = vunpack.c.h.b16 %v3414
        %v3493 = vunpack.c.l.b16 %v3415
        %v3494 = vunpack.c.h.b16 %v3415
        %v3495 = vunpack.c.l.b16 %v3416
        %v3496 = vunpack.c.h.b16 %v3416
        %v3497 = vunpack.c.l.b16 %v3417
        %v3498 = vunpack.c.h.b16 %v3417
        %v3499 = vunpack.c.l.b16 %v3418
        %v3500 = vunpack.c.h.b16 %v3418
        %v3501 = vunpack.c.l.b16 %v3419
        %v3502 = vunpack.c.h.b16 %v3419
        %v3503 = vunpack.c.l.b16 %v3420
        %v3504 = vunpack.c.h.b16 %v3420
        %v3505 = vunpack.c.l.b16 %v3421
        %v3506 = vunpack.c.h.b16 %v3421
        %v3507 = vunpack.c.l.b16 %v3422
        %v3508 = vunpack.c.h.b16 %v3422
        %v3509 = vunpack.c.l.b16 %v3423
        %v3510 = vunpack.c.h.b16 %v3423
        %v3511 = vunpack.c.l.b16 %v3424
        %v3512 = vunpack.c.h.b16 %v3424
        %v3513 = vunpack.c.l.b16 %v3425
        %v3514 = vunpack.c.h.b16 %v3425
        %v3515 = vunpack.c.l.b16 %v3426
        %v3516 = vunpack.c.h.b16 %v3426
        %v3517 = vunpack.c.l.b16 %v3427
        %v3518 = vunpack.c.h.b16 %v3427
        %v3519 = vunpack.c.l.b16 %v3428
        %v3520 = vunpack.c.h.b16 %v3428
        %v3521 = vunpack.c.l.b16 %v3429
        %v3522 = vunpack.c.h.b16 %v3429
        %v3523 = vunpack.c.l.b16 %v3430
        %v3524 = vunpack.c.h.b16 %v3430
        %v3525 = vunpack.c.l.b16 %v3431
        %v3526 = vunpack.c.h.b16 %v3431
        %v3527 = vunpack.c.l.b16 %v3432
        %v3528 = vunpack.c.h.b16 %v3432
        %v3529 = vpack.c.b16 %v3465, %v3465
        %v3530 = vpack.c.b16 %v3466, %v3466
        %v3531 = vpack.c.b16 %v3467, %v3467
        %v3532 = vpack.c.b16 %v3468, %v3468
        %v3533 = vpack.c.b16 %v3469, %v3469
        %v3534 = vpack.c.b16 %v3470, %v3470
        %v3535 = vpack.c.b16 %v3471, %v3471
        %v3536 = vpack.c.b16 %v3472, %v3472
        %v3537 = vpack.c.b16 %v3473, %v3473
        %v3538 = vpack.c.b16 %v3474, %v3474
        %v3539 = vpack.c.b16 %v3475, %v3475
        %v3540 = vpack.c.b16 %v3476, %v3476
        %v3541 = vpack.c.b16 %v3477, %v3477
        %v3542 = vpack.c.b16 %v3478, %v3478
        %v3543 = vpack.c.b16 %v3479, %v3479
        %v3544 = vpack.c.b16 %v3480, %v3480
        %v3545 = vpack.c.b16 %v3481, %v3481
        %v3546 = vpack.c.b16 %v3482, %v3482
        %v3547 = vpack.c.b16 %v3483, %v3483
        %v3548 = vpack.c.b16 %v3484, %v3484
        %v3549 = vpack.c.b16 %v3485, %v3485
        %v3550 = vpack.c.b16 %v3486, %v3486
        %v3551 = vpack.c.b16 %v3487, %v3487
        %v3552 = vpack.c.b16 %v3488, %v3488
        %v3553 = vpack.c.b16 %v3489, %v3489
        %v3554 = vpack.c.b16 %v3490, %v3490
        %v3555 = vpack.c.b16 %v3491, %v3491
        %v3556 = vpack.c.b16 %v3492, %v3492
        %v3557 = vpack.c.b16 %v3493, %v3493
        %v3558 = vpack.c.b16 %v3494, %v3494
        %v3559 = vpack.c.b16 %v3495, %v3495
        %v3560 = vpack.c.b16 %v3496, %v3496
        %v3561 = vpack.c.b16 %v3497, %v3497
        %v3562 = vpack.c.b16 %v3498, %v3498
        %v3563 = vpack.c.b16 %v3499, %v3499
        %v3564 = vpack.c.b16 %v3500, %v3500
        %v3565 = vpack.c.b16 %v3501, %v3501
        %v3566 = vpack.c.b16 %v3502, %v3502
        %v3567 = vpack.c.b16 %v3503, %v3503
        %v3568 = vpack.c.b16 %v3504, %v3504
        %v3569 = vpack.c.b16 %v3505, %v3505
        %v3570 = vpack.c.b16 %v3506, %v3506
        %v3571 = vpack.c.b16 %v3507, %v3507
        %v3572 = vpack.c.b16 %v3508, %v3508
        %v3573 = vpack.c.b16 %v3509, %v3509
        %v3574 = vpack.c.b16 %v3510, %v3510
        %v3575 = vpack.c.b16 %v3511, %v3511
        %v3576 = vpack.c.b16 %v3512, %v3512
        %v3577 = vpack.c.b16 %v3513, %v3513
        %v3578 = vpack.c.b16 %v3514, %v3514
        %v3579 = vpack.c.b16 %v3515, %v3515
        %v3580 = vpack.c.b16 %v3516, %v3516
        %v3581 = vpack.c.b16 %v3517, %v3517
        %v3582 = vpack.c.b16 %v3518, %v3518
        %v3583 = vpack.c.b16 %v3519, %v3519
        %v3584 = vpack.c.b16 %v3520, %v3520
        %v3585 = vpack.c.b16 %v3521, %v3521
        %v3586 = vpack.c.b16 %v3522, %v3522
        %v3587 = vpack.c.b16 %v3523, %v3523
        %v3588 = vpack.c.b16 %v3524, %v3524
        %v3589 = vpack.c.b16 %v3525, %v3525
        %v3590 = vpack.c.b16 %v3526, %v3526
        %v3591 = vpack.c.b16 %v3527, %v3527
        %v3592 = vpack.c.b16 %v3528, %v3528
        %3657 = vst [vmem:[%s210] sm:$0xf] %v3529
        %3658 = vst [vmem:[%s210 + $0x4] sm:$0xf] %v3530
        %3659 = vst [vmem:[%s210 + $0x8] sm:$0xf] %v3531
        %3660 = vst [vmem:[%s210 + $0xc] sm:$0xf] %v3532
        %3661 = vst [vmem:[%s210 + $0x10] sm:$0xf] %v3533
        %3662 = vst [vmem:[%s210 + $0x14] sm:$0xf] %v3534
        %3663 = vst [vmem:[%s210 + $0x18] sm:$0xf] %v3535
        %3664 = vst [vmem:[%s210 + $0x1c] sm:$0xf] %v3536
        %3665 = vst [vmem:[%s210 + $0x20] sm:$0xf] %v3537
        %3666 = vst [vmem:[%s210 + $0x24] sm:$0xf] %v3538
        %3667 = vst [vmem:[%s210 + $0x28] sm:$0xf] %v3539
        %3668 = vst [vmem:[%s210 + $0x2c] sm:$0xf] %v3540
        %3669 = vst [vmem:[%s210 + $0x30] sm:$0xf] %v3541
        %3670 = vst [vmem:[%s210 + $0x34] sm:$0xf] %v3542
        %3671 = vst [vmem:[%s210 + $0x38] sm:$0xf] %v3543
        %3672 = vst [vmem:[%s210 + $0x3c] sm:$0xf] %v3544
        %3673 = vst [vmem:[%s210 + $0x40] sm:$0xf] %v3545
        %3674 = vst [vmem:[%s210 + $0x44] sm:$0xf] %v3546
        %3675 = vst [vmem:[%s210 + $0x48] sm:$0xf] %v3547
        %3676 = vst [vmem:[%s210 + $0x4c] sm:$0xf] %v3548
        %3677 = vst [vmem:[%s210 + $0x50] sm:$0xf] %v3549
        %3678 = vst [vmem:[%s210 + $0x54] sm:$0xf] %v3550
        %3679 = vst [vmem:[%s210 + $0x58] sm:$0xf] %v3551
        %3680 = vst [vmem:[%s210 + $0x5c] sm:$0xf] %v3552
        %3681 = vst [vmem:[%s210 + $0x60] sm:$0xf] %v3553
        %3682 = vst [vmem:[%s210 + $0x64] sm:$0xf] %v3554
        %3683 = vst [vmem:[%s210 + $0x68] sm:$0xf] %v3555
        %3684 = vst [vmem:[%s210 + $0x6c] sm:$0xf] %v3556
        %3685 = vst [vmem:[%s210 + $0x70] sm:$0xf] %v3557
        %3686 = vst [vmem:[%s210 + $0x74] sm:$0xf] %v3558
        %3687 = vst [vmem:[%s210 + $0x78] sm:$0xf] %v3559
        %3688 = vst [vmem:[%s210 + $0x7c] sm:$0xf] %v3560
        %3689 = vst [vmem:[%s210 + $0x80] sm:$0xf] %v3561
        %3690 = vst [vmem:[%s210 + $0x84] sm:$0xf] %v3562
        %3691 = vst [vmem:[%s210 + $0x88] sm:$0xf] %v3563
        %3692 = vst [vmem:[%s210 + $0x8c] sm:$0xf] %v3564
        %3693 = vst [vmem:[%s210 + $0x90] sm:$0xf] %v3565
        %3694 = vst [vmem:[%s210 + $0x94] sm:$0xf] %v3566
        %3695 = vst [vmem:[%s210 + $0x98] sm:$0xf] %v3567
        %3696 = vst [vmem:[%s210 + $0x9c] sm:$0xf] %v3568
        %3697 = vst [vmem:[%s210 + $0xa0] sm:$0xf] %v3569
        %3698 = vst [vmem:[%s210 + $0xa4] sm:$0xf] %v3570
        %3699 = vst [vmem:[%s210 + $0xa8] sm:$0xf] %v3571
        %3700 = vst [vmem:[%s210 + $0xac] sm:$0xf] %v3572
        %3701 = vst [vmem:[%s210 + $0xb0] sm:$0xf] %v3573
        %3702 = vst [vmem:[%s210 + $0xb4] sm:$0xf] %v3574
        %3703 = vst [vmem:[%s210 + $0xb8] sm:$0xf] %v3575
        %3704 = vst [vmem:[%s210 + $0xbc] sm:$0xf] %v3576
        %3705 = vst [vmem:[%s210 + $0xc0] sm:$0xf] %v3577
        %3706 = vst [vmem:[%s210 + $0xc4] sm:$0xf] %v3578
        %3707 = vst [vmem:[%s210 + $0xc8] sm:$0xf] %v3579
        %3708 = vst [vmem:[%s210 + $0xcc] sm:$0xf] %v3580
        %3709 = vst [vmem:[%s210 + $0xd0] sm:$0xf] %v3581
        %3710 = vst [vmem:[%s210 + $0xd4] sm:$0xf] %v3582
        %3711 = vst [vmem:[%s210 + $0xd8] sm:$0xf] %v3583
        %3712 = vst [vmem:[%s210 + $0xdc] sm:$0xf] %v3584
        %3713 = vst [vmem:[%s210 + $0xe0] sm:$0xf] %v3585
        %3714 = vst [vmem:[%s210 + $0xe4] sm:$0xf] %v3586
        %3715 = vst [vmem:[%s210 + $0xe8] sm:$0xf] %v3587
        %3716 = vst [vmem:[%s210 + $0xec] sm:$0xf] %v3588
        %3717 = vst [vmem:[%s210 + $0xf0] sm:$0xf] %v3589
        %3718 = vst [vmem:[%s210 + $0xf4] sm:$0xf] %v3590
        %3719 = vst [vmem:[%s210 + $0xf8] sm:$0xf] %v3591
        %3720 = vst [vmem:[%s210 + $0xfc] sm:$0xf] %v3592
        %s3721 = sand.u32 %s123, 1
        %s3722 = scalar_lea.sflag [#allocation8], %s3721
        %s3723 = sand.u32 %s123, 1
        %s3724 = smul.addr %s3723, 256
        %s3725 = scalar_lea.vmem [#allocation7], %s3724
        // Predicated region
        $region33: #{_stem_impl.2} parent=31 // pred_check
          %p3726 = pneg %p133
        $region34: #{_stem_impl.2} parent=31 // pred_check_branch
          %3728 = sbr.rel (%p3726) target = $region36
        $region35: #{_stem_impl.2} parent=31 // pred_region
          %s3729 = smul.u32 64, %s27
          %s3731 = ssub.s32 4096, 4096
          %3732 = vsyncadd %s3722, %s3731
          %s3733 = sadd.s32 %s28, %s3729
          %s3734 = smul.addr %s3733, 64
          %s3735 = scalar_lea.hbm %s4, %s3734
          %s3736 = sshll.u32 %s3725, 4
          %s3737 = int_to_ptr.vmem [resolvable:$true] %s3736
          %3742 = dma.vmem_to_hbm [thread:$0]  %s3737, 4096, %s3735, %s3722, 64, 64, 4
        $region36: #{_stem_impl.2} parent=31 // pred_fallthru
          _
      $region32: #{_stem_impl.2} parent=5 // pred_fallthru
        _
      %p3743 = scmp.le.s32.totalorder 2, %s18
      // Predicated region
      $region37: #{_stem_impl.2} parent=5 // pred_check
        %p3744 = pneg %p3743
      $region38: #{_stem_impl.2} parent=5 // pred_check_branch
        %3746 = sbr.rel (%p3744) target = $region40
      $region39: #{_stem_impl.2} parent=5 // pred_region
        %s3747 = ssub.s32 %s18, 2
        // Predicated region
        $region41: #{_stem_impl.2} parent=39 // pred_check
          %p3748 = pneg %p139
        $region42: #{_stem_impl.2} parent=39 // pred_check_branch
          %3750 = sbr.rel (%p3748) target = $region44
        $region43: #{_stem_impl.2} parent=39 // pred_region
          %s3751 = sand.u32 %s124, 1
          %s3752 = scalar_lea.sflag [#allocation8], %s3751
          %s3753 = sand.u32 %s124, 1
          %s3754 = smul.addr %s3753, 256
          %s3755 = scalar_lea.vmem [#allocation7], %s3754
          %3756 = dma.done %s3752, 4096
        $region44: #{_stem_impl.2} parent=39 // pred_fallthru
          _
      $region40: #{_stem_impl.2} parent=5 // pred_fallthru
        _
    $region6: #{_stem_impl.2} parent=1 // loop_footer
      %s22 = sadd.s32 1, %s18
    $region7: #{_stem_impl.2} parent=1 // loop_footer_branch
      %17 = sbr.rel target = $region3
    $region8: #{_stem_impl.2} parent=1 // loop_exit
      _
    %3757 = vsyncpa [#allocation8], 1
    %s3758 = scalar_lea.sflag [#allocation8], 1
    %3759 = vsyncpa %s3758, 1

</llo_original>
